<compile_context>
chip_gen: v5e
topology: v5e:2x2
jax: 0.10.0
libtpu: 0.0.40
codegen_flags: <defaults>
</compile_context>

<pallas_src>
import functools

import jax
import jax.numpy as jnp
import numpy as np
from jax.experimental import pallas as pl
from jax.experimental.pallas import tpu as pltpu

# ---- small synthetic CLIP-text dimensions -----------------------------------
B, S, D, H, L, E = 2, 8, 32, 4, 2, 16      # batch, seq, width, heads, layers, proj dim
DH = D // H
SCALE = 1.0 / float(DH) ** 0.5
EPS = 1e-5
NEG_INF = -1e30
E_PAD = ((E + 127) // 128) * 128           # lane-dense output width (multiple of 128)


def _layer_norm(x, g, b):
    mu = jnp.mean(x, axis=-1, keepdims=True)
    var = jnp.mean((x - mu) ** 2, axis=-1, keepdims=True)
    return (x - mu) * jax.lax.rsqrt(var + EPS) * g + b


def _mha_batched(qkv, mask):
    """qkv: (B*S, 3D) f32 -> attention output (B*S, D) f32.

    One QK^T and one PV dot_general batched over all B*H heads.  Head split/merge is a single
    batched minor transpose plus sublane-tile-aligned reshapes (requires DH % 8 == 0); the Q/K/V
    split is a cheap sublane slice of the transposed qkv, never a sub-128-lane slice.
    """
    qkv_t = jnp.swapaxes(qkv.reshape(B, S, 3 * D), 1, 2)            # (B, 3D, S)
    q_t = qkv_t[:, 0 * D:1 * D, :].reshape(B * H, DH, S)            # heads folded into batch dim
    k_t = qkv_t[:, 1 * D:2 * D, :].reshape(B * H, DH, S)
    v_t = qkv_t[:, 2 * D:3 * D, :].reshape(B * H, DH, S)
    q = jnp.swapaxes(q_t, 1, 2)                                     # (B*H, S, DH)

    s = jax.lax.dot_general(                                        # (B*H, S, S)
        q.astype(jnp.bfloat16), k_t.astype(jnp.bfloat16),
        (((2,), (1,)), ((0,), (0,))), preferred_element_type=jnp.float32)
    s = s * SCALE + mask                                            # mask broadcast over B*H
    m = jnp.max(s, axis=-1, keepdims=True)
    e = jnp.exp(s - m)
    p = e * pl.reciprocal(jnp.sum(e, axis=-1, keepdims=True), approx=True)

    o_t = jax.lax.dot_general(                                      # (B*H, DH, S) == (P @ V)^T
        v_t.astype(jnp.bfloat16), p.astype(jnp.bfloat16),
        (((2,), (2,)), ((0,), (0,))), preferred_element_type=jnp.float32)
    return jnp.swapaxes(o_t.reshape(B, D, S), 1, 2).reshape(B * S, D)


def _mha_per_head(qkv, mask):
    """Fallback path (head dim not a multiple of the 8-sublane tile, or relayout unsupported):
    per-head matmuls batched over B, lane-sliced heads."""
    qkv3 = qkv.reshape(B, S, 3 * D)
    heads = []
    for h in range(H):
        q = qkv3[:, :, h * DH:(h + 1) * DH]
        k = qkv3[:, :, D + h * DH:D + (h + 1) * DH]
        v = qkv3[:, :, 2 * D + h * DH:2 * D + (h + 1) * DH]
        s = jax.lax.dot_general(
            q.astype(jnp.bfloat16), k.astype(jnp.bfloat16),
            (((2,), (2,)), ((0,), (0,))), preferred_element_type=jnp.float32)
        s = s * SCALE + mask
        m = jnp.max(s, axis=-1, keepdims=True)
        e = jnp.exp(s - m)
        p = e * pl.reciprocal(jnp.sum(e, axis=-1, keepdims=True), approx=True)
        heads.append(jax.lax.dot_general(
            p.astype(jnp.bfloat16), v.astype(jnp.bfloat16),
            (((2,), (1,)), ((0,), (0,))), preferred_element_type=jnp.float32))
    return jnp.concatenate(heads, axis=-1).reshape(B * S, D)


def text_encoder_kernel(
    eot_ref,                                   # (B,) SMEM scalar prefetch: flat EOT row ids
    prompts_ref, pos_ref, mask_ref,
    ln1g_ref, ln1b_ref, wqkv_ref, bqkv_ref, wout_ref, bout_ref,
    ln2g_ref, ln2b_ref, wfc_ref, bfc_ref, wproj_ref, bproj_ref,
    lnfg_ref, lnfb_ref, tproj_ref,
    out_ref, x_scr,
    *, batched_heads,
):
    step = pl.program_id(0)

    # --- step 0: residual = prompts + positional_embedding --------------------
    @pl.when(step == 0)
    def _init():
        # TODO(synk): at production sizes pass prompts as bf16 / fetch it only for step 0 so it
        # does not stay resident next to the double-buffered weights inside v7x's 64 MiB VMEM.
        x0 = prompts_ref[...] + pos_ref[...][None, :, :]           # (B, S, D)
        x_scr[...] = x0.reshape(B * S, D)

    mask = mask_ref[...]                                           # (S, S), built once in wrapper
    mha = _mha_batched if batched_heads else _mha_per_head

    x = x_scr[...]                                                 # (B*S, D) f32
    n_local = wqkv_ref.shape[0]     # layers held by this grid step (=L resident, =1 streamed)
    for ll in range(n_local):       # static unroll
        # --- residual attention block --------------------------------------------------------
        xn = _layer_norm(x, ln1g_ref[ll], ln1b_ref[ll])
        qkv = jnp.dot(xn.astype(jnp.bfloat16), wqkv_ref[ll],
                      preferred_element_type=jnp.float32) + bqkv_ref[ll]     # (B*S, 3D)
        attn = mha(qkv, mask)                                                # (B*S, D)
        x = x + jnp.dot(attn.astype(jnp.bfloat16), wout_ref[ll],
                        preferred_element_type=jnp.float32) + bout_ref[ll]
        # --- MLP (QuickGELU) ------------------------------------------------------------------
        xn = _layer_norm(x, ln2g_ref[ll], ln2b_ref[ll])
        h1 = jnp.dot(xn.astype(jnp.bfloat16), wfc_ref[ll],
                     preferred_element_type=jnp.float32) + bfc_ref[ll]
        h1 = h1 * jax.nn.sigmoid(1.702 * h1)                                 # f32 stats (v5e EUP)
        x = x + jnp.dot(h1.astype(jnp.bfloat16), wproj_ref[ll],
                        preferred_element_type=jnp.float32) + bproj_ref[ll]
    x_scr[...] = x

    # --- last step: gather EOT rows, ln_final, project -------------------------
    @pl.when(step == pl.num_programs(0) - 1)
    def _final():
        # TODO(synk): replace the unrolled B-row gather with a fori_loop writing a (B, D) scratch
        # once B (number of class prompts) grows past a handful.
        rows = [x_scr[pl.ds(eot_ref[b], 1), :] for b in range(B)]
        pooled = jnp.concatenate(rows, axis=0)                     # (B, D)
        pooled = _layer_norm(pooled, lnfg_ref[...], lnfb_ref[...]) # ln_final on EOT rows only
        out_ref[...] = jnp.dot(pooled.astype(jnp.bfloat16), tproj_ref[...],
                               preferred_element_type=jnp.float32)


def text_encoder(params, prompts, tokenized_prompts, *, batched_heads=True):
    # EOT pooling index (CLIP: the EOT token has the largest id -> argmax), flattened into the
    # (B*S, D) residual row space; scalar-prefetched into SMEM.
    eot = (jnp.argmax(tokenized_prompts, axis=-1).astype(jnp.int32)
           + S * jnp.arange(B, dtype=jnp.int32))

    bf = lambda k: params[k].astype(jnp.bfloat16)   # MXU operands (halves weight DMA)
    f32 = lambda k: params[k].astype(jnp.float32)   # LN params / biases stay f32
    # TODO(synk): on v7x the streamed weights (wqkv/wout/wfc/wproj) could be fp8 (f32 accumulation)
    # to halve the DMA again; on v6e pad matmul lane dims to multiples of 256 at production widths.

    # causal mask built ONCE here and passed as a resident (S, S) input (hoisted out of the
    # per-layer grid body).
    idx = jnp.arange(S)
    causal = jnp.where(idx[None, :] > idx[:, None], NEG_INF, 0.0).astype(jnp.float32)

    # lane-dense output: pad text_projection / output block to a 128-lane multiple (v5e vst).
    tproj = jnp.pad(bf("tproj"), ((0, 0), (0, E_PAD - E)))

    args = (
        prompts.astype(jnp.float32), f32("pos"), causal,
        f32("ln1g"), f32("ln1b"), bf("wqkv"), f32("bqkv"), bf("wout"), f32("bout"),
        f32("ln2g"), f32("ln2b"), bf("wfc"), f32("bfc"), bf("wproj"), f32("bproj"),
        f32("lnfg"), f32("lnfb"), tproj,
    )

    # ---- size-conditional layer streaming ------------------------------------------------------
    # per-layer streamed footprint: bf16 weights (12*D*D elems) + f32 biases / LN params (13*D).
    per_layer_bytes = 2 * (12 * D * D) + 4 * (13 * D)
    lps = L if L * per_layer_bytes < 24 * 2 ** 20 else 1     # layers per grid step
    n_steps = L // lps
    # TODO(synk): for v7x add a leading "parallel" batch-tile grid axis (per-tile residual scratch)
    # so the second TensorCore is used; the layer axis stays "arbitrary".

    per_layer = lambda *s: pl.BlockSpec((lps,) + s, lambda i, eot_r: (i,) + (0,) * len(s))
    resident = lambda *s: pl.BlockSpec(s, lambda i, eot_r: (0,) * len(s))

    grid_spec = pltpu.PrefetchScalarGridSpec(
        num_scalar_prefetch=1,
        grid=(n_steps,),
        in_specs=[
            resident(B, S, D),                             # prompts (read at step 0 only)
            resident(S, D),                                 # positional embedding
            resident(S, S),                                 # causal mask
            per_layer(1, D), per_layer(1, D),               # ln1 gamma / beta
            per_layer(D, 3 * D), per_layer(1, 3 * D),       # W_qkv / b_qkv   (bf16 / f32)
            per_layer(D, D), per_layer(1, D),               # W_out / b_out
            per_layer(1, D), per_layer(1, D),               # ln2 gamma / beta
            per_layer(D, 4 * D), per_layer(1, 4 * D),       # W_fc / b_fc
            per_layer(4 * D, D), per_layer(1, D),           # W_proj / b_proj
            resident(1, D), resident(1, D),                 # ln_final gamma / beta
            resident(D, E_PAD),                             # text_projection (lane padded)
        ],
        out_specs=pl.BlockSpec((B, E_PAD), lambda i, eot_r: (0, 0)),
        scratch_shapes=[pltpu.VMEM((B * S, D), jnp.float32)],   # residual stream, carried over steps
    )

    # explicit VMEM budget: 2x streamed per-step weights (double buffer) + resident inputs +
    # residual scratch + activation peak, clamped to v7x's 64 MiB physical VMEM.
    act_bytes = 4 * (2 * B * S * 4 * D + 3 * B * H * S * S + 4 * B * S * D)
    vmem_limit = int(min(64 * 2 ** 20,
                         max(16 * 2 ** 20,
                             2 * lps * per_layer_bytes
                             + 4 * (B * S * D + S * D + S * S + 4 * D) + 2 * D * E_PAD
                             + 4 * B * S * D + act_bytes + (1 << 20))))

    kernel = functools.partial(text_encoder_kernel,
                               batched_heads=batched_heads and (DH % 8 == 0))
    out = pl.pallas_call(
        kernel,
        out_shape=jax.ShapeDtypeStruct((B, E_PAD), jnp.float32),
        grid_spec=grid_spec,
        compiler_params=pltpu.CompilerParams(
            dimension_semantics=("arbitrary",),            # layer axis is inherently serial
            vmem_limit_bytes=vmem_limit),
    )(eot, *args)
    return out[:, :E]


# ---------------------- pure-JAX reference (PyTorch semantics, f32) ----------------------
def reference(params, prompts, tokenized_prompts):
    def ln(x, g, b):
        mu = jnp.mean(x, axis=-1, keepdims=True)
        var = jnp.mean((x - mu) ** 2, axis=-1, keepdims=True)
        return (x - mu) * jax.lax.rsqrt(var + EPS) * g + b

    x = prompts + params["pos"]                                       # (B, S, D)
    idx = jnp.arange(S)
    causal = jnp.where(idx[None, :] > idx[:, None], NEG_INF, 0.0)
    for l in range(L):
        xn = ln(x, params["ln1g"][l], params["ln1b"][l])
        qkv = xn @ params["wqkv"][l] + params["bqkv"][l]
        q, k, v = jnp.split(qkv, 3, axis=-1)
        q = q.reshape(B, S, H, DH); k = k.reshape(B, S, H, DH); v = v.reshape(B, S, H, DH)
        s = jnp.einsum("bqhd,bkhd->bhqk", q, k) * SCALE + causal
        p = jax.nn.softmax(s, axis=-1)
        o = jnp.einsum("bhqk,bkhd->bqhd", p, v).reshape(B, S, D)
        x = x + o @ params["wout"][l] + params["bout"][l]
        xn = ln(x, params["ln2g"][l], params["ln2b"][l])
        h1 = xn @ params["wfc"][l] + params["bfc"][l]
        h1 = h1 * jax.nn.sigmoid(1.702 * h1)
        x = x + h1 @ params["wproj"][l] + params["bproj"][l]
    x = ln(x, params["lnfg"], params["lnfb"])
    eot = jnp.argmax(tokenized_prompts, axis=-1)
    return x[jnp.arange(B), eot] @ params["tproj"]


def make_params(key):
    ks = jax.random.split(key, 16)
    n = lambda k, s, sc: (sc * jax.random.normal(k, s)).astype(jnp.float32)
    return {
        "pos":   n(ks[0], (S, D), 0.01),
        "ln1g":  1.0 + n(ks[1], (L, 1, D), 0.01),
        "ln1b":  n(ks[2], (L, 1, D), 0.01),
        "wqkv":  n(ks[3], (L, D, 3 * D), 0.05),   # pre-transposed Linear weights (x @ W)
        "bqkv":  n(ks[4], (L, 1, 3 * D), 0.01),
        "wout":  n(ks[5], (L, D, D), 0.05),
        "bout":  n(ks[6], (L, 1, D), 0.01),
        "ln2g":  1.0 + n(ks[7], (L, 1, D), 0.01),
        "ln2b":  n(ks[8], (L, 1, D), 0.01),
        "wfc":   n(ks[9], (L, D, 4 * D), 0.05),
        "bfc":   n(ks[10], (L, 1, 4 * D), 0.01),
        "wproj": n(ks[11], (L, 4 * D, D), 0.05),
        "bproj": n(ks[12], (L, 1, D), 0.01),
        "lnfg":  1.0 + n(ks[13], (1, D), 0.01),
        "lnfb":  n(ks[14], (1, D), 0.01),
        "tproj": n(ks[15], (D, E), 0.05),
    }


if __name__ == "__main__":
    key = jax.random.PRNGKey(0)
    kp, kx, kt = jax.random.split(key, 3)
    params = make_params(kp)

    prompts = (0.02 * jax.random.normal(kx, (B, S, D))).astype(jnp.float32)
    tok = jax.random.randint(kt, (B, S), 1, 100).astype(jnp.int32)
    # place an EOT (largest token id) per sequence, like CLIP tokenization
    tok = tok.at[0, 5].set(49407)
    tok = tok.at[1, 7].set(49407)

    try:
        out = jax.block_until_ready(text_encoder(params, prompts, tok, batched_heads=True))
    except Exception:
        # Fallback: per-head attention path, kept for Mosaic versions / head dims where the
        # head-batched relayout does not lower.  Numerics are identical.
        out = jax.block_until_ready(text_encoder(params, prompts, tok, batched_heads=False))

    ref = jax.block_until_ready(reference(params, prompts, tok))

    assert out.shape == (B, E) and out.dtype == jnp.float32
    # tolerance reflects bf16 MXU operands (f32 accumulation, f32 LN/softmax statistics)
    np.testing.assert_allclose(np.asarray(out), np.asarray(ref), rtol=2e-2, atol=2e-2)
    print("KERNEL_OK")
</pallas_src>

<mosaic_0001>
module attributes {stable_mosaic.version = 11 : i64} {
  func.func @text_encoder_kernel(%arg0: i32, %arg1: memref<2xi32, #tpu.memory_space<smem>>, %arg2: memref<2x8x32xf32, #tpu.memory_space<vmem>>, %arg3: memref<8x32xf32, #tpu.memory_space<vmem>>, %arg4: memref<8x8xf32, #tpu.memory_space<vmem>>, %arg5: memref<2x1x32xf32, #tpu.memory_space<vmem>>, %arg6: memref<2x1x32xf32, #tpu.memory_space<vmem>>, %arg7: memref<2x32x96xbf16, #tpu.memory_space<vmem>>, %arg8: memref<2x1x96xf32, #tpu.memory_space<vmem>>, %arg9: memref<2x32x32xbf16, #tpu.memory_space<vmem>>, %arg10: memref<2x1x32xf32, #tpu.memory_space<vmem>>, %arg11: memref<2x1x32xf32, #tpu.memory_space<vmem>>, %arg12: memref<2x1x32xf32, #tpu.memory_space<vmem>>, %arg13: memref<2x32x128xbf16, #tpu.memory_space<vmem>>, %arg14: memref<2x1x128xf32, #tpu.memory_space<vmem>>, %arg15: memref<2x128x32xbf16, #tpu.memory_space<vmem>>, %arg16: memref<2x1x32xf32, #tpu.memory_space<vmem>>, %arg17: memref<1x32xf32, #tpu.memory_space<vmem>>, %arg18: memref<1x32xf32, #tpu.memory_space<vmem>>, %arg19: memref<32x128xbf16, #tpu.memory_space<vmem>>, %arg20: memref<2x128xf32, #tpu.memory_space<vmem>>, %arg21: memref<16x32xf32, #tpu.memory_space<vmem>>) attributes {dimension_semantics = [#tpu.dimension_semantics<arbitrary>], iteration_bounds = array<i64: 1>, scalar_prefetch = 1 : i64, scratch_operands = 1 : i64, tpu.core_type = #tpu.core_type<tc>, window_params = [{pipeline_mode = #tpu.pipeline_mode<synchronous>, transform_indices = @transform_0, window_bounds = array<i64: 2, 8, 32>}, {pipeline_mode = #tpu.pipeline_mode<synchronous>, transform_indices = @transform_1, window_bounds = array<i64: 8, 32>}, {pipeline_mode = #tpu.pipeline_mode<synchronous>, transform_indices = @transform_2, window_bounds = array<i64: 8, 8>}, {transform_indices = @transform_3, window_bounds = array<i64: 2, 1, 32>}, {transform_indices = @transform_4, window_bounds = array<i64: 2, 1, 32>}, {transform_indices = @transform_5, window_bounds = array<i64: 2, 32, 96>}, {transform_indices = @transform_6, window_bounds = array<i64: 2, 1, 96>}, {transform_indices = @transform_7, window_bounds = array<i64: 2, 32, 32>}, {transform_indices = @transform_8, window_bounds = array<i64: 2, 1, 32>}, {transform_indices = @transform_9, window_bounds = array<i64: 2, 1, 32>}, {transform_indices = @transform_10, window_bounds = array<i64: 2, 1, 32>}, {transform_indices = @transform_11, window_bounds = array<i64: 2, 32, 128>}, {transform_indices = @transform_12, window_bounds = array<i64: 2, 1, 128>}, {transform_indices = @transform_13, window_bounds = array<i64: 2, 128, 32>}, {transform_indices = @transform_14, window_bounds = array<i64: 2, 1, 32>}, {pipeline_mode = #tpu.pipeline_mode<synchronous>, transform_indices = @transform_15, window_bounds = array<i64: 1, 32>}, {pipeline_mode = #tpu.pipeline_mode<synchronous>, transform_indices = @transform_16, window_bounds = array<i64: 1, 32>}, {pipeline_mode = #tpu.pipeline_mode<synchronous>, transform_indices = @transform_17, window_bounds = array<i64: 32, 128>}, {pipeline_mode = #tpu.pipeline_mode<synchronous>, transform_indices = @transform_18, window_bounds = array<i64: 2, 128>}]} {
    %c0_i32 = arith.constant 0 : i32
    %0 = arith.cmpi eq, %arg0, %c0_i32 : i32
    %1 = arith.extui %0 : i1 to i32
    %c0_i32_0 = arith.constant 0 : i32
    %2 = arith.cmpi ne, %1, %c0_i32_0 : i32
    scf.if %2 {
      %c0_120 = arith.constant 0 : index
      %c0_121 = arith.constant 0 : index
      %c0_122 = arith.constant 0 : index
      %263 = vector.load %arg2[%c0_120, %c0_121, %c0_122] : memref<2x8x32xf32, #tpu.memory_space<vmem>>, vector<2x8x32xf32>
      %c0_123 = arith.constant 0 : index
      %c0_124 = arith.constant 0 : index
      %264 = vector.load %arg3[%c0_123, %c0_124] : memref<8x32xf32, #tpu.memory_space<vmem>>, vector<8x32xf32>
      %265 = vector.shape_cast %264 : vector<8x32xf32> to vector<1x8x32xf32>
      %266 = vector.broadcast %265 : vector<1x8x32xf32> to vector<2x8x32xf32>
      %267 = arith.addf %263, %266 : vector<2x8x32xf32>
      %268 = vector.shape_cast %267 : vector<2x8x32xf32> to vector<16x32xf32>
      %c0_125 = arith.constant 0 : index
      %c0_126 = arith.constant 0 : index
      %269 = vector.load %arg21[%c0_125, %c0_126] : memref<16x32xf32, #tpu.memory_space<vmem>>, vector<16x32xf32>
      tpu.vector_store %arg21[%c0_125, %c0_126], %268 {strides = array<i32>} : memref<16x32xf32, #tpu.memory_space<vmem>>, vector<16x32xf32>,
    } else {
    }
    %c0 = arith.constant 0 : index
    %c0_1 = arith.constant 0 : index
    %3 = vector.load %arg4[%c0, %c0_1] : memref<8x8xf32, #tpu.memory_space<vmem>>, vector<8x8xf32>
    %c0_2 = arith.constant 0 : index
    %c0_3 = arith.constant 0 : index
    %4 = vector.load %arg21[%c0_2, %c0_3] : memref<16x32xf32, #tpu.memory_space<vmem>>, vector<16x32xf32>
    %c0_4 = arith.constant 0 : index
    %c0_5 = arith.constant 0 : index
    %c0_6 = arith.constant 0 : index
    %5 = vector.load %arg5[%c0_4, %c0_5, %c0_6] : memref<2x1x32xf32, #tpu.memory_space<vmem>>, vector<1x1x32xf32>
    %6 = vector.shape_cast %5 : vector<1x1x32xf32> to vector<1x32xf32>
    %c0_7 = arith.constant 0 : index
    %c0_8 = arith.constant 0 : index
    %c0_9 = arith.constant 0 : index
    %7 = vector.load %arg6[%c0_7, %c0_8, %c0_9] : memref<2x1x32xf32, #tpu.memory_space<vmem>>, vector<1x1x32xf32>
    %8 = vector.shape_cast %7 : vector<1x1x32xf32> to vector<1x32xf32>
    %cst = arith.constant dense<0.000000e+00> : vector<16xf32>
    %9 = vector.multi_reduction <add>, %4, %cst [1] : vector<16x32xf32> to vector<16xf32>
    %10 = vector.shape_cast %9 : vector<16xf32> to vector<16x1xf32>
    %cst_10 = arith.constant 3.200000e+01 : f32
    %11 = vector.broadcast %cst_10 : f32 to vector<16x1xf32>
    %12 = arith.divf %10, %11 : vector<16x1xf32>
    %13 = vector.broadcast %12 : vector<16x1xf32> to vector<16x32xf32>
    %14 = arith.subf %4, %13 : vector<16x32xf32>
    %15 = arith.mulf %14, %14 : vector<16x32xf32>
    %cst_11 = arith.constant dense<0.000000e+00> : vector<16xf32>
    %16 = vector.multi_reduction <add>, %15, %cst_11 [1] : vector<16x32xf32> to vector<16xf32>
    %17 = vector.shape_cast %16 : vector<16xf32> to vector<16x1xf32>
    %cst_12 = arith.constant 3.200000e+01 : f32
    %18 = vector.broadcast %cst_12 : f32 to vector<16x1xf32>
    %19 = arith.divf %17, %18 : vector<16x1xf32>
    %20 = vector.broadcast %12 : vector<16x1xf32> to vector<16x32xf32>
    %21 = arith.subf %4, %20 : vector<16x32xf32>
    %cst_13 = arith.constant 9.99999974E-6 : f32
    %22 = vector.broadcast %cst_13 : f32 to vector<16x1xf32>
    %23 = arith.addf %19, %22 : vector<16x1xf32>
    %24 = math.rsqrt %23 : vector<16x1xf32>
    %25 = vector.broadcast %24 : vector<16x1xf32> to vector<16x32xf32>
    %26 = arith.mulf %21, %25 : vector<16x32xf32>
    %27 = vector.broadcast %6 : vector<1x32xf32> to vector<16x32xf32>
    %28 = arith.mulf %26, %27 : vector<16x32xf32>
    %29 = vector.broadcast %8 : vector<1x32xf32> to vector<16x32xf32>
    %30 = arith.addf %28, %29 : vector<16x32xf32>
    %31 = arith.truncf %30 : vector<16x32xf32> to vector<16x32xbf16>
    %c0_14 = arith.constant 0 : index
    %c0_15 = arith.constant 0 : index
    %c0_16 = arith.constant 0 : index
    %32 = vector.load %arg7[%c0_14, %c0_15, %c0_16] : memref<2x32x96xbf16, #tpu.memory_space<vmem>>, vector<1x32x96xbf16>
    %33 = vector.shape_cast %32 : vector<1x32x96xbf16> to vector<32x96xbf16>
    %cst_17 = arith.constant dense<0.000000e+00> : vector<16x96xf32>
    %34 = tpu.matmul %31, %33, %cst_17 {dimension_numbers = #tpu.dot_dimension_numbers<[1], [0], [0], [1], [0, 0, 1, 1], [], []>} : vector<16x32xbf16>, vector<32x96xbf16>, vector<16x96xf32> -> vector<16x96xf32>
    %c0_18 = arith.constant 0 : index
    %c0_19 = arith.constant 0 : index
    %c0_20 = arith.constant 0 : index
    %35 = vector.load %arg8[%c0_18, %c0_19, %c0_20] : memref<2x1x96xf32, #tpu.memory_space<vmem>>, vector<1x1x96xf32>
    %36 = vector.shape_cast %35 : vector<1x1x96xf32> to vector<1x96xf32>
    %37 = vector.broadcast %36 : vector<1x96xf32> to vector<16x96xf32>
    %38 = arith.addf %34, %37 : vector<16x96xf32>
    %39 = vector.shape_cast %38 : vector<16x96xf32> to vector<2x8x96xf32>
    %40 = tpu.transpose %39, [0, 2, 1] : vector<2x8x96xf32> -> vector<2x96x8xf32>
    %41 = vector.extract_strided_slice %40 {offsets = [0, 0, 0], sizes = [2, 32, 8], strides = [1, 1, 1]} : vector<2x96x8xf32> to vector<2x32x8xf32>
    %42 = vector.shape_cast %41 : vector<2x32x8xf32> to vector<8x8x8xf32>
    %43 = vector.extract_strided_slice %40 {offsets = [0, 32, 0], sizes = [2, 32, 8], strides = [1, 1, 1]} : vector<2x96x8xf32> to vector<2x32x8xf32>
    %44 = vector.shape_cast %43 : vector<2x32x8xf32> to vector<8x8x8xf32>
    %45 = vector.extract_strided_slice %40 {offsets = [0, 64, 0], sizes = [2, 32, 8], strides = [1, 1, 1]} : vector<2x96x8xf32> to vector<2x32x8xf32>
    %46 = vector.shape_cast %45 : vector<2x32x8xf32> to vector<8x8x8xf32>
    %47 = tpu.transpose %42, [0, 2, 1] : vector<8x8x8xf32> -> vector<8x8x8xf32>
    %48 = arith.truncf %47 : vector<8x8x8xf32> to vector<8x8x8xbf16>
    %49 = arith.truncf %44 : vector<8x8x8xf32> to vector<8x8x8xbf16>
    %cst_21 = arith.constant dense<0.000000e+00> : vector<8x8x8xf32>
    %50 = tpu.matmul %48, %49, %cst_21 {dimension_numbers = #tpu.dot_dimension_numbers<[2], [1], [1], [2], [0, 0, 0, 1, 1, 2], [0], [0]>} : vector<8x8x8xbf16>, vector<8x8x8xbf16>, vector<8x8x8xf32> -> vector<8x8x8xf32>
    %cst_22 = arith.constant 0.353553385 : f32
    %51 = vector.broadcast %cst_22 : f32 to vector<8x8x8xf32>
    %52 = arith.mulf %50, %51 : vector<8x8x8xf32>
    %53 = vector.shape_cast %3 : vector<8x8xf32> to vector<1x8x8xf32>
    %54 = vector.broadcast %53 : vector<1x8x8xf32> to vector<8x8x8xf32>
    %55 = arith.addf %52, %54 : vector<8x8x8xf32>
    %cst_23 = arith.constant dense<0xFF800000> : vector<8x8xf32>
    %56 = vector.multi_reduction <maximumf>, %55, %cst_23 [2] : vector<8x8x8xf32> to vector<8x8xf32>
    %57 = vector.shape_cast %56 : vector<8x8xf32> to vector<8x8x1xf32>
    %58 = vector.broadcast %57 : vector<8x8x1xf32> to vector<8x8x8xf32>
    %59 = arith.subf %55, %58 : vector<8x8x8xf32>
    %60 = math.exp %59 : vector<8x8x8xf32>
    %cst_24 = arith.constant dense<0.000000e+00> : vector<8x8xf32>
    %61 = vector.multi_reduction <add>, %60, %cst_24 [2] : vector<8x8x8xf32> to vector<8x8xf32>
    %62 = vector.shape_cast %61 : vector<8x8xf32> to vector<8x8x1xf32>
    %63 = tpu.reciprocal %62 {approx = true} : vector<8x8x1xf32> -> vector<8x8x1xf32>
    %64 = vector.broadcast %63 : vector<8x8x1xf32> to vector<8x8x8xf32>
    %65 = arith.mulf %60, %64 : vector<8x8x8xf32>
    %66 = arith.truncf %46 : vector<8x8x8xf32> to vector<8x8x8xbf16>
    %67 = arith.truncf %65 : vector<8x8x8xf32> to vector<8x8x8xbf16>
    %cst_25 = arith.constant dense<0.000000e+00> : vector<8x8x8xf32>
    %68 = tpu.matmul %66, %67, %cst_25 {dimension_numbers = #tpu.dot_dimension_numbers<[2], [2], [1], [1], [0, 0, 0, 1, 1, 1], [0], [0]>} : vector<8x8x8xbf16>, vector<8x8x8xbf16>, vector<8x8x8xf32> -> vector<8x8x8xf32>
    %69 = vector.shape_cast %68 : vector<8x8x8xf32> to vector<2x32x8xf32>
    %70 = tpu.transpose %69, [0, 2, 1] : vector<2x32x8xf32> -> vector<2x8x32xf32>
    %71 = vector.shape_cast %70 : vector<2x8x32xf32> to vector<16x32xf32>
    %72 = arith.truncf %71 : vector<16x32xf32> to vector<16x32xbf16>
    %c0_26 = arith.constant 0 : index
    %c0_27 = arith.constant 0 : index
    %c0_28 = arith.constant 0 : index
    %73 = vector.load %arg9[%c0_26, %c0_27, %c0_28] : memref<2x32x32xbf16, #tpu.memory_space<vmem>>, vector<1x32x32xbf16>
    %74 = vector.shape_cast %73 : vector<1x32x32xbf16> to vector<32x32xbf16>
    %cst_29 = arith.constant dense<0.000000e+00> : vector<16x32xf32>
    %75 = tpu.matmul %72, %74, %cst_29 {dimension_numbers = #tpu.dot_dimension_numbers<[1], [0], [0], [1], [0, 0, 1, 1], [], []>} : vector<16x32xbf16>, vector<32x32xbf16>, vector<16x32xf32> -> vector<16x32xf32>
    %76 = arith.addf %4, %75 : vector<16x32xf32>
    %c0_30 = arith.constant 0 : index
    %c0_31 = arith.constant 0 : index
    %c0_32 = arith.constant 0 : index
    %77 = vector.load %arg10[%c0_30, %c0_31, %c0_32] : memref<2x1x32xf32, #tpu.memory_space<vmem>>, vector<1x1x32xf32>
    %78 = vector.shape_cast %77 : vector<1x1x32xf32> to vector<1x32xf32>
    %79 = vector.broadcast %78 : vector<1x32xf32> to vector<16x32xf32>
    %80 = arith.addf %76, %79 : vector<16x32xf32>
    %c0_33 = arith.constant 0 : index
    %c0_34 = arith.constant 0 : index
    %c0_35 = arith.constant 0 : index
    %81 = vector.load %arg11[%c0_33, %c0_34, %c0_35] : memref<2x1x32xf32, #tpu.memory_space<vmem>>, vector<1x1x32xf32>
    %82 = vector.shape_cast %81 : vector<1x1x32xf32> to vector<1x32xf32>
    %c0_36 = arith.constant 0 : index
    %c0_37 = arith.constant 0 : index
    %c0_38 = arith.constant 0 : index
    %83 = vector.load %arg12[%c0_36, %c0_37, %c0_38] : memref<2x1x32xf32, #tpu.memory_space<vmem>>, vector<1x1x32xf32>
    %84 = vector.shape_cast %83 : vector<1x1x32xf32> to vector<1x32xf32>
    %cst_39 = arith.constant dense<0.000000e+00> : vector<16xf32>
    %85 = vector.multi_reduction <add>, %80, %cst_39 [1] : vector<16x32xf32> to vector<16xf32>
    %86 = vector.shape_cast %85 : vector<16xf32> to vector<16x1xf32>
    %cst_40 = arith.constant 3.200000e+01 : f32
    %87 = vector.broadcast %cst_40 : f32 to vector<16x1xf32>
    %88 = arith.divf %86, %87 : vector<16x1xf32>
    %89 = vector.broadcast %88 : vector<16x1xf32> to vector<16x32xf32>
    %90 = arith.subf %80, %89 : vector<16x32xf32>
    %91 = arith.mulf %90, %90 : vector<16x32xf32>
    %cst_41 = arith.constant dense<0.000000e+00> : vector<16xf32>
    %92 = vector.multi_reduction <add>, %91, %cst_41 [1] : vector<16x32xf32> to vector<16xf32>
    %93 = vector.shape_cast %92 : vector<16xf32> to vector<16x1xf32>
    %cst_42 = arith.constant 3.200000e+01 : f32
    %94 = vector.broadcast %cst_42 : f32 to vector<16x1xf32>
    %95 = arith.divf %93, %94 : vector<16x1xf32>
    %96 = vector.broadcast %88 : vector<16x1xf32> to vector<16x32xf32>
    %97 = arith.subf %80, %96 : vector<16x32xf32>
    %cst_43 = arith.constant 9.99999974E-6 : f32
    %98 = vector.broadcast %cst_43 : f32 to vector<16x1xf32>
    %99 = arith.addf %95, %98 : vector<16x1xf32>
    %100 = math.rsqrt %99 : vector<16x1xf32>
    %101 = vector.broadcast %100 : vector<16x1xf32> to vector<16x32xf32>
    %102 = arith.mulf %97, %101 : vector<16x32xf32>
    %103 = vector.broadcast %82 : vector<1x32xf32> to vector<16x32xf32>
    %104 = arith.mulf %102, %103 : vector<16x32xf32>
    %105 = vector.broadcast %84 : vector<1x32xf32> to vector<16x32xf32>
    %106 = arith.addf %104, %105 : vector<16x32xf32>
    %107 = arith.truncf %106 : vector<16x32xf32> to vector<16x32xbf16>
    %c0_44 = arith.constant 0 : index
    %c0_45 = arith.constant 0 : index
    %c0_46 = arith.constant 0 : index
    %108 = vector.load %arg13[%c0_44, %c0_45, %c0_46] : memref<2x32x128xbf16, #tpu.memory_space<vmem>>, vector<1x32x128xbf16>
    %109 = vector.shape_cast %108 : vector<1x32x128xbf16> to vector<32x128xbf16>
    %cst_47 = arith.constant dense<0.000000e+00> : vector<16x128xf32>
    %110 = tpu.matmul %107, %109, %cst_47 {dimension_numbers = #tpu.dot_dimension_numbers<[1], [0], [0], [1], [0, 0, 1, 1], [], []>} : vector<16x32xbf16>, vector<32x128xbf16>, vector<16x128xf32> -> vector<16x128xf32>
    %c0_48 = arith.constant 0 : index
    %c0_49 = arith.constant 0 : index
    %c0_50 = arith.constant 0 : index
    %111 = vector.load %arg14[%c0_48, %c0_49, %c0_50] : memref<2x1x128xf32, #tpu.memory_space<vmem>>, vector<1x1x128xf32>
    %112 = vector.shape_cast %111 : vector<1x1x128xf32> to vector<1x128xf32>
    %113 = vector.broadcast %112 : vector<1x128xf32> to vector<16x128xf32>
    %114 = arith.addf %110, %113 : vector<16x128xf32>
    %cst_51 = arith.constant 1.702000e+00 : f32
    %115 = vector.broadcast %cst_51 : f32 to vector<16x128xf32>
    %116 = arith.mulf %115, %114 : vector<16x128xf32>
    %117 = arith.negf %116 : vector<16x128xf32>
    %118 = math.exp %117 : vector<16x128xf32>
    %cst_52 = arith.constant 1.000000e+00 : f32
    %119 = vector.broadcast %cst_52 : f32 to vector<16x128xf32>
    %120 = arith.addf %119, %118 : vector<16x128xf32>
    %121 = arith.divf %119, %120 : vector<16x128xf32>
    %122 = arith.mulf %114, %121 : vector<16x128xf32>
    %123 = arith.truncf %122 : vector<16x128xf32> to vector<16x128xbf16>
    %c0_53 = arith.constant 0 : index
    %c0_54 = arith.constant 0 : index
    %c0_55 = arith.constant 0 : index
    %124 = vector.load %arg15[%c0_53, %c0_54, %c0_55] : memref<2x128x32xbf16, #tpu.memory_space<vmem>>, vector<1x128x32xbf16>
    %125 = vector.shape_cast %124 : vector<1x128x32xbf16> to vector<128x32xbf16>
    %cst_56 = arith.constant dense<0.000000e+00> : vector<16x32xf32>
    %126 = tpu.matmul %123, %125, %cst_56 {dimension_numbers = #tpu.dot_dimension_numbers<[1], [0], [0], [1], [0, 0, 1, 1], [], []>} : vector<16x128xbf16>, vector<128x32xbf16>, vector<16x32xf32> -> vector<16x32xf32>
    %127 = arith.addf %80, %126 : vector<16x32xf32>
    %c0_57 = arith.constant 0 : index
    %c0_58 = arith.constant 0 : index
    %c0_59 = arith.constant 0 : index
    %128 = vector.load %arg16[%c0_57, %c0_58, %c0_59] : memref<2x1x32xf32, #tpu.memory_space<vmem>>, vector<1x1x32xf32>
    %129 = vector.shape_cast %128 : vector<1x1x32xf32> to vector<1x32xf32>
    %130 = vector.broadcast %129 : vector<1x32xf32> to vector<16x32xf32>
    %131 = arith.addf %127, %130 : vector<16x32xf32>
    %c1 = arith.constant 1 : index
    %c0_60 = arith.constant 0 : index
    %c0_61 = arith.constant 0 : index
    %132 = vector.load %arg5[%c1, %c0_60, %c0_61] : memref<2x1x32xf32, #tpu.memory_space<vmem>>, vector<1x1x32xf32>
    %133 = vector.shape_cast %132 : vector<1x1x32xf32> to vector<1x32xf32>
    %c1_62 = arith.constant 1 : index
    %c0_63 = arith.constant 0 : index
    %c0_64 = arith.constant 0 : index
    %134 = vector.load %arg6[%c1_62, %c0_63, %c0_64] : memref<2x1x32xf32, #tpu.memory_space<vmem>>, vector<1x1x32xf32>
    %135 = vector.shape_cast %134 : vector<1x1x32xf32> to vector<1x32xf32>
    %cst_65 = arith.constant dense<0.000000e+00> : vector<16xf32>
    %136 = vector.multi_reduction <add>, %131, %cst_65 [1] : vector<16x32xf32> to vector<16xf32>
    %137 = vector.shape_cast %136 : vector<16xf32> to vector<16x1xf32>
    %cst_66 = arith.constant 3.200000e+01 : f32
    %138 = vector.broadcast %cst_66 : f32 to vector<16x1xf32>
    %139 = arith.divf %137, %138 : vector<16x1xf32>
    %140 = vector.broadcast %139 : vector<16x1xf32> to vector<16x32xf32>
    %141 = arith.subf %131, %140 : vector<16x32xf32>
    %142 = arith.mulf %141, %141 : vector<16x32xf32>
    %cst_67 = arith.constant dense<0.000000e+00> : vector<16xf32>
    %143 = vector.multi_reduction <add>, %142, %cst_67 [1] : vector<16x32xf32> to vector<16xf32>
    %144 = vector.shape_cast %143 : vector<16xf32> to vector<16x1xf32>
    %cst_68 = arith.constant 3.200000e+01 : f32
    %145 = vector.broadcast %cst_68 : f32 to vector<16x1xf32>
    %146 = arith.divf %144, %145 : vector<16x1xf32>
    %147 = vector.broadcast %139 : vector<16x1xf32> to vector<16x32xf32>
    %148 = arith.subf %131, %147 : vector<16x32xf32>
    %cst_69 = arith.constant 9.99999974E-6 : f32
    %149 = vector.broadcast %cst_69 : f32 to vector<16x1xf32>
    %150 = arith.addf %146, %149 : vector<16x1xf32>
    %151 = math.rsqrt %150 : vector<16x1xf32>
    %152 = vector.broadcast %151 : vector<16x1xf32> to vector<16x32xf32>
    %153 = arith.mulf %148, %152 : vector<16x32xf32>
    %154 = vector.broadcast %133 : vector<1x32xf32> to vector<16x32xf32>
    %155 = arith.mulf %153, %154 : vector<16x32xf32>
    %156 = vector.broadcast %135 : vector<1x32xf32> to vector<16x32xf32>
    %157 = arith.addf %155, %156 : vector<16x32xf32>
    %158 = arith.truncf %157 : vector<16x32xf32> to vector<16x32xbf16>
    %c1_70 = arith.constant 1 : index
    %c0_71 = arith.constant 0 : index
    %c0_72 = arith.constant 0 : index
    %159 = vector.load %arg7[%c1_70, %c0_71, %c0_72] : memref<2x32x96xbf16, #tpu.memory_space<vmem>>, vector<1x32x96xbf16>
    %160 = vector.shape_cast %159 : vector<1x32x96xbf16> to vector<32x96xbf16>
    %cst_73 = arith.constant dense<0.000000e+00> : vector<16x96xf32>
    %161 = tpu.matmul %158, %160, %cst_73 {dimension_numbers = #tpu.dot_dimension_numbers<[1], [0], [0], [1], [0, 0, 1, 1], [], []>} : vector<16x32xbf16>, vector<32x96xbf16>, vector<16x96xf32> -> vector<16x96xf32>
    %c1_74 = arith.constant 1 : index
    %c0_75 = arith.constant 0 : index
    %c0_76 = arith.constant 0 : index
    %162 = vector.load %arg8[%c1_74, %c0_75, %c0_76] : memref<2x1x96xf32, #tpu.memory_space<vmem>>, vector<1x1x96xf32>
    %163 = vector.shape_cast %162 : vector<1x1x96xf32> to vector<1x96xf32>
    %164 = vector.broadcast %163 : vector<1x96xf32> to vector<16x96xf32>
    %165 = arith.addf %161, %164 : vector<16x96xf32>
    %166 = vector.shape_cast %165 : vector<16x96xf32> to vector<2x8x96xf32>
    %167 = tpu.transpose %166, [0, 2, 1] : vector<2x8x96xf32> -> vector<2x96x8xf32>
    %168 = vector.extract_strided_slice %167 {offsets = [0, 0, 0], sizes = [2, 32, 8], strides = [1, 1, 1]} : vector<2x96x8xf32> to vector<2x32x8xf32>
    %169 = vector.shape_cast %168 : vector<2x32x8xf32> to vector<8x8x8xf32>
    %170 = vector.extract_strided_slice %167 {offsets = [0, 32, 0], sizes = [2, 32, 8], strides = [1, 1, 1]} : vector<2x96x8xf32> to vector<2x32x8xf32>
    %171 = vector.shape_cast %170 : vector<2x32x8xf32> to vector<8x8x8xf32>
    %172 = vector.extract_strided_slice %167 {offsets = [0, 64, 0], sizes = [2, 32, 8], strides = [1, 1, 1]} : vector<2x96x8xf32> to vector<2x32x8xf32>
    %173 = vector.shape_cast %172 : vector<2x32x8xf32> to vector<8x8x8xf32>
    %174 = tpu.transpose %169, [0, 2, 1] : vector<8x8x8xf32> -> vector<8x8x8xf32>
    %175 = arith.truncf %174 : vector<8x8x8xf32> to vector<8x8x8xbf16>
    %176 = arith.truncf %171 : vector<8x8x8xf32> to vector<8x8x8xbf16>
    %cst_77 = arith.constant dense<0.000000e+00> : vector<8x8x8xf32>
    %177 = tpu.matmul %175, %176, %cst_77 {dimension_numbers = #tpu.dot_dimension_numbers<[2], [1], [1], [2], [0, 0, 0, 1, 1, 2], [0], [0]>} : vector<8x8x8xbf16>, vector<8x8x8xbf16>, vector<8x8x8xf32> -> vector<8x8x8xf32>
    %cst_78 = arith.constant 0.353553385 : f32
    %178 = vector.broadcast %cst_78 : f32 to vector<8x8x8xf32>
    %179 = arith.mulf %177, %178 : vector<8x8x8xf32>
    %180 = vector.shape_cast %3 : vector<8x8xf32> to vector<1x8x8xf32>
    %181 = vector.broadcast %180 : vector<1x8x8xf32> to vector<8x8x8xf32>
    %182 = arith.addf %179, %181 : vector<8x8x8xf32>
    %cst_79 = arith.constant dense<0xFF800000> : vector<8x8xf32>
    %183 = vector.multi_reduction <maximumf>, %182, %cst_79 [2] : vector<8x8x8xf32> to vector<8x8xf32>
    %184 = vector.shape_cast %183 : vector<8x8xf32> to vector<8x8x1xf32>
    %185 = vector.broadcast %184 : vector<8x8x1xf32> to vector<8x8x8xf32>
    %186 = arith.subf %182, %185 : vector<8x8x8xf32>
    %187 = math.exp %186 : vector<8x8x8xf32>
    %cst_80 = arith.constant dense<0.000000e+00> : vector<8x8xf32>
    %188 = vector.multi_reduction <add>, %187, %cst_80 [2] : vector<8x8x8xf32> to vector<8x8xf32>
    %189 = vector.shape_cast %188 : vector<8x8xf32> to vector<8x8x1xf32>
    %190 = tpu.reciprocal %189 {approx = true} : vector<8x8x1xf32> -> vector<8x8x1xf32>
    %191 = vector.broadcast %190 : vector<8x8x1xf32> to vector<8x8x8xf32>
    %192 = arith.mulf %187, %191 : vector<8x8x8xf32>
    %193 = arith.truncf %173 : vector<8x8x8xf32> to vector<8x8x8xbf16>
    %194 = arith.truncf %192 : vector<8x8x8xf32> to vector<8x8x8xbf16>
    %cst_81 = arith.constant dense<0.000000e+00> : vector<8x8x8xf32>
    %195 = tpu.matmul %193, %194, %cst_81 {dimension_numbers = #tpu.dot_dimension_numbers<[2], [2], [1], [1], [0, 0, 0, 1, 1, 1], [0], [0]>} : vector<8x8x8xbf16>, vector<8x8x8xbf16>, vector<8x8x8xf32> -> vector<8x8x8xf32>
    %196 = vector.shape_cast %195 : vector<8x8x8xf32> to vector<2x32x8xf32>
    %197 = tpu.transpose %196, [0, 2, 1] : vector<2x32x8xf32> -> vector<2x8x32xf32>
    %198 = vector.shape_cast %197 : vector<2x8x32xf32> to vector<16x32xf32>
    %199 = arith.truncf %198 : vector<16x32xf32> to vector<16x32xbf16>
    %c1_82 = arith.constant 1 : index
    %c0_83 = arith.constant 0 : index
    %c0_84 = arith.constant 0 : index
    %200 = vector.load %arg9[%c1_82, %c0_83, %c0_84] : memref<2x32x32xbf16, #tpu.memory_space<vmem>>, vector<1x32x32xbf16>
    %201 = vector.shape_cast %200 : vector<1x32x32xbf16> to vector<32x32xbf16>
    %cst_85 = arith.constant dense<0.000000e+00> : vector<16x32xf32>
    %202 = tpu.matmul %199, %201, %cst_85 {dimension_numbers = #tpu.dot_dimension_numbers<[1], [0], [0], [1], [0, 0, 1, 1], [], []>} : vector<16x32xbf16>, vector<32x32xbf16>, vector<16x32xf32> -> vector<16x32xf32>
    %203 = arith.addf %131, %202 : vector<16x32xf32>
    %c1_86 = arith.constant 1 : index
    %c0_87 = arith.constant 0 : index
    %c0_88 = arith.constant 0 : index
    %204 = vector.load %arg10[%c1_86, %c0_87, %c0_88] : memref<2x1x32xf32, #tpu.memory_space<vmem>>, vector<1x1x32xf32>
    %205 = vector.shape_cast %204 : vector<1x1x32xf32> to vector<1x32xf32>
    %206 = vector.broadcast %205 : vector<1x32xf32> to vector<16x32xf32>
    %207 = arith.addf %203, %206 : vector<16x32xf32>
    %c1_89 = arith.constant 1 : index
    %c0_90 = arith.constant 0 : index
    %c0_91 = arith.constant 0 : index
    %208 = vector.load %arg11[%c1_89, %c0_90, %c0_91] : memref<2x1x32xf32, #tpu.memory_space<vmem>>, vector<1x1x32xf32>
    %209 = vector.shape_cast %208 : vector<1x1x32xf32> to vector<1x32xf32>
    %c1_92 = arith.constant 1 : index
    %c0_93 = arith.constant 0 : index
    %c0_94 = arith.constant 0 : index
    %210 = vector.load %arg12[%c1_92, %c0_93, %c0_94] : memref<2x1x32xf32, #tpu.memory_space<vmem>>, vector<1x1x32xf32>
    %211 = vector.shape_cast %210 : vector<1x1x32xf32> to vector<1x32xf32>
    %cst_95 = arith.constant dense<0.000000e+00> : vector<16xf32>
    %212 = vector.multi_reduction <add>, %207, %cst_95 [1] : vector<16x32xf32> to vector<16xf32>
    %213 = vector.shape_cast %212 : vector<16xf32> to vector<16x1xf32>
    %cst_96 = arith.constant 3.200000e+01 : f32
    %214 = vector.broadcast %cst_96 : f32 to vector<16x1xf32>
    %215 = arith.divf %213, %214 : vector<16x1xf32>
    %216 = vector.broadcast %215 : vector<16x1xf32> to vector<16x32xf32>
    %217 = arith.subf %207, %216 : vector<16x32xf32>
    %218 = arith.mulf %217, %217 : vector<16x32xf32>
    %cst_97 = arith.constant dense<0.000000e+00> : vector<16xf32>
    %219 = vector.multi_reduction <add>, %218, %cst_97 [1] : vector<16x32xf32> to vector<16xf32>
    %220 = vector.shape_cast %219 : vector<16xf32> to vector<16x1xf32>
    %cst_98 = arith.constant 3.200000e+01 : f32
    %221 = vector.broadcast %cst_98 : f32 to vector<16x1xf32>
    %222 = arith.divf %220, %221 : vector<16x1xf32>
    %223 = vector.broadcast %215 : vector<16x1xf32> to vector<16x32xf32>
    %224 = arith.subf %207, %223 : vector<16x32xf32>
    %cst_99 = arith.constant 9.99999974E-6 : f32
    %225 = vector.broadcast %cst_99 : f32 to vector<16x1xf32>
    %226 = arith.addf %222, %225 : vector<16x1xf32>
    %227 = math.rsqrt %226 : vector<16x1xf32>
    %228 = vector.broadcast %227 : vector<16x1xf32> to vector<16x32xf32>
    %229 = arith.mulf %224, %228 : vector<16x32xf32>
    %230 = vector.broadcast %209 : vector<1x32xf32> to vector<16x32xf32>
    %231 = arith.mulf %229, %230 : vector<16x32xf32>
    %232 = vector.broadcast %211 : vector<1x32xf32> to vector<16x32xf32>
    %233 = arith.addf %231, %232 : vector<16x32xf32>
    %234 = arith.truncf %233 : vector<16x32xf32> to vector<16x32xbf16>
    %c1_100 = arith.constant 1 : index
    %c0_101 = arith.constant 0 : index
    %c0_102 = arith.constant 0 : index
    %235 = vector.load %arg13[%c1_100, %c0_101, %c0_102] : memref<2x32x128xbf16, #tpu.memory_space<vmem>>, vector<1x32x128xbf16>
    %236 = vector.shape_cast %235 : vector<1x32x128xbf16> to vector<32x128xbf16>
    %cst_103 = arith.constant dense<0.000000e+00> : vector<16x128xf32>
    %237 = tpu.matmul %234, %236, %cst_103 {dimension_numbers = #tpu.dot_dimension_numbers<[1], [0], [0], [1], [0, 0, 1, 1], [], []>} : vector<16x32xbf16>, vector<32x128xbf16>, vector<16x128xf32> -> vector<16x128xf32>
    %c1_104 = arith.constant 1 : index
    %c0_105 = arith.constant 0 : index
    %c0_106 = arith.constant 0 : index
    %238 = vector.load %arg14[%c1_104, %c0_105, %c0_106] : memref<2x1x128xf32, #tpu.memory_space<vmem>>, vector<1x1x128xf32>
    %239 = vector.shape_cast %238 : vector<1x1x128xf32> to vector<1x128xf32>
    %240 = vector.broadcast %239 : vector<1x128xf32> to vector<16x128xf32>
    %241 = arith.addf %237, %240 : vector<16x128xf32>
    %cst_107 = arith.constant 1.702000e+00 : f32
    %242 = vector.broadcast %cst_107 : f32 to vector<16x128xf32>
    %243 = arith.mulf %242, %241 : vector<16x128xf32>
    %244 = arith.negf %243 : vector<16x128xf32>
    %245 = math.exp %244 : vector<16x128xf32>
    %cst_108 = arith.constant 1.000000e+00 : f32
    %246 = vector.broadcast %cst_108 : f32 to vector<16x128xf32>
    %247 = arith.addf %246, %245 : vector<16x128xf32>
    %248 = arith.divf %246, %247 : vector<16x128xf32>
    %249 = arith.mulf %241, %248 : vector<16x128xf32>
    %250 = arith.truncf %249 : vector<16x128xf32> to vector<16x128xbf16>
    %c1_109 = arith.constant 1 : index
    %c0_110 = arith.constant 0 : index
    %c0_111 = arith.constant 0 : index
    %251 = vector.load %arg15[%c1_109, %c0_110, %c0_111] : memref<2x128x32xbf16, #tpu.memory_space<vmem>>, vector<1x128x32xbf16>
    %252 = vector.shape_cast %251 : vector<1x128x32xbf16> to vector<128x32xbf16>
    %cst_112 = arith.constant dense<0.000000e+00> : vector<16x32xf32>
    %253 = tpu.matmul %250, %252, %cst_112 {dimension_numbers = #tpu.dot_dimension_numbers<[1], [0], [0], [1], [0, 0, 1, 1], [], []>} : vector<16x128xbf16>, vector<128x32xbf16>, vector<16x32xf32> -> vector<16x32xf32>
    %254 = arith.addf %207, %253 : vector<16x32xf32>
    %c1_113 = arith.constant 1 : index
    %c0_114 = arith.constant 0 : index
    %c0_115 = arith.constant 0 : index
    %255 = vector.load %arg16[%c1_113, %c0_114, %c0_115] : memref<2x1x32xf32, #tpu.memory_space<vmem>>, vector<1x1x32xf32>
    %256 = vector.shape_cast %255 : vector<1x1x32xf32> to vector<1x32xf32>
    %257 = vector.broadcast %256 : vector<1x32xf32> to vector<16x32xf32>
    %258 = arith.addf %254, %257 : vector<16x32xf32>
    %c0_116 = arith.constant 0 : index
    %c0_117 = arith.constant 0 : index
    %259 = vector.load %arg21[%c0_116, %c0_117] : memref<16x32xf32, #tpu.memory_space<vmem>>, vector<16x32xf32>
    tpu.vector_store %arg21[%c0_116, %c0_117], %258 {strides = array<i32>} : memref<16x32xf32, #tpu.memory_space<vmem>>, vector<16x32xf32>,
    %c0_i32_118 = arith.constant 0 : i32
    %260 = arith.cmpi eq, %arg0, %c0_i32_118 : i32
    %261 = arith.extui %260 : i1 to i32
    %c0_i32_119 = arith.constant 0 : i32
    %262 = arith.cmpi ne, %261, %c0_i32_119 : i32
    scf.if %262 {
      %c0_120 = arith.constant 0 : index
      %263 = memref.load %arg1[%c0_120] : memref<2xi32, #tpu.memory_space<smem>>
      %264 = arith.index_cast %263 : i32 to index
      %c0_121 = arith.constant 0 : index
      %265 = vector.load %arg21[%264, %c0_121] : memref<16x32xf32, #tpu.memory_space<vmem>>, vector<1x32xf32>
      %c1_122 = arith.constant 1 : index
      %266 = memref.load %arg1[%c1_122] : memref<2xi32, #tpu.memory_space<smem>>
      %267 = arith.index_cast %266 : i32 to index
      %c0_123 = arith.constant 0 : index
      %268 = vector.load %arg21[%267, %c0_123] : memref<16x32xf32, #tpu.memory_space<vmem>>, vector<1x32xf32>
      %269 = tpu.concatenate %265, %268 in 0 : vector<1x32xf32>, vector<1x32xf32> -> vector<2x32xf32>
      %c0_124 = arith.constant 0 : index
      %c0_125 = arith.constant 0 : index
      %270 = vector.load %arg17[%c0_124, %c0_125] : memref<1x32xf32, #tpu.memory_space<vmem>>, vector<1x32xf32>
      %c0_126 = arith.constant 0 : index
      %c0_127 = arith.constant 0 : index
      %271 = vector.load %arg18[%c0_126, %c0_127] : memref<1x32xf32, #tpu.memory_space<vmem>>, vector<1x32xf32>
      %cst_128 = arith.constant dense<0.000000e+00> : vector<2xf32>
      %272 = vector.multi_reduction <add>, %269, %cst_128 [1] : vector<2x32xf32> to vector<2xf32>
      %273 = vector.shape_cast %272 : vector<2xf32> to vector<2x1xf32>
      %cst_129 = arith.constant 3.200000e+01 : f32
      %274 = vector.broadcast %cst_129 : f32 to vector<2x1xf32>
      %275 = arith.divf %273, %274 : vector<2x1xf32>
      %276 = vector.broadcast %275 : vector<2x1xf32> to vector<2x32xf32>
      %277 = arith.subf %269, %276 : vector<2x32xf32>
      %278 = arith.mulf %277, %277 : vector<2x32xf32>
      %cst_130 = arith.constant dense<0.000000e+00> : vector<2xf32>
      %279 = vector.multi_reduction <add>, %278, %cst_130 [1] : vector<2x32xf32> to vector<2xf32>
      %280 = vector.shape_cast %279 : vector<2xf32> to vector<2x1xf32>
      %cst_131 = arith.constant 3.200000e+01 : f32
      %281 = vector.broadcast %cst_131 : f32 to vector<2x1xf32>
      %282 = arith.divf %280, %281 : vector<2x1xf32>
      %283 = vector.broadcast %275 : vector<2x1xf32> to vector<2x32xf32>
      %284 = arith.subf %269, %283 : vector<2x32xf32>
      %cst_132 = arith.constant 9.99999974E-6 : f32
      %285 = vector.broadcast %cst_132 : f32 to vector<2x1xf32>
      %286 = arith.addf %282, %285 : vector<2x1xf32>
      %287 = math.rsqrt %286 : vector<2x1xf32>
      %288 = vector.broadcast %287 : vector<2x1xf32> to vector<2x32xf32>
      %289 = arith.mulf %284, %288 : vector<2x32xf32>
      %290 = vector.broadcast %270 : vector<1x32xf32> to vector<2x32xf32>
      %291 = arith.mulf %289, %290 : vector<2x32xf32>
      %292 = vector.broadcast %271 : vector<1x32xf32> to vector<2x32xf32>
      %293 = arith.addf %291, %292 : vector<2x32xf32>
      %294 = arith.truncf %293 : vector<2x32xf32> to vector<2x32xbf16>
      %c0_133 = arith.constant 0 : index
      %c0_134 = arith.constant 0 : index
      %295 = vector.load %arg19[%c0_133, %c0_134] : memref<32x128xbf16, #tpu.memory_space<vmem>>, vector<32x128xbf16>
      %cst_135 = arith.constant dense<0.000000e+00> : vector<2x128xf32>
      %296 = tpu.matmul %294, %295, %cst_135 {dimension_numbers = #tpu.dot_dimension_numbers<[1], [0], [0], [1], [0, 0, 1, 1], [], []>} : vector<2x32xbf16>, vector<32x128xbf16>, vector<2x128xf32> -> vector<2x128xf32>
      %c0_136 = arith.constant 0 : index
      %c0_137 = arith.constant 0 : index
      %297 = vector.load %arg20[%c0_136, %c0_137] : memref<2x128xf32, #tpu.memory_space<vmem>>, vector<2x128xf32>
      tpu.vector_store %arg20[%c0_136, %c0_137], %296 {strides = array<i32>} : memref<2x128xf32, #tpu.memory_space<vmem>>, vector<2x128xf32>,
    } else {
    }
    return
  }
  func.func @transform_0(%arg0: i32, %arg1: memref<2xi32, #tpu.memory_space<smem>>) -> (i32, i32, i32) {
    %c0_i32 = arith.constant 0 : i32
    %c0_i32_0 = arith.constant 0 : i32
    %c0_i32_1 = arith.constant 0 : i32
    %c0_i32_2 = arith.constant 0 : i32
    return %c0_i32, %c0_i32_0, %c0_i32_1 : i32, i32, i32
  }
  func.func @transform_1(%arg0: i32, %arg1: memref<2xi32, #tpu.memory_space<smem>>) -> (i32, i32) {
    %c0_i32 = arith.constant 0 : i32
    %c0_i32_0 = arith.constant 0 : i32
    %c0_i32_1 = arith.constant 0 : i32
    return %c0_i32, %c0_i32_0 : i32, i32
  }
  func.func @transform_2(%arg0: i32, %arg1: memref<2xi32, #tpu.memory_space<smem>>) -> (i32, i32) {
    %c0_i32 = arith.constant 0 : i32
    %c0_i32_0 = arith.constant 0 : i32
    %c0_i32_1 = arith.constant 0 : i32
    return %c0_i32, %c0_i32_0 : i32, i32
  }
  func.func @transform_3(%arg0: i32, %arg1: memref<2xi32, #tpu.memory_space<smem>>) -> (i32, i32, i32) {
    %c0_i32 = arith.constant 0 : i32
    %c0_i32_0 = arith.constant 0 : i32
    %c0_i32_1 = arith.constant 0 : i32
    return %arg0, %c0_i32, %c0_i32_0 : i32, i32, i32
  }
  func.func @transform_4(%arg0: i32, %arg1: memref<2xi32, #tpu.memory_space<smem>>) -> (i32, i32, i32) {
    %c0_i32 = arith.constant 0 : i32
    %c0_i32_0 = arith.constant 0 : i32
    %c0_i32_1 = arith.constant 0 : i32
    return %arg0, %c0_i32, %c0_i32_0 : i32, i32, i32
  }
  func.func @transform_5(%arg0: i32, %arg1: memref<2xi32, #tpu.memory_space<smem>>) -> (i32, i32, i32) {
    %c0_i32 = arith.constant 0 : i32
    %c0_i32_0 = arith.constant 0 : i32
    %c0_i32_1 = arith.constant 0 : i32
    return %arg0, %c0_i32, %c0_i32_0 : i32, i32, i32
  }
  func.func @transform_6(%arg0: i32, %arg1: memref<2xi32, #tpu.memory_space<smem>>) -> (i32, i32, i32) {
    %c0_i32 = arith.constant 0 : i32
    %c0_i32_0 = arith.constant 0 : i32
    %c0_i32_1 = arith.constant 0 : i32
    return %arg0, %c0_i32, %c0_i32_0 : i32, i32, i32
  }
  func.func @transform_7(%arg0: i32, %arg1: memref<2xi32, #tpu.memory_space<smem>>) -> (i32, i32, i32) {
    %c0_i32 = arith.constant 0 : i32
    %c0_i32_0 = arith.constant 0 : i32
    %c0_i32_1 = arith.constant 0 : i32
    return %arg0, %c0_i32, %c0_i32_0 : i32, i32, i32
  }
  func.func @transform_8(%arg0: i32, %arg1: memref<2xi32, #tpu.memory_space<smem>>) -> (i32, i32, i32) {
    %c0_i32 = arith.constant 0 : i32
    %c0_i32_0 = arith.constant 0 : i32
    %c0_i32_1 = arith.constant 0 : i32
    return %arg0, %c0_i32, %c0_i32_0 : i32, i32, i32
  }
  func.func @transform_9(%arg0: i32, %arg1: memref<2xi32, #tpu.memory_space<smem>>) -> (i32, i32, i32) {
    %c0_i32 = arith.constant 0 : i32
    %c0_i32_0 = arith.constant 0 : i32
    %c0_i32_1 = arith.constant 0 : i32
    return %arg0, %c0_i32, %c0_i32_0 : i32, i32, i32
  }
  func.func @transform_10(%arg0: i32, %arg1: memref<2xi32, #tpu.memory_space<smem>>) -> (i32, i32, i32) {
    %c0_i32 = arith.constant 0 : i32
    %c0_i32_0 = arith.constant 0 : i32
    %c0_i32_1 = arith.constant 0 : i32
    return %arg0, %c0_i32, %c0_i32_0 : i32, i32, i32
  }
  func.func @transform_11(%arg0: i32, %arg1: memref<2xi32, #tpu.memory_space<smem>>) -> (i32, i32, i32) {
    %c0_i32 = arith.constant 0 : i32
    %c0_i32_0 = arith.constant 0 : i32
    %c0_i32_1 = arith.constant 0 : i32
    return %arg0, %c0_i32, %c0_i32_0 : i32, i32, i32
  }
  func.func @transform_12(%arg0: i32, %arg1: memref<2xi32, #tpu.memory_space<smem>>) -> (i32, i32, i32) {
    %c0_i32 = arith.constant 0 : i32
    %c0_i32_0 = arith.constant 0 : i32
    %c0_i32_1 = arith.constant 0 : i32
    return %arg0, %c0_i32, %c0_i32_0 : i32, i32, i32
  }
  func.func @transform_13(%arg0: i32, %arg1: memref<2xi32, #tpu.memory_space<smem>>) -> (i32, i32, i32) {
    %c0_i32 = arith.constant 0 : i32
    %c0_i32_0 = arith.constant 0 : i32
    %c0_i32_1 = arith.constant 0 : i32
    return %arg0, %c0_i32, %c0_i32_0 : i32, i32, i32
  }
  func.func @transform_14(%arg0: i32, %arg1: memref<2xi32, #tpu.memory_space<smem>>) -> (i32, i32, i32) {
    %c0_i32 = arith.constant 0 : i32
    %c0_i32_0 = arith.constant 0 : i32
    %c0_i32_1 = arith.constant 0 : i32
    return %arg0, %c0_i32, %c0_i32_0 : i32, i32, i32
  }
  func.func @transform_15(%arg0: i32, %arg1: memref<2xi32, #tpu.memory_space<smem>>) -> (i32, i32) {
    %c0_i32 = arith.constant 0 : i32
    %c0_i32_0 = arith.constant 0 : i32
    %c0_i32_1 = arith.constant 0 : i32
    return %c0_i32, %c0_i32_0 : i32, i32
  }
  func.func @transform_16(%arg0: i32, %arg1: memref<2xi32, #tpu.memory_space<smem>>) -> (i32, i32) {
    %c0_i32 = arith.constant 0 : i32
    %c0_i32_0 = arith.constant 0 : i32
    %c0_i32_1 = arith.constant 0 : i32
    return %c0_i32, %c0_i32_0 : i32, i32
  }
  func.func @transform_17(%arg0: i32, %arg1: memref<2xi32, #tpu.memory_space<smem>>) -> (i32, i32) {
    %c0_i32 = arith.constant 0 : i32
    %c0_i32_0 = arith.constant 0 : i32
    %c0_i32_1 = arith.constant 0 : i32
    return %c0_i32, %c0_i32_0 : i32, i32
  }
  func.func @transform_18(%arg0: i32, %arg1: memref<2xi32, #tpu.memory_space<smem>>) -> (i32, i32) {
    %c0_i32 = arith.constant 0 : i32
    %c0_i32_0 = arith.constant 0 : i32
    %c0_i32_1 = arith.constant 0 : i32
    return %c0_i32, %c0_i32_0 : i32, i32
  }
}

module attributes {stable_mosaic.version = 11 : i64} {
  func.func @text_encoder_kernel(%arg0: i32, %arg1: memref<2xi32, #tpu.memory_space<smem>>, %arg2: memref<2x8x32xf32, #tpu.memory_space<vmem>>, %arg3: memref<8x32xf32, #tpu.memory_space<vmem>>, %arg4: memref<8x8xf32, #tpu.memory_space<vmem>>, %arg5: memref<2x1x32xf32, #tpu.memory_space<vmem>>, %arg6: memref<2x1x32xf32, #tpu.memory_space<vmem>>, %arg7: memref<2x32x96xbf16, #tpu.memory_space<vmem>>, %arg8: memref<2x1x96xf32, #tpu.memory_space<vmem>>, %arg9: memref<2x32x32xbf16, #tpu.memory_space<vmem>>, %arg10: memref<2x1x32xf32, #tpu.memory_space<vmem>>, %arg11: memref<2x1x32xf32, #tpu.memory_space<vmem>>, %arg12: memref<2x1x32xf32, #tpu.memory_space<vmem>>, %arg13: memref<2x32x128xbf16, #tpu.memory_space<vmem>>, %arg14: memref<2x1x128xf32, #tpu.memory_space<vmem>>, %arg15: memref<2x128x32xbf16, #tpu.memory_space<vmem>>, %arg16: memref<2x1x32xf32, #tpu.memory_space<vmem>>, %arg17: memref<1x32xf32, #tpu.memory_space<vmem>>, %arg18: memref<1x32xf32, #tpu.memory_space<vmem>>, %arg19: memref<32x128xbf16, #tpu.memory_space<vmem>>, %arg20: memref<2x128xf32, #tpu.memory_space<vmem>>, %arg21: memref<16x32xf32, #tpu.memory_space<vmem>>) attributes {dimension_semantics = [#tpu.dimension_semantics<arbitrary>], iteration_bounds = array<i64: 1>, scalar_prefetch = 1 : i64, scratch_operands = 1 : i64, tpu.core_type = #tpu.core_type<tc>, window_params = [{pipeline_mode = #tpu.pipeline_mode<synchronous>, transform_indices = @transform_0, window_bounds = array<i64: 2, 8, 32>}, {pipeline_mode = #tpu.pipeline_mode<synchronous>, transform_indices = @transform_1, window_bounds = array<i64: 8, 32>}, {pipeline_mode = #tpu.pipeline_mode<synchronous>, transform_indices = @transform_2, window_bounds = array<i64: 8, 8>}, {transform_indices = @transform_3, window_bounds = array<i64: 2, 1, 32>}, {transform_indices = @transform_4, window_bounds = array<i64: 2, 1, 32>}, {transform_indices = @transform_5, window_bounds = array<i64: 2, 32, 96>}, {transform_indices = @transform_6, window_bounds = array<i64: 2, 1, 96>}, {transform_indices = @transform_7, window_bounds = array<i64: 2, 32, 32>}, {transform_indices = @transform_8, window_bounds = array<i64: 2, 1, 32>}, {transform_indices = @transform_9, window_bounds = array<i64: 2, 1, 32>}, {transform_indices = @transform_10, window_bounds = array<i64: 2, 1, 32>}, {transform_indices = @transform_11, window_bounds = array<i64: 2, 32, 128>}, {transform_indices = @transform_12, window_bounds = array<i64: 2, 1, 128>}, {transform_indices = @transform_13, window_bounds = array<i64: 2, 128, 32>}, {transform_indices = @transform_14, window_bounds = array<i64: 2, 1, 32>}, {pipeline_mode = #tpu.pipeline_mode<synchronous>, transform_indices = @transform_15, window_bounds = array<i64: 1, 32>}, {pipeline_mode = #tpu.pipeline_mode<synchronous>, transform_indices = @transform_16, window_bounds = array<i64: 1, 32>}, {pipeline_mode = #tpu.pipeline_mode<synchronous>, transform_indices = @transform_17, window_bounds = array<i64: 32, 128>}, {pipeline_mode = #tpu.pipeline_mode<synchronous>, transform_indices = @transform_18, window_bounds = array<i64: 2, 128>}]} {
    %c0_i32 = arith.constant 0 : i32
    %0 = arith.cmpi eq, %arg0, %c0_i32 : i32
    %1 = arith.extui %0 : i1 to i32
    %c0_i32_0 = arith.constant 0 : i32
    %2 = arith.cmpi ne, %1, %c0_i32_0 : i32
    scf.if %2 {
      %c0_150 = arith.constant 0 : index
      %c0_151 = arith.constant 0 : index
      %c0_152 = arith.constant 0 : index
      %395 = vector.load %arg2[%c0_150, %c0_151, %c0_152] : memref<2x8x32xf32, #tpu.memory_space<vmem>>, vector<2x8x32xf32>
      %c0_153 = arith.constant 0 : index
      %c0_154 = arith.constant 0 : index
      %396 = vector.load %arg3[%c0_153, %c0_154] : memref<8x32xf32, #tpu.memory_space<vmem>>, vector<8x32xf32>
      %397 = vector.shape_cast %396 : vector<8x32xf32> to vector<1x8x32xf32>
      %398 = vector.broadcast %397 : vector<1x8x32xf32> to vector<2x8x32xf32>
      %399 = arith.addf %395, %398 : vector<2x8x32xf32>
      %400 = vector.shape_cast %399 : vector<2x8x32xf32> to vector<16x32xf32>
      %c0_155 = arith.constant 0 : index
      %c0_156 = arith.constant 0 : index
      %401 = vector.load %arg21[%c0_155, %c0_156] : memref<16x32xf32, #tpu.memory_space<vmem>>, vector<16x32xf32>
      tpu.vector_store %arg21[%c0_155, %c0_156], %400 {strides = array<i32>} : memref<16x32xf32, #tpu.memory_space<vmem>>, vector<16x32xf32>,
    } else {
    }
    %c0 = arith.constant 0 : index
    %c0_1 = arith.constant 0 : index
    %3 = vector.load %arg4[%c0, %c0_1] : memref<8x8xf32, #tpu.memory_space<vmem>>, vector<8x8xf32>
    %c0_2 = arith.constant 0 : index
    %c0_3 = arith.constant 0 : index
    %4 = vector.load %arg21[%c0_2, %c0_3] : memref<16x32xf32, #tpu.memory_space<vmem>>, vector<16x32xf32>
    %c0_4 = arith.constant 0 : index
    %c0_5 = arith.constant 0 : index
    %c0_6 = arith.constant 0 : index
    %5 = vector.load %arg5[%c0_4, %c0_5, %c0_6] : memref<2x1x32xf32, #tpu.memory_space<vmem>>, vector<1x1x32xf32>
    %6 = vector.shape_cast %5 : vector<1x1x32xf32> to vector<1x32xf32>
    %c0_7 = arith.constant 0 : index
    %c0_8 = arith.constant 0 : index
    %c0_9 = arith.constant 0 : index
    %7 = vector.load %arg6[%c0_7, %c0_8, %c0_9] : memref<2x1x32xf32, #tpu.memory_space<vmem>>, vector<1x1x32xf32>
    %8 = vector.shape_cast %7 : vector<1x1x32xf32> to vector<1x32xf32>
    %cst = arith.constant dense<0.000000e+00> : vector<16xf32>
    %9 = vector.multi_reduction <add>, %4, %cst [1] : vector<16x32xf32> to vector<16xf32>
    %10 = vector.shape_cast %9 : vector<16xf32> to vector<16x1xf32>
    %cst_10 = arith.constant 3.200000e+01 : f32
    %11 = vector.broadcast %cst_10 : f32 to vector<16x1xf32>
    %12 = arith.divf %10, %11 : vector<16x1xf32>
    %13 = vector.broadcast %12 : vector<16x1xf32> to vector<16x32xf32>
    %14 = arith.subf %4, %13 : vector<16x32xf32>
    %15 = arith.mulf %14, %14 : vector<16x32xf32>
    %cst_11 = arith.constant dense<0.000000e+00> : vector<16xf32>
    %16 = vector.multi_reduction <add>, %15, %cst_11 [1] : vector<16x32xf32> to vector<16xf32>
    %17 = vector.shape_cast %16 : vector<16xf32> to vector<16x1xf32>
    %cst_12 = arith.constant 3.200000e+01 : f32
    %18 = vector.broadcast %cst_12 : f32 to vector<16x1xf32>
    %19 = arith.divf %17, %18 : vector<16x1xf32>
    %20 = vector.broadcast %12 : vector<16x1xf32> to vector<16x32xf32>
    %21 = arith.subf %4, %20 : vector<16x32xf32>
    %cst_13 = arith.constant 9.99999974E-6 : f32
    %22 = vector.broadcast %cst_13 : f32 to vector<16x1xf32>
    %23 = arith.addf %19, %22 : vector<16x1xf32>
    %24 = math.rsqrt %23 : vector<16x1xf32>
    %25 = vector.broadcast %24 : vector<16x1xf32> to vector<16x32xf32>
    %26 = arith.mulf %21, %25 : vector<16x32xf32>
    %27 = vector.broadcast %6 : vector<1x32xf32> to vector<16x32xf32>
    %28 = arith.mulf %26, %27 : vector<16x32xf32>
    %29 = vector.broadcast %8 : vector<1x32xf32> to vector<16x32xf32>
    %30 = arith.addf %28, %29 : vector<16x32xf32>
    %31 = arith.truncf %30 : vector<16x32xf32> to vector<16x32xbf16>
    %c0_14 = arith.constant 0 : index
    %c0_15 = arith.constant 0 : index
    %c0_16 = arith.constant 0 : index
    %32 = vector.load %arg7[%c0_14, %c0_15, %c0_16] : memref<2x32x96xbf16, #tpu.memory_space<vmem>>, vector<1x32x96xbf16>
    %33 = vector.shape_cast %32 : vector<1x32x96xbf16> to vector<32x96xbf16>
    %cst_17 = arith.constant dense<0.000000e+00> : vector<16x96xf32>
    %34 = tpu.matmul %31, %33, %cst_17 {dimension_numbers = #tpu.dot_dimension_numbers<[1], [0], [0], [1], [0, 0, 1, 1], [], []>} : vector<16x32xbf16>, vector<32x96xbf16>, vector<16x96xf32> -> vector<16x96xf32>
    %c0_18 = arith.constant 0 : index
    %c0_19 = arith.constant 0 : index
    %c0_20 = arith.constant 0 : index
    %35 = vector.load %arg8[%c0_18, %c0_19, %c0_20] : memref<2x1x96xf32, #tpu.memory_space<vmem>>, vector<1x1x96xf32>
    %36 = vector.shape_cast %35 : vector<1x1x96xf32> to vector<1x96xf32>
    %37 = vector.broadcast %36 : vector<1x96xf32> to vector<16x96xf32>
    %38 = arith.addf %34, %37 : vector<16x96xf32>
    %39 = vector.shape_cast %38 : vector<16x96xf32> to vector<2x8x96xf32>
    %40 = vector.extract_strided_slice %39 {offsets = [0, 0, 0], sizes = [2, 8, 8], strides = [1, 1, 1]} : vector<2x8x96xf32> to vector<2x8x8xf32>
    %41 = vector.extract_strided_slice %39 {offsets = [0, 0, 32], sizes = [2, 8, 8], strides = [1, 1, 1]} : vector<2x8x96xf32> to vector<2x8x8xf32>
    %42 = vector.extract_strided_slice %39 {offsets = [0, 0, 64], sizes = [2, 8, 8], strides = [1, 1, 1]} : vector<2x8x96xf32> to vector<2x8x8xf32>
    %43 = arith.truncf %40 : vector<2x8x8xf32> to vector<2x8x8xbf16>
    %44 = arith.truncf %41 : vector<2x8x8xf32> to vector<2x8x8xbf16>
    %cst_21 = arith.constant dense<0.000000e+00> : vector<2x8x8xf32>
    %45 = tpu.matmul %43, %44, %cst_21 {dimension_numbers = #tpu.dot_dimension_numbers<[2], [2], [1], [1], [0, 0, 0, 1, 1, 1], [0], [0]>} : vector<2x8x8xbf16>, vector<2x8x8xbf16>, vector<2x8x8xf32> -> vector<2x8x8xf32>
    %cst_22 = arith.constant 0.353553385 : f32
    %46 = vector.broadcast %cst_22 : f32 to vector<2x8x8xf32>
    %47 = arith.mulf %45, %46 : vector<2x8x8xf32>
    %48 = vector.shape_cast %3 : vector<8x8xf32> to vector<1x8x8xf32>
    %49 = vector.broadcast %48 : vector<1x8x8xf32> to vector<2x8x8xf32>
    %50 = arith.addf %47, %49 : vector<2x8x8xf32>
    %cst_23 = arith.constant dense<0xFF800000> : vector<2x8xf32>
    %51 = vector.multi_reduction <maximumf>, %50, %cst_23 [2] : vector<2x8x8xf32> to vector<2x8xf32>
    %52 = vector.shape_cast %51 : vector<2x8xf32> to vector<2x8x1xf32>
    %53 = vector.broadcast %52 : vector<2x8x1xf32> to vector<2x8x8xf32>
    %54 = arith.subf %50, %53 : vector<2x8x8xf32>
    %55 = math.exp %54 : vector<2x8x8xf32>
    %cst_24 = arith.constant dense<0.000000e+00> : vector<2x8xf32>
    %56 = vector.multi_reduction <add>, %55, %cst_24 [2] : vector<2x8x8xf32> to vector<2x8xf32>
    %57 = vector.shape_cast %56 : vector<2x8xf32> to vector<2x8x1xf32>
    %58 = tpu.reciprocal %57 {approx = true} : vector<2x8x1xf32> -> vector<2x8x1xf32>
    %59 = vector.broadcast %58 : vector<2x8x1xf32> to vector<2x8x8xf32>
    %60 = arith.mulf %55, %59 : vector<2x8x8xf32>
    %61 = arith.truncf %60 : vector<2x8x8xf32> to vector<2x8x8xbf16>
    %62 = arith.truncf %42 : vector<2x8x8xf32> to vector<2x8x8xbf16>
    %cst_25 = arith.constant dense<0.000000e+00> : vector<2x8x8xf32>
    %63 = tpu.matmul %61, %62, %cst_25 {dimension_numbers = #tpu.dot_dimension_numbers<[2], [1], [1], [2], [0, 0, 0, 1, 1, 2], [0], [0]>} : vector<2x8x8xbf16>, vector<2x8x8xbf16>, vector<2x8x8xf32> -> vector<2x8x8xf32>
    %64 = vector.extract_strided_slice %39 {offsets = [0, 0, 8], sizes = [2, 8, 8], strides = [1, 1, 1]} : vector<2x8x96xf32> to vector<2x8x8xf32>
    %65 = vector.extract_strided_slice %39 {offsets = [0, 0, 40], sizes = [2, 8, 8], strides = [1, 1, 1]} : vector<2x8x96xf32> to vector<2x8x8xf32>
    %66 = vector.extract_strided_slice %39 {offsets = [0, 0, 72], sizes = [2, 8, 8], strides = [1, 1, 1]} : vector<2x8x96xf32> to vector<2x8x8xf32>
    %67 = arith.truncf %64 : vector<2x8x8xf32> to vector<2x8x8xbf16>
    %68 = arith.truncf %65 : vector<2x8x8xf32> to vector<2x8x8xbf16>
    %cst_26 = arith.constant dense<0.000000e+00> : vector<2x8x8xf32>
    %69 = tpu.matmul %67, %68, %cst_26 {dimension_numbers = #tpu.dot_dimension_numbers<[2], [2], [1], [1], [0, 0, 0, 1, 1, 1], [0], [0]>} : vector<2x8x8xbf16>, vector<2x8x8xbf16>, vector<2x8x8xf32> -> vector<2x8x8xf32>
    %cst_27 = arith.constant 0.353553385 : f32
    %70 = vector.broadcast %cst_27 : f32 to vector<2x8x8xf32>
    %71 = arith.mulf %69, %70 : vector<2x8x8xf32>
    %72 = vector.shape_cast %3 : vector<8x8xf32> to vector<1x8x8xf32>
    %73 = vector.broadcast %72 : vector<1x8x8xf32> to vector<2x8x8xf32>
    %74 = arith.addf %71, %73 : vector<2x8x8xf32>
    %cst_28 = arith.constant dense<0xFF800000> : vector<2x8xf32>
    %75 = vector.multi_reduction <maximumf>, %74, %cst_28 [2] : vector<2x8x8xf32> to vector<2x8xf32>
    %76 = vector.shape_cast %75 : vector<2x8xf32> to vector<2x8x1xf32>
    %77 = vector.broadcast %76 : vector<2x8x1xf32> to vector<2x8x8xf32>
    %78 = arith.subf %74, %77 : vector<2x8x8xf32>
    %79 = math.exp %78 : vector<2x8x8xf32>
    %cst_29 = arith.constant dense<0.000000e+00> : vector<2x8xf32>
    %80 = vector.multi_reduction <add>, %79, %cst_29 [2] : vector<2x8x8xf32> to vector<2x8xf32>
    %81 = vector.shape_cast %80 : vector<2x8xf32> to vector<2x8x1xf32>
    %82 = tpu.reciprocal %81 {approx = true} : vector<2x8x1xf32> -> vector<2x8x1xf32>
    %83 = vector.broadcast %82 : vector<2x8x1xf32> to vector<2x8x8xf32>
    %84 = arith.mulf %79, %83 : vector<2x8x8xf32>
    %85 = arith.truncf %84 : vector<2x8x8xf32> to vector<2x8x8xbf16>
    %86 = arith.truncf %66 : vector<2x8x8xf32> to vector<2x8x8xbf16>
    %cst_30 = arith.constant dense<0.000000e+00> : vector<2x8x8xf32>
    %87 = tpu.matmul %85, %86, %cst_30 {dimension_numbers = #tpu.dot_dimension_numbers<[2], [1], [1], [2], [0, 0, 0, 1, 1, 2], [0], [0]>} : vector<2x8x8xbf16>, vector<2x8x8xbf16>, vector<2x8x8xf32> -> vector<2x8x8xf32>
    %88 = vector.extract_strided_slice %39 {offsets = [0, 0, 16], sizes = [2, 8, 8], strides = [1, 1, 1]} : vector<2x8x96xf32> to vector<2x8x8xf32>
    %89 = vector.extract_strided_slice %39 {offsets = [0, 0, 48], sizes = [2, 8, 8], strides = [1, 1, 1]} : vector<2x8x96xf32> to vector<2x8x8xf32>
    %90 = vector.extract_strided_slice %39 {offsets = [0, 0, 80], sizes = [2, 8, 8], strides = [1, 1, 1]} : vector<2x8x96xf32> to vector<2x8x8xf32>
    %91 = arith.truncf %88 : vector<2x8x8xf32> to vector<2x8x8xbf16>
    %92 = arith.truncf %89 : vector<2x8x8xf32> to vector<2x8x8xbf16>
    %cst_31 = arith.constant dense<0.000000e+00> : vector<2x8x8xf32>
    %93 = tpu.matmul %91, %92, %cst_31 {dimension_numbers = #tpu.dot_dimension_numbers<[2], [2], [1], [1], [0, 0, 0, 1, 1, 1], [0], [0]>} : vector<2x8x8xbf16>, vector<2x8x8xbf16>, vector<2x8x8xf32> -> vector<2x8x8xf32>
    %cst_32 = arith.constant 0.353553385 : f32
    %94 = vector.broadcast %cst_32 : f32 to vector<2x8x8xf32>
    %95 = arith.mulf %93, %94 : vector<2x8x8xf32>
    %96 = vector.shape_cast %3 : vector<8x8xf32> to vector<1x8x8xf32>
    %97 = vector.broadcast %96 : vector<1x8x8xf32> to vector<2x8x8xf32>
    %98 = arith.addf %95, %97 : vector<2x8x8xf32>
    %cst_33 = arith.constant dense<0xFF800000> : vector<2x8xf32>
    %99 = vector.multi_reduction <maximumf>, %98, %cst_33 [2] : vector<2x8x8xf32> to vector<2x8xf32>
    %100 = vector.shape_cast %99 : vector<2x8xf32> to vector<2x8x1xf32>
    %101 = vector.broadcast %100 : vector<2x8x1xf32> to vector<2x8x8xf32>
    %102 = arith.subf %98, %101 : vector<2x8x8xf32>
    %103 = math.exp %102 : vector<2x8x8xf32>
    %cst_34 = arith.constant dense<0.000000e+00> : vector<2x8xf32>
    %104 = vector.multi_reduction <add>, %103, %cst_34 [2] : vector<2x8x8xf32> to vector<2x8xf32>
    %105 = vector.shape_cast %104 : vector<2x8xf32> to vector<2x8x1xf32>
    %106 = tpu.reciprocal %105 {approx = true} : vector<2x8x1xf32> -> vector<2x8x1xf32>
    %107 = vector.broadcast %106 : vector<2x8x1xf32> to vector<2x8x8xf32>
    %108 = arith.mulf %103, %107 : vector<2x8x8xf32>
    %109 = arith.truncf %108 : vector<2x8x8xf32> to vector<2x8x8xbf16>
    %110 = arith.truncf %90 : vector<2x8x8xf32> to vector<2x8x8xbf16>
    %cst_35 = arith.constant dense<0.000000e+00> : vector<2x8x8xf32>
    %111 = tpu.matmul %109, %110, %cst_35 {dimension_numbers = #tpu.dot_dimension_numbers<[2], [1], [1], [2], [0, 0, 0, 1, 1, 2], [0], [0]>} : vector<2x8x8xbf16>, vector<2x8x8xbf16>, vector<2x8x8xf32> -> vector<2x8x8xf32>
    %112 = vector.extract_strided_slice %39 {offsets = [0, 0, 24], sizes = [2, 8, 8], strides = [1, 1, 1]} : vector<2x8x96xf32> to vector<2x8x8xf32>
    %113 = vector.extract_strided_slice %39 {offsets = [0, 0, 56], sizes = [2, 8, 8], strides = [1, 1, 1]} : vector<2x8x96xf32> to vector<2x8x8xf32>
    %114 = vector.extract_strided_slice %39 {offsets = [0, 0, 88], sizes = [2, 8, 8], strides = [1, 1, 1]} : vector<2x8x96xf32> to vector<2x8x8xf32>
    %115 = arith.truncf %112 : vector<2x8x8xf32> to vector<2x8x8xbf16>
    %116 = arith.truncf %113 : vector<2x8x8xf32> to vector<2x8x8xbf16>
    %cst_36 = arith.constant dense<0.000000e+00> : vector<2x8x8xf32>
    %117 = tpu.matmul %115, %116, %cst_36 {dimension_numbers = #tpu.dot_dimension_numbers<[2], [2], [1], [1], [0, 0, 0, 1, 1, 1], [0], [0]>} : vector<2x8x8xbf16>, vector<2x8x8xbf16>, vector<2x8x8xf32> -> vector<2x8x8xf32>
    %cst_37 = arith.constant 0.353553385 : f32
    %118 = vector.broadcast %cst_37 : f32 to vector<2x8x8xf32>
    %119 = arith.mulf %117, %118 : vector<2x8x8xf32>
    %120 = vector.shape_cast %3 : vector<8x8xf32> to vector<1x8x8xf32>
    %121 = vector.broadcast %120 : vector<1x8x8xf32> to vector<2x8x8xf32>
    %122 = arith.addf %119, %121 : vector<2x8x8xf32>
    %cst_38 = arith.constant dense<0xFF800000> : vector<2x8xf32>
    %123 = vector.multi_reduction <maximumf>, %122, %cst_38 [2] : vector<2x8x8xf32> to vector<2x8xf32>
    %124 = vector.shape_cast %123 : vector<2x8xf32> to vector<2x8x1xf32>
    %125 = vector.broadcast %124 : vector<2x8x1xf32> to vector<2x8x8xf32>
    %126 = arith.subf %122, %125 : vector<2x8x8xf32>
    %127 = math.exp %126 : vector<2x8x8xf32>
    %cst_39 = arith.constant dense<0.000000e+00> : vector<2x8xf32>
    %128 = vector.multi_reduction <add>, %127, %cst_39 [2] : vector<2x8x8xf32> to vector<2x8xf32>
    %129 = vector.shape_cast %128 : vector<2x8xf32> to vector<2x8x1xf32>
    %130 = tpu.reciprocal %129 {approx = true} : vector<2x8x1xf32> -> vector<2x8x1xf32>
    %131 = vector.broadcast %130 : vector<2x8x1xf32> to vector<2x8x8xf32>
    %132 = arith.mulf %127, %131 : vector<2x8x8xf32>
    %133 = arith.truncf %132 : vector<2x8x8xf32> to vector<2x8x8xbf16>
    %134 = arith.truncf %114 : vector<2x8x8xf32> to vector<2x8x8xbf16>
    %cst_40 = arith.constant dense<0.000000e+00> : vector<2x8x8xf32>
    %135 = tpu.matmul %133, %134, %cst_40 {dimension_numbers = #tpu.dot_dimension_numbers<[2], [1], [1], [2], [0, 0, 0, 1, 1, 2], [0], [0]>} : vector<2x8x8xbf16>, vector<2x8x8xbf16>, vector<2x8x8xf32> -> vector<2x8x8xf32>
    %136 = tpu.concatenate %63, %87, %111, %135 in 2 : vector<2x8x8xf32>, vector<2x8x8xf32>, vector<2x8x8xf32>, vector<2x8x8xf32> -> vector<2x8x32xf32>
    %137 = vector.shape_cast %136 : vector<2x8x32xf32> to vector<16x32xf32>
    %138 = arith.truncf %137 : vector<16x32xf32> to vector<16x32xbf16>
    %c0_41 = arith.constant 0 : index
    %c0_42 = arith.constant 0 : index
    %c0_43 = arith.constant 0 : index
    %139 = vector.load %arg9[%c0_41, %c0_42, %c0_43] : memref<2x32x32xbf16, #tpu.memory_space<vmem>>, vector<1x32x32xbf16>
    %140 = vector.shape_cast %139 : vector<1x32x32xbf16> to vector<32x32xbf16>
    %cst_44 = arith.constant dense<0.000000e+00> : vector<16x32xf32>
    %141 = tpu.matmul %138, %140, %cst_44 {dimension_numbers = #tpu.dot_dimension_numbers<[1], [0], [0], [1], [0, 0, 1, 1], [], []>} : vector<16x32xbf16>, vector<32x32xbf16>, vector<16x32xf32> -> vector<16x32xf32>
    %142 = arith.addf %4, %141 : vector<16x32xf32>
    %c0_45 = arith.constant 0 : index
    %c0_46 = arith.constant 0 : index
    %c0_47 = arith.constant 0 : index
    %143 = vector.load %arg10[%c0_45, %c0_46, %c0_47] : memref<2x1x32xf32, #tpu.memory_space<vmem>>, vector<1x1x32xf32>
    %144 = vector.shape_cast %143 : vector<1x1x32xf32> to vector<1x32xf32>
    %145 = vector.broadcast %144 : vector<1x32xf32> to vector<16x32xf32>
    %146 = arith.addf %142, %145 : vector<16x32xf32>
    %c0_48 = arith.constant 0 : index
    %c0_49 = arith.constant 0 : index
    %c0_50 = arith.constant 0 : index
    %147 = vector.load %arg11[%c0_48, %c0_49, %c0_50] : memref<2x1x32xf32, #tpu.memory_space<vmem>>, vector<1x1x32xf32>
    %148 = vector.shape_cast %147 : vector<1x1x32xf32> to vector<1x32xf32>
    %c0_51 = arith.constant 0 : index
    %c0_52 = arith.constant 0 : index
    %c0_53 = arith.constant 0 : index
    %149 = vector.load %arg12[%c0_51, %c0_52, %c0_53] : memref<2x1x32xf32, #tpu.memory_space<vmem>>, vector<1x1x32xf32>
    %150 = vector.shape_cast %149 : vector<1x1x32xf32> to vector<1x32xf32>
    %cst_54 = arith.constant dense<0.000000e+00> : vector<16xf32>
    %151 = vector.multi_reduction <add>, %146, %cst_54 [1] : vector<16x32xf32> to vector<16xf32>
    %152 = vector.shape_cast %151 : vector<16xf32> to vector<16x1xf32>
    %cst_55 = arith.constant 3.200000e+01 : f32
    %153 = vector.broadcast %cst_55 : f32 to vector<16x1xf32>
    %154 = arith.divf %152, %153 : vector<16x1xf32>
    %155 = vector.broadcast %154 : vector<16x1xf32> to vector<16x32xf32>
    %156 = arith.subf %146, %155 : vector<16x32xf32>
    %157 = arith.mulf %156, %156 : vector<16x32xf32>
    %cst_56 = arith.constant dense<0.000000e+00> : vector<16xf32>
    %158 = vector.multi_reduction <add>, %157, %cst_56 [1] : vector<16x32xf32> to vector<16xf32>
    %159 = vector.shape_cast %158 : vector<16xf32> to vector<16x1xf32>
    %cst_57 = arith.constant 3.200000e+01 : f32
    %160 = vector.broadcast %cst_57 : f32 to vector<16x1xf32>
    %161 = arith.divf %159, %160 : vector<16x1xf32>
    %162 = vector.broadcast %154 : vector<16x1xf32> to vector<16x32xf32>
    %163 = arith.subf %146, %162 : vector<16x32xf32>
    %cst_58 = arith.constant 9.99999974E-6 : f32
    %164 = vector.broadcast %cst_58 : f32 to vector<16x1xf32>
    %165 = arith.addf %161, %164 : vector<16x1xf32>
    %166 = math.rsqrt %165 : vector<16x1xf32>
    %167 = vector.broadcast %166 : vector<16x1xf32> to vector<16x32xf32>
    %168 = arith.mulf %163, %167 : vector<16x32xf32>
    %169 = vector.broadcast %148 : vector<1x32xf32> to vector<16x32xf32>
    %170 = arith.mulf %168, %169 : vector<16x32xf32>
    %171 = vector.broadcast %150 : vector<1x32xf32> to vector<16x32xf32>
    %172 = arith.addf %170, %171 : vector<16x32xf32>
    %173 = arith.truncf %172 : vector<16x32xf32> to vector<16x32xbf16>
    %c0_59 = arith.constant 0 : index
    %c0_60 = arith.constant 0 : index
    %c0_61 = arith.constant 0 : index
    %174 = vector.load %arg13[%c0_59, %c0_60, %c0_61] : memref<2x32x128xbf16, #tpu.memory_space<vmem>>, vector<1x32x128xbf16>
    %175 = vector.shape_cast %174 : vector<1x32x128xbf16> to vector<32x128xbf16>
    %cst_62 = arith.constant dense<0.000000e+00> : vector<16x128xf32>
    %176 = tpu.matmul %173, %175, %cst_62 {dimension_numbers = #tpu.dot_dimension_numbers<[1], [0], [0], [1], [0, 0, 1, 1], [], []>} : vector<16x32xbf16>, vector<32x128xbf16>, vector<16x128xf32> -> vector<16x128xf32>
    %c0_63 = arith.constant 0 : index
    %c0_64 = arith.constant 0 : index
    %c0_65 = arith.constant 0 : index
    %177 = vector.load %arg14[%c0_63, %c0_64, %c0_65] : memref<2x1x128xf32, #tpu.memory_space<vmem>>, vector<1x1x128xf32>
    %178 = vector.shape_cast %177 : vector<1x1x128xf32> to vector<1x128xf32>
    %179 = vector.broadcast %178 : vector<1x128xf32> to vector<16x128xf32>
    %180 = arith.addf %176, %179 : vector<16x128xf32>
    %cst_66 = arith.constant 1.702000e+00 : f32
    %181 = vector.broadcast %cst_66 : f32 to vector<16x128xf32>
    %182 = arith.mulf %181, %180 : vector<16x128xf32>
    %183 = arith.negf %182 : vector<16x128xf32>
    %184 = math.exp %183 : vector<16x128xf32>
    %cst_67 = arith.constant 1.000000e+00 : f32
    %185 = vector.broadcast %cst_67 : f32 to vector<16x128xf32>
    %186 = arith.addf %185, %184 : vector<16x128xf32>
    %187 = arith.divf %185, %186 : vector<16x128xf32>
    %188 = arith.mulf %180, %187 : vector<16x128xf32>
    %189 = arith.truncf %188 : vector<16x128xf32> to vector<16x128xbf16>
    %c0_68 = arith.constant 0 : index
    %c0_69 = arith.constant 0 : index
    %c0_70 = arith.constant 0 : index
    %190 = vector.load %arg15[%c0_68, %c0_69, %c0_70] : memref<2x128x32xbf16, #tpu.memory_space<vmem>>, vector<1x128x32xbf16>
    %191 = vector.shape_cast %190 : vector<1x128x32xbf16> to vector<128x32xbf16>
    %cst_71 = arith.constant dense<0.000000e+00> : vector<16x32xf32>
    %192 = tpu.matmul %189, %191, %cst_71 {dimension_numbers = #tpu.dot_dimension_numbers<[1], [0], [0], [1], [0, 0, 1, 1], [], []>} : vector<16x128xbf16>, vector<128x32xbf16>, vector<16x32xf32> -> vector<16x32xf32>
    %193 = arith.addf %146, %192 : vector<16x32xf32>
    %c0_72 = arith.constant 0 : index
    %c0_73 = arith.constant 0 : index
    %c0_74 = arith.constant 0 : index
    %194 = vector.load %arg16[%c0_72, %c0_73, %c0_74] : memref<2x1x32xf32, #tpu.memory_space<vmem>>, vector<1x1x32xf32>
    %195 = vector.shape_cast %194 : vector<1x1x32xf32> to vector<1x32xf32>
    %196 = vector.broadcast %195 : vector<1x32xf32> to vector<16x32xf32>
    %197 = arith.addf %193, %196 : vector<16x32xf32>
    %c1 = arith.constant 1 : index
    %c0_75 = arith.constant 0 : index
    %c0_76 = arith.constant 0 : index
    %198 = vector.load %arg5[%c1, %c0_75, %c0_76] : memref<2x1x32xf32, #tpu.memory_space<vmem>>, vector<1x1x32xf32>
    %199 = vector.shape_cast %198 : vector<1x1x32xf32> to vector<1x32xf32>
    %c1_77 = arith.constant 1 : index
    %c0_78 = arith.constant 0 : index
    %c0_79 = arith.constant 0 : index
    %200 = vector.load %arg6[%c1_77, %c0_78, %c0_79] : memref<2x1x32xf32, #tpu.memory_space<vmem>>, vector<1x1x32xf32>
    %201 = vector.shape_cast %200 : vector<1x1x32xf32> to vector<1x32xf32>
    %cst_80 = arith.constant dense<0.000000e+00> : vector<16xf32>
    %202 = vector.multi_reduction <add>, %197, %cst_80 [1] : vector<16x32xf32> to vector<16xf32>
    %203 = vector.shape_cast %202 : vector<16xf32> to vector<16x1xf32>
    %cst_81 = arith.constant 3.200000e+01 : f32
    %204 = vector.broadcast %cst_81 : f32 to vector<16x1xf32>
    %205 = arith.divf %203, %204 : vector<16x1xf32>
    %206 = vector.broadcast %205 : vector<16x1xf32> to vector<16x32xf32>
    %207 = arith.subf %197, %206 : vector<16x32xf32>
    %208 = arith.mulf %207, %207 : vector<16x32xf32>
    %cst_82 = arith.constant dense<0.000000e+00> : vector<16xf32>
    %209 = vector.multi_reduction <add>, %208, %cst_82 [1] : vector<16x32xf32> to vector<16xf32>
    %210 = vector.shape_cast %209 : vector<16xf32> to vector<16x1xf32>
    %cst_83 = arith.constant 3.200000e+01 : f32
    %211 = vector.broadcast %cst_83 : f32 to vector<16x1xf32>
    %212 = arith.divf %210, %211 : vector<16x1xf32>
    %213 = vector.broadcast %205 : vector<16x1xf32> to vector<16x32xf32>
    %214 = arith.subf %197, %213 : vector<16x32xf32>
    %cst_84 = arith.constant 9.99999974E-6 : f32
    %215 = vector.broadcast %cst_84 : f32 to vector<16x1xf32>
    %216 = arith.addf %212, %215 : vector<16x1xf32>
    %217 = math.rsqrt %216 : vector<16x1xf32>
    %218 = vector.broadcast %217 : vector<16x1xf32> to vector<16x32xf32>
    %219 = arith.mulf %214, %218 : vector<16x32xf32>
    %220 = vector.broadcast %199 : vector<1x32xf32> to vector<16x32xf32>
    %221 = arith.mulf %219, %220 : vector<16x32xf32>
    %222 = vector.broadcast %201 : vector<1x32xf32> to vector<16x32xf32>
    %223 = arith.addf %221, %222 : vector<16x32xf32>
    %224 = arith.truncf %223 : vector<16x32xf32> to vector<16x32xbf16>
    %c1_85 = arith.constant 1 : index
    %c0_86 = arith.constant 0 : index
    %c0_87 = arith.constant 0 : index
    %225 = vector.load %arg7[%c1_85, %c0_86, %c0_87] : memref<2x32x96xbf16, #tpu.memory_space<vmem>>, vector<1x32x96xbf16>
    %226 = vector.shape_cast %225 : vector<1x32x96xbf16> to vector<32x96xbf16>
    %cst_88 = arith.constant dense<0.000000e+00> : vector<16x96xf32>
    %227 = tpu.matmul %224, %226, %cst_88 {dimension_numbers = #tpu.dot_dimension_numbers<[1], [0], [0], [1], [0, 0, 1, 1], [], []>} : vector<16x32xbf16>, vector<32x96xbf16>, vector<16x96xf32> -> vector<16x96xf32>
    %c1_89 = arith.constant 1 : index
    %c0_90 = arith.constant 0 : index
    %c0_91 = arith.constant 0 : index
    %228 = vector.load %arg8[%c1_89, %c0_90, %c0_91] : memref<2x1x96xf32, #tpu.memory_space<vmem>>, vector<1x1x96xf32>
    %229 = vector.shape_cast %228 : vector<1x1x96xf32> to vector<1x96xf32>
    %230 = vector.broadcast %229 : vector<1x96xf32> to vector<16x96xf32>
    %231 = arith.addf %227, %230 : vector<16x96xf32>
    %232 = vector.shape_cast %231 : vector<16x96xf32> to vector<2x8x96xf32>
    %233 = vector.extract_strided_slice %232 {offsets = [0, 0, 0], sizes = [2, 8, 8], strides = [1, 1, 1]} : vector<2x8x96xf32> to vector<2x8x8xf32>
    %234 = vector.extract_strided_slice %232 {offsets = [0, 0, 32], sizes = [2, 8, 8], strides = [1, 1, 1]} : vector<2x8x96xf32> to vector<2x8x8xf32>
    %235 = vector.extract_strided_slice %232 {offsets = [0, 0, 64], sizes = [2, 8, 8], strides = [1, 1, 1]} : vector<2x8x96xf32> to vector<2x8x8xf32>
    %236 = arith.truncf %233 : vector<2x8x8xf32> to vector<2x8x8xbf16>
    %237 = arith.truncf %234 : vector<2x8x8xf32> to vector<2x8x8xbf16>
    %cst_92 = arith.constant dense<0.000000e+00> : vector<2x8x8xf32>
    %238 = tpu.matmul %236, %237, %cst_92 {dimension_numbers = #tpu.dot_dimension_numbers<[2], [2], [1], [1], [0, 0, 0, 1, 1, 1], [0], [0]>} : vector<2x8x8xbf16>, vector<2x8x8xbf16>, vector<2x8x8xf32> -> vector<2x8x8xf32>
    %cst_93 = arith.constant 0.353553385 : f32
    %239 = vector.broadcast %cst_93 : f32 to vector<2x8x8xf32>
    %240 = arith.mulf %238, %239 : vector<2x8x8xf32>
    %241 = vector.shape_cast %3 : vector<8x8xf32> to vector<1x8x8xf32>
    %242 = vector.broadcast %241 : vector<1x8x8xf32> to vector<2x8x8xf32>
    %243 = arith.addf %240, %242 : vector<2x8x8xf32>
    %cst_94 = arith.constant dense<0xFF800000> : vector<2x8xf32>
    %244 = vector.multi_reduction <maximumf>, %243, %cst_94 [2] : vector<2x8x8xf32> to vector<2x8xf32>
    %245 = vector.shape_cast %244 : vector<2x8xf32> to vector<2x8x1xf32>
    %246 = vector.broadcast %245 : vector<2x8x1xf32> to vector<2x8x8xf32>
    %247 = arith.subf %243, %246 : vector<2x8x8xf32>
    %248 = math.exp %247 : vector<2x8x8xf32>
    %cst_95 = arith.constant dense<0.000000e+00> : vector<2x8xf32>
    %249 = vector.multi_reduction <add>, %248, %cst_95 [2] : vector<2x8x8xf32> to vector<2x8xf32>
    %250 = vector.shape_cast %249 : vector<2x8xf32> to vector<2x8x1xf32>
    %251 = tpu.reciprocal %250 {approx = true} : vector<2x8x1xf32> -> vector<2x8x1xf32>
    %252 = vector.broadcast %251 : vector<2x8x1xf32> to vector<2x8x8xf32>
    %253 = arith.mulf %248, %252 : vector<2x8x8xf32>
    %254 = arith.truncf %253 : vector<2x8x8xf32> to vector<2x8x8xbf16>
    %255 = arith.truncf %235 : vector<2x8x8xf32> to vector<2x8x8xbf16>
    %cst_96 = arith.constant dense<0.000000e+00> : vector<2x8x8xf32>
    %256 = tpu.matmul %254, %255, %cst_96 {dimension_numbers = #tpu.dot_dimension_numbers<[2], [1], [1], [2], [0, 0, 0, 1, 1, 2], [0], [0]>} : vector<2x8x8xbf16>, vector<2x8x8xbf16>, vector<2x8x8xf32> -> vector<2x8x8xf32>
    %257 = vector.extract_strided_slice %232 {offsets = [0, 0, 8], sizes = [2, 8, 8], strides = [1, 1, 1]} : vector<2x8x96xf32> to vector<2x8x8xf32>
    %258 = vector.extract_strided_slice %232 {offsets = [0, 0, 40], sizes = [2, 8, 8], strides = [1, 1, 1]} : vector<2x8x96xf32> to vector<2x8x8xf32>
    %259 = vector.extract_strided_slice %232 {offsets = [0, 0, 72], sizes = [2, 8, 8], strides = [1, 1, 1]} : vector<2x8x96xf32> to vector<2x8x8xf32>
    %260 = arith.truncf %257 : vector<2x8x8xf32> to vector<2x8x8xbf16>
    %261 = arith.truncf %258 : vector<2x8x8xf32> to vector<2x8x8xbf16>
    %cst_97 = arith.constant dense<0.000000e+00> : vector<2x8x8xf32>
    %262 = tpu.matmul %260, %261, %cst_97 {dimension_numbers = #tpu.dot_dimension_numbers<[2], [2], [1], [1], [0, 0, 0, 1, 1, 1], [0], [0]>} : vector<2x8x8xbf16>, vector<2x8x8xbf16>, vector<2x8x8xf32> -> vector<2x8x8xf32>
    %cst_98 = arith.constant 0.353553385 : f32
    %263 = vector.broadcast %cst_98 : f32 to vector<2x8x8xf32>
    %264 = arith.mulf %262, %263 : vector<2x8x8xf32>
    %265 = vector.shape_cast %3 : vector<8x8xf32> to vector<1x8x8xf32>
    %266 = vector.broadcast %265 : vector<1x8x8xf32> to vector<2x8x8xf32>
    %267 = arith.addf %264, %266 : vector<2x8x8xf32>
    %cst_99 = arith.constant dense<0xFF800000> : vector<2x8xf32>
    %268 = vector.multi_reduction <maximumf>, %267, %cst_99 [2] : vector<2x8x8xf32> to vector<2x8xf32>
    %269 = vector.shape_cast %268 : vector<2x8xf32> to vector<2x8x1xf32>
    %270 = vector.broadcast %269 : vector<2x8x1xf32> to vector<2x8x8xf32>
    %271 = arith.subf %267, %270 : vector<2x8x8xf32>
    %272 = math.exp %271 : vector<2x8x8xf32>
    %cst_100 = arith.constant dense<0.000000e+00> : vector<2x8xf32>
    %273 = vector.multi_reduction <add>, %272, %cst_100 [2] : vector<2x8x8xf32> to vector<2x8xf32>
    %274 = vector.shape_cast %273 : vector<2x8xf32> to vector<2x8x1xf32>
    %275 = tpu.reciprocal %274 {approx = true} : vector<2x8x1xf32> -> vector<2x8x1xf32>
    %276 = vector.broadcast %275 : vector<2x8x1xf32> to vector<2x8x8xf32>
    %277 = arith.mulf %272, %276 : vector<2x8x8xf32>
    %278 = arith.truncf %277 : vector<2x8x8xf32> to vector<2x8x8xbf16>
    %279 = arith.truncf %259 : vector<2x8x8xf32> to vector<2x8x8xbf16>
    %cst_101 = arith.constant dense<0.000000e+00> : vector<2x8x8xf32>
    %280 = tpu.matmul %278, %279, %cst_101 {dimension_numbers = #tpu.dot_dimension_numbers<[2], [1], [1], [2], [0, 0, 0, 1, 1, 2], [0], [0]>} : vector<2x8x8xbf16>, vector<2x8x8xbf16>, vector<2x8x8xf32> -> vector<2x8x8xf32>
    %281 = vector.extract_strided_slice %232 {offsets = [0, 0, 16], sizes = [2, 8, 8], strides = [1, 1, 1]} : vector<2x8x96xf32> to vector<2x8x8xf32>
    %282 = vector.extract_strided_slice %232 {offsets = [0, 0, 48], sizes = [2, 8, 8], strides = [1, 1, 1]} : vector<2x8x96xf32> to vector<2x8x8xf32>
    %283 = vector.extract_strided_slice %232 {offsets = [0, 0, 80], sizes = [2, 8, 8], strides = [1, 1, 1]} : vector<2x8x96xf32> to vector<2x8x8xf32>
    %284 = arith.truncf %281 : vector<2x8x8xf32> to vector<2x8x8xbf16>
    %285 = arith.truncf %282 : vector<2x8x8xf32> to vector<2x8x8xbf16>
    %cst_102 = arith.constant dense<0.000000e+00> : vector<2x8x8xf32>
    %286 = tpu.matmul %284, %285, %cst_102 {dimension_numbers = #tpu.dot_dimension_numbers<[2], [2], [1], [1], [0, 0, 0, 1, 1, 1], [0], [0]>} : vector<2x8x8xbf16>, vector<2x8x8xbf16>, vector<2x8x8xf32> -> vector<2x8x8xf32>
    %cst_103 = arith.constant 0.353553385 : f32
    %287 = vector.broadcast %cst_103 : f32 to vector<2x8x8xf32>
    %288 = arith.mulf %286, %287 : vector<2x8x8xf32>
    %289 = vector.shape_cast %3 : vector<8x8xf32> to vector<1x8x8xf32>
    %290 = vector.broadcast %289 : vector<1x8x8xf32> to vector<2x8x8xf32>
    %291 = arith.addf %288, %290 : vector<2x8x8xf32>
    %cst_104 = arith.constant dense<0xFF800000> : vector<2x8xf32>
    %292 = vector.multi_reduction <maximumf>, %291, %cst_104 [2] : vector<2x8x8xf32> to vector<2x8xf32>
    %293 = vector.shape_cast %292 : vector<2x8xf32> to vector<2x8x1xf32>
    %294 = vector.broadcast %293 : vector<2x8x1xf32> to vector<2x8x8xf32>
    %295 = arith.subf %291, %294 : vector<2x8x8xf32>
    %296 = math.exp %295 : vector<2x8x8xf32>
    %cst_105 = arith.constant dense<0.000000e+00> : vector<2x8xf32>
    %297 = vector.multi_reduction <add>, %296, %cst_105 [2] : vector<2x8x8xf32> to vector<2x8xf32>
    %298 = vector.shape_cast %297 : vector<2x8xf32> to vector<2x8x1xf32>
    %299 = tpu.reciprocal %298 {approx = true} : vector<2x8x1xf32> -> vector<2x8x1xf32>
    %300 = vector.broadcast %299 : vector<2x8x1xf32> to vector<2x8x8xf32>
    %301 = arith.mulf %296, %300 : vector<2x8x8xf32>
    %302 = arith.truncf %301 : vector<2x8x8xf32> to vector<2x8x8xbf16>
    %303 = arith.truncf %283 : vector<2x8x8xf32> to vector<2x8x8xbf16>
    %cst_106 = arith.constant dense<0.000000e+00> : vector<2x8x8xf32>
    %304 = tpu.matmul %302, %303, %cst_106 {dimension_numbers = #tpu.dot_dimension_numbers<[2], [1], [1], [2], [0, 0, 0, 1, 1, 2], [0], [0]>} : vector<2x8x8xbf16>, vector<2x8x8xbf16>, vector<2x8x8xf32> -> vector<2x8x8xf32>
    %305 = vector.extract_strided_slice %232 {offsets = [0, 0, 24], sizes = [2, 8, 8], strides = [1, 1, 1]} : vector<2x8x96xf32> to vector<2x8x8xf32>
    %306 = vector.extract_strided_slice %232 {offsets = [0, 0, 56], sizes = [2, 8, 8], strides = [1, 1, 1]} : vector<2x8x96xf32> to vector<2x8x8xf32>
    %307 = vector.extract_strided_slice %232 {offsets = [0, 0, 88], sizes = [2, 8, 8], strides = [1, 1, 1]} : vector<2x8x96xf32> to vector<2x8x8xf32>
    %308 = arith.truncf %305 : vector<2x8x8xf32> to vector<2x8x8xbf16>
    %309 = arith.truncf %306 : vector<2x8x8xf32> to vector<2x8x8xbf16>
    %cst_107 = arith.constant dense<0.000000e+00> : vector<2x8x8xf32>
    %310 = tpu.matmul %308, %309, %cst_107 {dimension_numbers = #tpu.dot_dimension_numbers<[2], [2], [1], [1], [0, 0, 0, 1, 1, 1], [0], [0]>} : vector<2x8x8xbf16>, vector<2x8x8xbf16>, vector<2x8x8xf32> -> vector<2x8x8xf32>
    %cst_108 = arith.constant 0.353553385 : f32
    %311 = vector.broadcast %cst_108 : f32 to vector<2x8x8xf32>
    %312 = arith.mulf %310, %311 : vector<2x8x8xf32>
    %313 = vector.shape_cast %3 : vector<8x8xf32> to vector<1x8x8xf32>
    %314 = vector.broadcast %313 : vector<1x8x8xf32> to vector<2x8x8xf32>
    %315 = arith.addf %312, %314 : vector<2x8x8xf32>
    %cst_109 = arith.constant dense<0xFF800000> : vector<2x8xf32>
    %316 = vector.multi_reduction <maximumf>, %315, %cst_109 [2] : vector<2x8x8xf32> to vector<2x8xf32>
    %317 = vector.shape_cast %316 : vector<2x8xf32> to vector<2x8x1xf32>
    %318 = vector.broadcast %317 : vector<2x8x1xf32> to vector<2x8x8xf32>
    %319 = arith.subf %315, %318 : vector<2x8x8xf32>
    %320 = math.exp %319 : vector<2x8x8xf32>
    %cst_110 = arith.constant dense<0.000000e+00> : vector<2x8xf32>
    %321 = vector.multi_reduction <add>, %320, %cst_110 [2] : vector<2x8x8xf32> to vector<2x8xf32>
    %322 = vector.shape_cast %321 : vector<2x8xf32> to vector<2x8x1xf32>
    %323 = tpu.reciprocal %322 {approx = true} : vector<2x8x1xf32> -> vector<2x8x1xf32>
    %324 = vector.broadcast %323 : vector<2x8x1xf32> to vector<2x8x8xf32>
    %325 = arith.mulf %320, %324 : vector<2x8x8xf32>
    %326 = arith.truncf %325 : vector<2x8x8xf32> to vector<2x8x8xbf16>
    %327 = arith.truncf %307 : vector<2x8x8xf32> to vector<2x8x8xbf16>
    %cst_111 = arith.constant dense<0.000000e+00> : vector<2x8x8xf32>
    %328 = tpu.matmul %326, %327, %cst_111 {dimension_numbers = #tpu.dot_dimension_numbers<[2], [1], [1], [2], [0, 0, 0, 1, 1, 2], [0], [0]>} : vector<2x8x8xbf16>, vector<2x8x8xbf16>, vector<2x8x8xf32> -> vector<2x8x8xf32>
    %329 = tpu.concatenate %256, %280, %304, %328 in 2 : vector<2x8x8xf32>, vector<2x8x8xf32>, vector<2x8x8xf32>, vector<2x8x8xf32> -> vector<2x8x32xf32>
    %330 = vector.shape_cast %329 : vector<2x8x32xf32> to vector<16x32xf32>
    %331 = arith.truncf %330 : vector<16x32xf32> to vector<16x32xbf16>
    %c1_112 = arith.constant 1 : index
    %c0_113 = arith.constant 0 : index
    %c0_114 = arith.constant 0 : index
    %332 = vector.load %arg9[%c1_112, %c0_113, %c0_114] : memref<2x32x32xbf16, #tpu.memory_space<vmem>>, vector<1x32x32xbf16>
    %333 = vector.shape_cast %332 : vector<1x32x32xbf16> to vector<32x32xbf16>
    %cst_115 = arith.constant dense<0.000000e+00> : vector<16x32xf32>
    %334 = tpu.matmul %331, %333, %cst_115 {dimension_numbers = #tpu.dot_dimension_numbers<[1], [0], [0], [1], [0, 0, 1, 1], [], []>} : vector<16x32xbf16>, vector<32x32xbf16>, vector<16x32xf32> -> vector<16x32xf32>
    %335 = arith.addf %197, %334 : vector<16x32xf32>
    %c1_116 = arith.constant 1 : index
    %c0_117 = arith.constant 0 : index
    %c0_118 = arith.constant 0 : index
    %336 = vector.load %arg10[%c1_116, %c0_117, %c0_118] : memref<2x1x32xf32, #tpu.memory_space<vmem>>, vector<1x1x32xf32>
    %337 = vector.shape_cast %336 : vector<1x1x32xf32> to vector<1x32xf32>
    %338 = vector.broadcast %337 : vector<1x32xf32> to vector<16x32xf32>
    %339 = arith.addf %335, %338 : vector<16x32xf32>
    %c1_119 = arith.constant 1 : index
    %c0_120 = arith.constant 0 : index
    %c0_121 = arith.constant 0 : index
    %340 = vector.load %arg11[%c1_119, %c0_120, %c0_121] : memref<2x1x32xf32, #tpu.memory_space<vmem>>, vector<1x1x32xf32>
    %341 = vector.shape_cast %340 : vector<1x1x32xf32> to vector<1x32xf32>
    %c1_122 = arith.constant 1 : index
    %c0_123 = arith.constant 0 : index
    %c0_124 = arith.constant 0 : index
    %342 = vector.load %arg12[%c1_122, %c0_123, %c0_124] : memref<2x1x32xf32, #tpu.memory_space<vmem>>, vector<1x1x32xf32>
    %343 = vector.shape_cast %342 : vector<1x1x32xf32> to vector<1x32xf32>
    %cst_125 = arith.constant dense<0.000000e+00> : vector<16xf32>
    %344 = vector.multi_reduction <add>, %339, %cst_125 [1] : vector<16x32xf32> to vector<16xf32>
    %345 = vector.shape_cast %344 : vector<16xf32> to vector<16x1xf32>
    %cst_126 = arith.constant 3.200000e+01 : f32
    %346 = vector.broadcast %cst_126 : f32 to vector<16x1xf32>
    %347 = arith.divf %345, %346 : vector<16x1xf32>
    %348 = vector.broadcast %347 : vector<16x1xf32> to vector<16x32xf32>
    %349 = arith.subf %339, %348 : vector<16x32xf32>
    %350 = arith.mulf %349, %349 : vector<16x32xf32>
    %cst_127 = arith.constant dense<0.000000e+00> : vector<16xf32>
    %351 = vector.multi_reduction <add>, %350, %cst_127 [1] : vector<16x32xf32> to vector<16xf32>
    %352 = vector.shape_cast %351 : vector<16xf32> to vector<16x1xf32>
    %cst_128 = arith.constant 3.200000e+01 : f32
    %353 = vector.broadcast %cst_128 : f32 to vector<16x1xf32>
    %354 = arith.divf %352, %353 : vector<16x1xf32>
    %355 = vector.broadcast %347 : vector<16x1xf32> to vector<16x32xf32>
    %356 = arith.subf %339, %355 : vector<16x32xf32>
    %cst_129 = arith.constant 9.99999974E-6 : f32
    %357 = vector.broadcast %cst_129 : f32 to vector<16x1xf32>
    %358 = arith.addf %354, %357 : vector<16x1xf32>
    %359 = math.rsqrt %358 : vector<16x1xf32>
    %360 = vector.broadcast %359 : vector<16x1xf32> to vector<16x32xf32>
    %361 = arith.mulf %356, %360 : vector<16x32xf32>
    %362 = vector.broadcast %341 : vector<1x32xf32> to vector<16x32xf32>
    %363 = arith.mulf %361, %362 : vector<16x32xf32>
    %364 = vector.broadcast %343 : vector<1x32xf32> to vector<16x32xf32>
    %365 = arith.addf %363, %364 : vector<16x32xf32>
    %366 = arith.truncf %365 : vector<16x32xf32> to vector<16x32xbf16>
    %c1_130 = arith.constant 1 : index
    %c0_131 = arith.constant 0 : index
    %c0_132 = arith.constant 0 : index
    %367 = vector.load %arg13[%c1_130, %c0_131, %c0_132] : memref<2x32x128xbf16, #tpu.memory_space<vmem>>, vector<1x32x128xbf16>
    %368 = vector.shape_cast %367 : vector<1x32x128xbf16> to vector<32x128xbf16>
    %cst_133 = arith.constant dense<0.000000e+00> : vector<16x128xf32>
    %369 = tpu.matmul %366, %368, %cst_133 {dimension_numbers = #tpu.dot_dimension_numbers<[1], [0], [0], [1], [0, 0, 1, 1], [], []>} : vector<16x32xbf16>, vector<32x128xbf16>, vector<16x128xf32> -> vector<16x128xf32>
    %c1_134 = arith.constant 1 : index
    %c0_135 = arith.constant 0 : index
    %c0_136 = arith.constant 0 : index
    %370 = vector.load %arg14[%c1_134, %c0_135, %c0_136] : memref<2x1x128xf32, #tpu.memory_space<vmem>>, vector<1x1x128xf32>
    %371 = vector.shape_cast %370 : vector<1x1x128xf32> to vector<1x128xf32>
    %372 = vector.broadcast %371 : vector<1x128xf32> to vector<16x128xf32>
    %373 = arith.addf %369, %372 : vector<16x128xf32>
    %cst_137 = arith.constant 1.702000e+00 : f32
    %374 = vector.broadcast %cst_137 : f32 to vector<16x128xf32>
    %375 = arith.mulf %374, %373 : vector<16x128xf32>
    %376 = arith.negf %375 : vector<16x128xf32>
    %377 = math.exp %376 : vector<16x128xf32>
    %cst_138 = arith.constant 1.000000e+00 : f32
    %378 = vector.broadcast %cst_138 : f32 to vector<16x128xf32>
    %379 = arith.addf %378, %377 : vector<16x128xf32>
    %380 = arith.divf %378, %379 : vector<16x128xf32>
    %381 = arith.mulf %373, %380 : vector<16x128xf32>
    %382 = arith.truncf %381 : vector<16x128xf32> to vector<16x128xbf16>
    %c1_139 = arith.constant 1 : index
    %c0_140 = arith.constant 0 : index
    %c0_141 = arith.constant 0 : index
    %383 = vector.load %arg15[%c1_139, %c0_140, %c0_141] : memref<2x128x32xbf16, #tpu.memory_space<vmem>>, vector<1x128x32xbf16>
    %384 = vector.shape_cast %383 : vector<1x128x32xbf16> to vector<128x32xbf16>
    %cst_142 = arith.constant dense<0.000000e+00> : vector<16x32xf32>
    %385 = tpu.matmul %382, %384, %cst_142 {dimension_numbers = #tpu.dot_dimension_numbers<[1], [0], [0], [1], [0, 0, 1, 1], [], []>} : vector<16x128xbf16>, vector<128x32xbf16>, vector<16x32xf32> -> vector<16x32xf32>
    %386 = arith.addf %339, %385 : vector<16x32xf32>
    %c1_143 = arith.constant 1 : index
    %c0_144 = arith.constant 0 : index
    %c0_145 = arith.constant 0 : index
    %387 = vector.load %arg16[%c1_143, %c0_144, %c0_145] : memref<2x1x32xf32, #tpu.memory_space<vmem>>, vector<1x1x32xf32>
    %388 = vector.shape_cast %387 : vector<1x1x32xf32> to vector<1x32xf32>
    %389 = vector.broadcast %388 : vector<1x32xf32> to vector<16x32xf32>
    %390 = arith.addf %386, %389 : vector<16x32xf32>
    %c0_146 = arith.constant 0 : index
    %c0_147 = arith.constant 0 : index
    %391 = vector.load %arg21[%c0_146, %c0_147] : memref<16x32xf32, #tpu.memory_space<vmem>>, vector<16x32xf32>
    tpu.vector_store %arg21[%c0_146, %c0_147], %390 {strides = array<i32>} : memref<16x32xf32, #tpu.memory_space<vmem>>, vector<16x32xf32>,
    %c0_i32_148 = arith.constant 0 : i32
    %392 = arith.cmpi eq, %arg0, %c0_i32_148 : i32
    %393 = arith.extui %392 : i1 to i32
    %c0_i32_149 = arith.constant 0 : i32
    %394 = arith.cmpi ne, %393, %c0_i32_149 : i32
    scf.if %394 {
      %c0_150 = arith.constant 0 : index
      %395 = memref.load %arg1[%c0_150] : memref<2xi32, #tpu.memory_space<smem>>
      %396 = arith.index_cast %395 : i32 to index
      %c0_151 = arith.constant 0 : index
      %397 = vector.load %arg21[%396, %c0_151] : memref<16x32xf32, #tpu.memory_space<vmem>>, vector<1x32xf32>
      %c1_152 = arith.constant 1 : index
      %398 = memref.load %arg1[%c1_152] : memref<2xi32, #tpu.memory_space<smem>>
      %399 = arith.index_cast %398 : i32 to index
      %c0_153 = arith.constant 0 : index
      %400 = vector.load %arg21[%399, %c0_153] : memref<16x32xf32, #tpu.memory_space<vmem>>, vector<1x32xf32>
      %401 = tpu.concatenate %397, %400 in 0 : vector<1x32xf32>, vector<1x32xf32> -> vector<2x32xf32>
      %c0_154 = arith.constant 0 : index
      %c0_155 = arith.constant 0 : index
      %402 = vector.load %arg17[%c0_154, %c0_155] : memref<1x32xf32, #tpu.memory_space<vmem>>, vector<1x32xf32>
      %c0_156 = arith.constant 0 : index
      %c0_157 = arith.constant 0 : index
      %403 = vector.load %arg18[%c0_156, %c0_157] : memref<1x32xf32, #tpu.memory_space<vmem>>, vector<1x32xf32>
      %cst_158 = arith.constant dense<0.000000e+00> : vector<2xf32>
      %404 = vector.multi_reduction <add>, %401, %cst_158 [1] : vector<2x32xf32> to vector<2xf32>
      %405 = vector.shape_cast %404 : vector<2xf32> to vector<2x1xf32>
      %cst_159 = arith.constant 3.200000e+01 : f32
      %406 = vector.broadcast %cst_159 : f32 to vector<2x1xf32>
      %407 = arith.divf %405, %406 : vector<2x1xf32>
      %408 = vector.broadcast %407 : vector<2x1xf32> to vector<2x32xf32>
      %409 = arith.subf %401, %408 : vector<2x32xf32>
      %410 = arith.mulf %409, %409 : vector<2x32xf32>
      %cst_160 = arith.constant dense<0.000000e+00> : vector<2xf32>
      %411 = vector.multi_reduction <add>, %410, %cst_160 [1] : vector<2x32xf32> to vector<2xf32>
      %412 = vector.shape_cast %411 : vector<2xf32> to vector<2x1xf32>
      %cst_161 = arith.constant 3.200000e+01 : f32
      %413 = vector.broadcast %cst_161 : f32 to vector<2x1xf32>
      %414 = arith.divf %412, %413 : vector<2x1xf32>
      %415 = vector.broadcast %407 : vector<2x1xf32> to vector<2x32xf32>
      %416 = arith.subf %401, %415 : vector<2x32xf32>
      %cst_162 = arith.constant 9.99999974E-6 : f32
      %417 = vector.broadcast %cst_162 : f32 to vector<2x1xf32>
      %418 = arith.addf %414, %417 : vector<2x1xf32>
      %419 = math.rsqrt %418 : vector<2x1xf32>
      %420 = vector.broadcast %419 : vector<2x1xf32> to vector<2x32xf32>
      %421 = arith.mulf %416, %420 : vector<2x32xf32>
      %422 = vector.broadcast %402 : vector<1x32xf32> to vector<2x32xf32>
      %423 = arith.mulf %421, %422 : vector<2x32xf32>
      %424 = vector.broadcast %403 : vector<1x32xf32> to vector<2x32xf32>
      %425 = arith.addf %423, %424 : vector<2x32xf32>
      %426 = arith.truncf %425 : vector<2x32xf32> to vector<2x32xbf16>
      %c0_163 = arith.constant 0 : index
      %c0_164 = arith.constant 0 : index
      %427 = vector.load %arg19[%c0_163, %c0_164] : memref<32x128xbf16, #tpu.memory_space<vmem>>, vector<32x128xbf16>
      %cst_165 = arith.constant dense<0.000000e+00> : vector<2x128xf32>
      %428 = tpu.matmul %426, %427, %cst_165 {dimension_numbers = #tpu.dot_dimension_numbers<[1], [0], [0], [1], [0, 0, 1, 1], [], []>} : vector<2x32xbf16>, vector<32x128xbf16>, vector<2x128xf32> -> vector<2x128xf32>
      %c0_166 = arith.constant 0 : index
      %c0_167 = arith.constant 0 : index
      %429 = vector.load %arg20[%c0_166, %c0_167] : memref<2x128xf32, #tpu.memory_space<vmem>>, vector<2x128xf32>
      tpu.vector_store %arg20[%c0_166, %c0_167], %428 {strides = array<i32>} : memref<2x128xf32, #tpu.memory_space<vmem>>, vector<2x128xf32>,
    } else {
    }
    return
  }
  func.func @transform_0(%arg0: i32, %arg1: memref<2xi32, #tpu.memory_space<smem>>) -> (i32, i32, i32) {
    %c0_i32 = arith.constant 0 : i32
    %c0_i32_0 = arith.constant 0 : i32
    %c0_i32_1 = arith.constant 0 : i32
    %c0_i32_2 = arith.constant 0 : i32
    return %c0_i32, %c0_i32_0, %c0_i32_1 : i32, i32, i32
  }
  func.func @transform_1(%arg0: i32, %arg1: memref<2xi32, #tpu.memory_space<smem>>) -> (i32, i32) {
    %c0_i32 = arith.constant 0 : i32
    %c0_i32_0 = arith.constant 0 : i32
    %c0_i32_1 = arith.constant 0 : i32
    return %c0_i32, %c0_i32_0 : i32, i32
  }
  func.func @transform_2(%arg0: i32, %arg1: memref<2xi32, #tpu.memory_space<smem>>) -> (i32, i32) {
    %c0_i32 = arith.constant 0 : i32
    %c0_i32_0 = arith.constant 0 : i32
    %c0_i32_1 = arith.constant 0 : i32
    return %c0_i32, %c0_i32_0 : i32, i32
  }
  func.func @transform_3(%arg0: i32, %arg1: memref<2xi32, #tpu.memory_space<smem>>) -> (i32, i32, i32) {
    %c0_i32 = arith.constant 0 : i32
    %c0_i32_0 = arith.constant 0 : i32
    %c0_i32_1 = arith.constant 0 : i32
    return %arg0, %c0_i32, %c0_i32_0 : i32, i32, i32
  }
  func.func @transform_4(%arg0: i32, %arg1: memref<2xi32, #tpu.memory_space<smem>>) -> (i32, i32, i32) {
    %c0_i32 = arith.constant 0 : i32
    %c0_i32_0 = arith.constant 0 : i32
    %c0_i32_1 = arith.constant 0 : i32
    return %arg0, %c0_i32, %c0_i32_0 : i32, i32, i32
  }
  func.func @transform_5(%arg0: i32, %arg1: memref<2xi32, #tpu.memory_space<smem>>) -> (i32, i32, i32) {
    %c0_i32 = arith.constant 0 : i32
    %c0_i32_0 = arith.constant 0 : i32
    %c0_i32_1 = arith.constant 0 : i32
    return %arg0, %c0_i32, %c0_i32_0 : i32, i32, i32
  }
  func.func @transform_6(%arg0: i32, %arg1: memref<2xi32, #tpu.memory_space<smem>>) -> (i32, i32, i32) {
    %c0_i32 = arith.constant 0 : i32
    %c0_i32_0 = arith.constant 0 : i32
    %c0_i32_1 = arith.constant 0 : i32
    return %arg0, %c0_i32, %c0_i32_0 : i32, i32, i32
  }
  func.func @transform_7(%arg0: i32, %arg1: memref<2xi32, #tpu.memory_space<smem>>) -> (i32, i32, i32) {
    %c0_i32 = arith.constant 0 : i32
    %c0_i32_0 = arith.constant 0 : i32
    %c0_i32_1 = arith.constant 0 : i32
    return %arg0, %c0_i32, %c0_i32_0 : i32, i32, i32
  }
  func.func @transform_8(%arg0: i32, %arg1: memref<2xi32, #tpu.memory_space<smem>>) -> (i32, i32, i32) {
    %c0_i32 = arith.constant 0 : i32
    %c0_i32_0 = arith.constant 0 : i32
    %c0_i32_1 = arith.constant 0 : i32
    return %arg0, %c0_i32, %c0_i32_0 : i32, i32, i32
  }
  func.func @transform_9(%arg0: i32, %arg1: memref<2xi32, #tpu.memory_space<smem>>) -> (i32, i32, i32) {
    %c0_i32 = arith.constant 0 : i32
    %c0_i32_0 = arith.constant 0 : i32
    %c0_i32_1 = arith.constant 0 : i32
    return %arg0, %c0_i32, %c0_i32_0 : i32, i32, i32
  }
  func.func @transform_10(%arg0: i32, %arg1: memref<2xi32, #tpu.memory_space<smem>>) -> (i32, i32, i32) {
    %c0_i32 = arith.constant 0 : i32
    %c0_i32_0 = arith.constant 0 : i32
    %c0_i32_1 = arith.constant 0 : i32
    return %arg0, %c0_i32, %c0_i32_0 : i32, i32, i32
  }
  func.func @transform_11(%arg0: i32, %arg1: memref<2xi32, #tpu.memory_space<smem>>) -> (i32, i32, i32) {
    %c0_i32 = arith.constant 0 : i32
    %c0_i32_0 = arith.constant 0 : i32
    %c0_i32_1 = arith.constant 0 : i32
    return %arg0, %c0_i32, %c0_i32_0 : i32, i32, i32
  }
  func.func @transform_12(%arg0: i32, %arg1: memref<2xi32, #tpu.memory_space<smem>>) -> (i32, i32, i32) {
    %c0_i32 = arith.constant 0 : i32
    %c0_i32_0 = arith.constant 0 : i32
    %c0_i32_1 = arith.constant 0 : i32
    return %arg0, %c0_i32, %c0_i32_0 : i32, i32, i32
  }
  func.func @transform_13(%arg0: i32, %arg1: memref<2xi32, #tpu.memory_space<smem>>) -> (i32, i32, i32) {
    %c0_i32 = arith.constant 0 : i32
    %c0_i32_0 = arith.constant 0 : i32
    %c0_i32_1 = arith.constant 0 : i32
    return %arg0, %c0_i32, %c0_i32_0 : i32, i32, i32
  }
  func.func @transform_14(%arg0: i32, %arg1: memref<2xi32, #tpu.memory_space<smem>>) -> (i32, i32, i32) {
    %c0_i32 = arith.constant 0 : i32
    %c0_i32_0 = arith.constant 0 : i32
    %c0_i32_1 = arith.constant 0 : i32
    return %arg0, %c0_i32, %c0_i32_0 : i32, i32, i32
  }
  func.func @transform_15(%arg0: i32, %arg1: memref<2xi32, #tpu.memory_space<smem>>) -> (i32, i32) {
    %c0_i32 = arith.constant 0 : i32
    %c0_i32_0 = arith.constant 0 : i32
    %c0_i32_1 = arith.constant 0 : i32
    return %c0_i32, %c0_i32_0 : i32, i32
  }
  func.func @transform_16(%arg0: i32, %arg1: memref<2xi32, #tpu.memory_space<smem>>) -> (i32, i32) {
    %c0_i32 = arith.constant 0 : i32
    %c0_i32_0 = arith.constant 0 : i32
    %c0_i32_1 = arith.constant 0 : i32
    return %c0_i32, %c0_i32_0 : i32, i32
  }
  func.func @transform_17(%arg0: i32, %arg1: memref<2xi32, #tpu.memory_space<smem>>) -> (i32, i32) {
    %c0_i32 = arith.constant 0 : i32
    %c0_i32_0 = arith.constant 0 : i32
    %c0_i32_1 = arith.constant 0 : i32
    return %c0_i32, %c0_i32_0 : i32, i32
  }
  func.func @transform_18(%arg0: i32, %arg1: memref<2xi32, #tpu.memory_space<smem>>) -> (i32, i32) {
    %c0_i32 = arith.constant 0 : i32
    %c0_i32_0 = arith.constant 0 : i32
    %c0_i32_1 = arith.constant 0 : i32
    return %c0_i32, %c0_i32_0 : i32, i32
  }
}

</mosaic_0001>

<llo_original>
// kernel: tpu_custom_call.1
$region0: #{tpu_custom_call.1}
  #allocation0 [shape = 'u32[]', space=smem, size = 0x4, offset = 0x4, fixed_abs, tag = 'smem constant byte address 0x4 - core index']
  #allocation1 [shape = 'u32[72,128]{1,0:T(1,128)}', space=vmem, size = 0x9000, scoped, tag = 'internal scratch']
  #allocation2 [shape = 'f32[16,32]{1,0:T(8,128)}', space=vmem, size = 0x2000, scoped, tag = 'scratch operand']
  #allocation3 [shape = 's32[1]{0}', space=sflag, size = 0x4, scoped, tag = 'scoped memory for tpu_custom_call.1']
  #allocation4 [shape = 'u8[512]{0}', space=smem, size = 0x200, scoped, tag = 'prefetched SMEM operand 0']
  %s0 = inlined_call_operand.hbm [shape: s32[2], index: 0, kind: input, shape index: {}]
  %s1 = inlined_call_operand.vmem [shape: f32[2,8,32], index: 1, kind: input, shape index: {}]
  %s2 = inlined_call_operand.vmem [shape: f32[8,32], index: 2, kind: input, shape index: {}]
  %s3 = inlined_call_operand.vmem [shape: f32[8,8], index: 3, kind: input, shape index: {}]
  %s4 = inlined_call_operand.vmem [shape: f32[2,1,32], index: 4, kind: input, shape index: {}]
  %s5 = inlined_call_operand.vmem [shape: f32[2,1,32], index: 5, kind: input, shape index: {}]
  %s6 = inlined_call_operand.vmem [shape: bf16[2,32,96], index: 6, kind: input, shape index: {}]
  %s7 = inlined_call_operand.vmem [shape: f32[2,1,96], index: 7, kind: input, shape index: {}]
  %s8 = inlined_call_operand.vmem [shape: bf16[2,32,32], index: 8, kind: input, shape index: {}]
  %s9 = inlined_call_operand.vmem [shape: f32[2,1,32], index: 9, kind: input, shape index: {}]
  %s10 = inlined_call_operand.vmem [shape: f32[2,1,32], index: 10, kind: input, shape index: {}]
  %s11 = inlined_call_operand.vmem [shape: f32[2,1,32], index: 11, kind: input, shape index: {}]
  %s12 = inlined_call_operand.vmem [shape: bf16[2,32,128], index: 12, kind: input, shape index: {}]
  %s13 = inlined_call_operand.vmem [shape: f32[2,1,128], index: 13, kind: input, shape index: {}]
  %s14 = inlined_call_operand.vmem [shape: bf16[2,128,32], index: 14, kind: input, shape index: {}]
  %s15 = inlined_call_operand.vmem [shape: f32[2,1,32], index: 15, kind: input, shape index: {}]
  %s16 = inlined_call_operand.vmem [shape: f32[1,32], index: 16, kind: input, shape index: {}]
  %s17 = inlined_call_operand.vmem [shape: f32[1,32], index: 17, kind: input, shape index: {}]
  %s18 = inlined_call_operand.vmem [shape: bf16[32,128], index: 18, kind: input, shape index: {}]
  %s19 = inlined_call_operand.hbm [shape: f32[2,128], index: 19, kind: output, shape index: {}]
  %s20 = sld [smem:[#allocation0]]
  $region90: #{tpu_custom_call.1} parent=0
    _
  %s22 = ssub.s32 1, %s20
  %s23 = scalar_select 0, %s22, %s20
  %s25 = sshll.u32 %s0, 4
  %s26 = int_to_ptr.hbm [resolvable:$true] %s25
  %28 = dma.hbm_to_smem %s26, 16, [#allocation4], [#allocation3]
  %30 = dma.done [#allocation3], 16
  %31 = sfence
  $region1: #{tpu_custom_call.1} parent=0
    #allocation5 [shape = 'u8[1024]{0}', space=vmem, size = 0x400, scoped, tag = 'output window, operand 0, single buffered']
    #allocation6 [shape = 's32[1]{0}', space=sflag, size = 0x4, scoped, tag = 'scoped memory for tpu_custom_call.1']
    %32 = vsyncpa [#allocation6], 0
    // Predicated region
    $region2: #{tpu_custom_call.1} parent=1 // pred_check
      _
    $region3: #{tpu_custom_call.1} parent=1 // pred_check_branch
      %34 = sbr.rel (0) target = $region5
    $region4: #{tpu_custom_call.1} parent=1 // pred_region
      _
    $region5: #{tpu_custom_call.1} parent=1 // pred_fallthru
      _
    // Predicated region
    $region6: #{tpu_custom_call.1} parent=1 // pred_check
      _
    $region7: #{tpu_custom_call.1} parent=1 // pred_check_branch
      %36 = sbr.rel (0) target = $region9
    $region8: #{tpu_custom_call.1} parent=1 // pred_region
      _
    $region9: #{tpu_custom_call.1} parent=1 // pred_fallthru
      _
    // Predicated region
    $region10: #{tpu_custom_call.1} parent=1 // pred_check
      _
    $region11: #{tpu_custom_call.1} parent=1 // pred_check_branch
      %38 = sbr.rel (0) target = $region13
    $region12: #{tpu_custom_call.1} parent=1 // pred_region
      _
    $region13: #{tpu_custom_call.1} parent=1 // pred_fallthru
      _
    // Predicated region
    $region14: #{tpu_custom_call.1} parent=1 // pred_check
      _
    $region15: #{tpu_custom_call.1} parent=1 // pred_check_branch
      %40 = sbr.rel (0) target = $region17
    $region16: #{tpu_custom_call.1} parent=1 // pred_region
      _
    $region17: #{tpu_custom_call.1} parent=1 // pred_fallthru
      _
    // Predicated region
    $region18: #{tpu_custom_call.1} parent=1 // pred_check
      _
    $region19: #{tpu_custom_call.1} parent=1 // pred_check_branch
      %42 = sbr.rel (0) target = $region21
    $region20: #{tpu_custom_call.1} parent=1 // pred_region
      _
    $region21: #{tpu_custom_call.1} parent=1 // pred_fallthru
      _
    // Predicated region
    $region22: #{tpu_custom_call.1} parent=1 // pred_check
      _
    $region23: #{tpu_custom_call.1} parent=1 // pred_check_branch
      %44 = sbr.rel (0) target = $region25
    $region24: #{tpu_custom_call.1} parent=1 // pred_region
      _
    $region25: #{tpu_custom_call.1} parent=1 // pred_fallthru
      _
    // Predicated region
    $region26: #{tpu_custom_call.1} parent=1 // pred_check
      _
    $region27: #{tpu_custom_call.1} parent=1 // pred_check_branch
      %46 = sbr.rel (0) target = $region29
    $region28: #{tpu_custom_call.1} parent=1 // pred_region
      _
    $region29: #{tpu_custom_call.1} parent=1 // pred_fallthru
      _
    // Predicated region
    $region30: #{tpu_custom_call.1} parent=1 // pred_check
      _
    $region31: #{tpu_custom_call.1} parent=1 // pred_check_branch
      %48 = sbr.rel (0) target = $region33
    $region32: #{tpu_custom_call.1} parent=1 // pred_region
      _
    $region33: #{tpu_custom_call.1} parent=1 // pred_fallthru
      _
    // Predicated region
    $region34: #{tpu_custom_call.1} parent=1 // pred_check
      _
    $region35: #{tpu_custom_call.1} parent=1 // pred_check_branch
      %50 = sbr.rel (0) target = $region37
    $region36: #{tpu_custom_call.1} parent=1 // pred_region
      _
    $region37: #{tpu_custom_call.1} parent=1 // pred_fallthru
      _
    // Predicated region
    $region38: #{tpu_custom_call.1} parent=1 // pred_check
      _
    $region39: #{tpu_custom_call.1} parent=1 // pred_check_branch
      %52 = sbr.rel (0) target = $region41
    $region40: #{tpu_custom_call.1} parent=1 // pred_region
      _
    $region41: #{tpu_custom_call.1} parent=1 // pred_fallthru
      _
    // Predicated region
    $region42: #{tpu_custom_call.1} parent=1 // pred_check
      _
    $region43: #{tpu_custom_call.1} parent=1 // pred_check_branch
      %54 = sbr.rel (0) target = $region45
    $region44: #{tpu_custom_call.1} parent=1 // pred_region
      _
    $region45: #{tpu_custom_call.1} parent=1 // pred_fallthru
      _
    // Predicated region
    $region46: #{tpu_custom_call.1} parent=1 // pred_check
      _
    $region47: #{tpu_custom_call.1} parent=1 // pred_check_branch
      %56 = sbr.rel (0) target = $region49
    $region48: #{tpu_custom_call.1} parent=1 // pred_region
      _
    $region49: #{tpu_custom_call.1} parent=1 // pred_fallthru
      _
    // Predicated region
    $region50: #{tpu_custom_call.1} parent=1 // pred_check
      _
    $region51: #{tpu_custom_call.1} parent=1 // pred_check_branch
      %58 = sbr.rel (0) target = $region53
    $region52: #{tpu_custom_call.1} parent=1 // pred_region
      _
    $region53: #{tpu_custom_call.1} parent=1 // pred_fallthru
      _
    // Predicated region
    $region54: #{tpu_custom_call.1} parent=1 // pred_check
      _
    $region55: #{tpu_custom_call.1} parent=1 // pred_check_branch
      %60 = sbr.rel (0) target = $region57
    $region56: #{tpu_custom_call.1} parent=1 // pred_region
      _
    $region57: #{tpu_custom_call.1} parent=1 // pred_fallthru
      _
    // Predicated region
    $region58: #{tpu_custom_call.1} parent=1 // pred_check
      _
    $region59: #{tpu_custom_call.1} parent=1 // pred_check_branch
      %62 = sbr.rel (0) target = $region61
    $region60: #{tpu_custom_call.1} parent=1 // pred_region
      _
    $region61: #{tpu_custom_call.1} parent=1 // pred_fallthru
      _
    // Predicated region
    $region62: #{tpu_custom_call.1} parent=1 // pred_check
      _
    $region63: #{tpu_custom_call.1} parent=1 // pred_check_branch
      %64 = sbr.rel (0) target = $region65
    $region64: #{tpu_custom_call.1} parent=1 // pred_region
      _
    $region65: #{tpu_custom_call.1} parent=1 // pred_fallthru
      _
    // Predicated region
    $region66: #{tpu_custom_call.1} parent=1 // pred_check
      _
    $region67: #{tpu_custom_call.1} parent=1 // pred_check_branch
      %66 = sbr.rel (0) target = $region69
    $region68: #{tpu_custom_call.1} parent=1 // pred_region
      _
    $region69: #{tpu_custom_call.1} parent=1 // pred_fallthru
      _
    // Predicated region
    $region70: #{tpu_custom_call.1} parent=1 // pred_check
      _
    $region71: #{tpu_custom_call.1} parent=1 // pred_check_branch
      %68 = sbr.rel (0) target = $region73
    $region72: #{tpu_custom_call.1} parent=1 // pred_region
      _
    $region73: #{tpu_custom_call.1} parent=1 // pred_fallthru
      _
    %p70 = scmp.eq.s32.totalorder 0, 0
    // Predicated region
    $region74: #{tpu_custom_call.1} parent=1 // pred_check
      %p71 = pneg %p70
    $region75: #{tpu_custom_call.1} parent=1 // pred_check_branch
      %73 = sbr.rel (%p71) target = $region77
    $region76: #{tpu_custom_call.1} parent=1 // pred_region
      %v74 = vld [vmem:[%s1] sm:$0xff]
      %v75 = vld [vmem:[%s1 + $0x8] sm:$0xff]
      %v76 = vld [vmem:[%s2] sm:$0xff]
      %v77 = vadd.f32 %v74, %v76
      %v78 = vadd.f32 %v75, %v76
      %vm79 = vcmask 261120
      %80 = vst.msk [vmem:[#allocation2] sm:$0xff] %vm79, %v77
      %81 = vst.msk [vmem:[#allocation2 + $0x8] sm:$0xff] %vm79, %v78
    $region77: #{tpu_custom_call.1} parent=1 // pred_fallthru
      _
    %v82 = vld [vmem:[%s3] sm:$0xff]
    %v83 = vld [vmem:[#allocation2] sm:$0xff]
    %v84 = vld [vmem:[#allocation2 + $0x8] sm:$0xff]
    %v85 = vld [vmem:[%s4] sm:$0x1]
    %v86 = vld [vmem:[%s5] sm:$0x1]
    %vm87 = vcmask 261120
    %v88 = vsel %vm87, %v83, 0.0
    %89 = vadd.xlane.f32.xlu0 %v88
    %v90 = vpop.xlane.xlu0 %89
    %v91 = vsel %vm87, %v84, 0.0
    %92 = vadd.xlane.f32.xlu0 %v91
    %v93 = vpop.xlane.xlu0 %92
    %v94 = vrcp.pop 32.0
    %v95 = vmul.f32 32.0, %v94
    %v96 = vsub.f32 1.0, %v95
    %v97 = vmul.f32 %v94, %v96
    %v98 = vadd.f32 %v94, %v97
    %vm99 = vweird.f32 %v94
    %v100 = vsel %vm99, %v94, %v98
    %v101 = vmul.f32 %v90, %v100
    %v102 = vmul.f32 %v93, %v100
    %v103 = vsub.f32 %v83, %v101
    %v104 = vsub.f32 %v84, %v102
    %v105 = vmul.f32 %v103, %v103
    %v106 = vmul.f32 %v104, %v104
    %v107 = vsel %vm87, %v105, 0.0
    %108 = vadd.xlane.f32.xlu0 %v107
    %v109 = vpop.xlane.xlu0 %108
    %v110 = vsel %vm87, %v106, 0.0
    %111 = vadd.xlane.f32.xlu0 %v110
    %v112 = vpop.xlane.xlu0 %111
    %v113 = vmul.f32 %v109, %v100
    %v114 = vmul.f32 %v112, %v100
    %v115 = vadd.f32 %v113, 1e-05
    %v116 = vadd.f32 %v114, 1e-05
    %v117 = vrsqrt.pop %v115
    %v118 = vmul.f32 %v117, %v115
    %v119 = vmul.f32 %v118, %v117
    %v120 = vmul.f32 0.5, %v119
    %v121 = vsub.f32 1.5, %v120
    %v122 = vmul.f32 %v117, %v121
    %vm123 = vweird.f32 %v115
    %vm124 = vweird.f32 %v117
    %vm125 = vmor %vm123, %vm124
    %v126 = vsel %vm125, %v117, %v122
    %v127 = vrsqrt.pop %v116
    %v128 = vmul.f32 %v127, %v116
    %v129 = vmul.f32 %v128, %v127
    %v130 = vmul.f32 0.5, %v129
    %v131 = vsub.f32 1.5, %v130
    %v132 = vmul.f32 %v127, %v131
    %vm133 = vweird.f32 %v116
    %vm134 = vweird.f32 %v127
    %vm135 = vmor %vm133, %vm134
    %v136 = vsel %vm135, %v127, %v132
    %v137 = vmul.f32 %v103, %v126
    %v138 = vmul.f32 %v104, %v136
    %v140 = vperm.slane %v85, 0
    %v142 = vmul.f32 %v137, %v140
    %v143 = vmul.f32 %v138, %v140
    %v145 = vperm.slane %v86, 0
    %v147 = vadd.f32 %v142, %v145
    %v148 = vadd.f32 %v143, %v145
    %v149 = vpack.c.bf16 %v148, %v147
    %v150 = vld [vmem:[%s6] sm:$0xf]
    %v151 = vld [vmem:[%s6 + $0x4] sm:$0xf]
    %v152 = vld [vmem:[%s6 + $0x8] sm:$0xf]
    %v153 = vld [vmem:[%s6 + $0xc] sm:$0xf]
    %v154 = vld [vmem:[%s7] sm:$0x1]
    %v156 = vperm.slane %v154, 0
    %v162 = vunpack.c.l.b16 %v150
    %v163 = vunpack.c.l.b16 %v151
    %v164 = vunpack.c.l.b16 %v152
    %v165 = vunpack.c.l.b16 %v153
    %v166 = vpack.c.b16 %v163, %v162
    %v167 = vpack.c.b16 %v165, %v164
    %v171 = vsel %vm87, %v149, 0
    %173 = vmatpush.bf16.msra.mxu0 0
    %174 = vmatpush.bf16.msra.mxu0 0
    %175 = vmatpush.bf16.msra.mxu0 0
    %176 = vmatpush.bf16.msra.mxu0 0
    %177 = vmatpush.bf16.msra.mxu0 0
    %178 = vmatpush.bf16.msra.mxu0 0
    %179 = vmatpush.bf16.msra.mxu0 %v167
    %180 = vmatpush.bf16.msra.mxu0 %v166
    %181 = vmatmul.bf16.gmra.mxu0 %v171
    %v182 = vpop.f32.mrf.mxu0
    %v183 = vadd.f32 %v156, %v182
    %v184 = vpop.f32.mrf.mxu0
    %v185 = vadd.f32 %v156, %v184
    %186 = vdwg.mxu0
    %187 = vxpose.xlu0.b32.start [1/16] %v183, 128
    %188 = vxpose.xlu0.b32.cont [2/16] 0.0, 128
    %189 = vxpose.xlu0.b32.cont [3/16] 0.0, 128
    %190 = vxpose.xlu0.b32.cont [4/16] 0.0, 128
    %191 = vxpose.xlu0.b32.cont [5/16] 0.0, 128
    %192 = vxpose.xlu0.b32.cont [6/16] 0.0, 128
    %193 = vxpose.xlu0.b32.cont [7/16] 0.0, 128
    %194 = vxpose.xlu0.b32.cont [8/16] 0.0, 128
    %195 = vxpose.xlu0.b32.cont [9/16] 0.0, 128
    %196 = vxpose.xlu0.b32.cont [10/16] 0.0, 128
    %197 = vxpose.xlu0.b32.cont [11/16] 0.0, 128
    %198 = vxpose.xlu0.b32.cont [12/16] 0.0, 128
    %199 = vxpose.xlu0.b32.cont [13/16] 0.0, 128
    %200 = vxpose.xlu0.b32.cont [14/16] 0.0, 128
    %201 = vxpose.xlu0.b32.cont [15/16] 0.0, 128
    %202 = vxpose.xlu0.b32.end [16/16] 0.0, 128
    %v203 = vpop.trf.xlu0
    %v204 = vpop.trf.xlu0
    %v205 = vpop.trf.xlu0
    %v206 = vpop.trf.xlu0
    %v207 = vpop.trf.xlu0
    %v208 = vpop.trf.xlu0
    %v209 = vpop.trf.xlu0
    %v210 = vpop.trf.xlu0
    %v211 = vpop.trf.xlu0
    %v212 = vpop.trf.xlu0
    %v213 = vpop.trf.xlu0
    %v214 = vpop.trf.xlu0
    %v215 = vpop.trf.xlu0
    %v216 = vpop.trf.xlu0
    %v217 = vpop.trf.xlu0
    %v218 = vpop.trf.xlu0
    %219 = vxpose.xlu0.b32.start [1/16] %v185, 128
    %220 = vxpose.xlu0.b32.cont [2/16] 0.0, 128
    %221 = vxpose.xlu0.b32.cont [3/16] 0.0, 128
    %222 = vxpose.xlu0.b32.cont [4/16] 0.0, 128
    %223 = vxpose.xlu0.b32.cont [5/16] 0.0, 128
    %224 = vxpose.xlu0.b32.cont [6/16] 0.0, 128
    %225 = vxpose.xlu0.b32.cont [7/16] 0.0, 128
    %226 = vxpose.xlu0.b32.cont [8/16] 0.0, 128
    %227 = vxpose.xlu0.b32.cont [9/16] 0.0, 128
    %228 = vxpose.xlu0.b32.cont [10/16] 0.0, 128
    %229 = vxpose.xlu0.b32.cont [11/16] 0.0, 128
    %230 = vxpose.xlu0.b32.cont [12/16] 0.0, 128
    %231 = vxpose.xlu0.b32.cont [13/16] 0.0, 128
    %232 = vxpose.xlu0.b32.cont [14/16] 0.0, 128
    %233 = vxpose.xlu0.b32.cont [15/16] 0.0, 128
    %234 = vxpose.xlu0.b32.end [16/16] 0.0, 128
    %v235 = vpop.trf.xlu0
    %v236 = vpop.trf.xlu0
    %v237 = vpop.trf.xlu0
    %v238 = vpop.trf.xlu0
    %v239 = vpop.trf.xlu0
    %v240 = vpop.trf.xlu0
    %v241 = vpop.trf.xlu0
    %v242 = vpop.trf.xlu0
    %v243 = vpop.trf.xlu0
    %v244 = vpop.trf.xlu0
    %v245 = vpop.trf.xlu0
    %v246 = vpop.trf.xlu0
    %v247 = vpop.trf.xlu0
    %v248 = vpop.trf.xlu0
    %v249 = vpop.trf.xlu0
    %v250 = vpop.trf.xlu0
    %251 = vxpose.xlu0.b32.start [1/16] %v203, 128
    %252 = vxpose.xlu0.b32.cont [2/16] 0.0, 128
    %253 = vxpose.xlu0.b32.cont [3/16] 0.0, 128
    %254 = vxpose.xlu0.b32.cont [4/16] 0.0, 128
    %255 = vxpose.xlu0.b32.cont [5/16] 0.0, 128
    %256 = vxpose.xlu0.b32.cont [6/16] 0.0, 128
    %257 = vxpose.xlu0.b32.cont [7/16] 0.0, 128
    %258 = vxpose.xlu0.b32.cont [8/16] 0.0, 128
    %259 = vxpose.xlu0.b32.cont [9/16] 0.0, 128
    %260 = vxpose.xlu0.b32.cont [10/16] 0.0, 128
    %261 = vxpose.xlu0.b32.cont [11/16] 0.0, 128
    %262 = vxpose.xlu0.b32.cont [12/16] 0.0, 128
    %263 = vxpose.xlu0.b32.cont [13/16] 0.0, 128
    %264 = vxpose.xlu0.b32.cont [14/16] 0.0, 128
    %265 = vxpose.xlu0.b32.cont [15/16] 0.0, 128
    %266 = vxpose.xlu0.b32.end [16/16] 0.0, 128
    %v267 = vpop.trf.xlu0
    %v268 = vpop.trf.xlu0
    %v269 = vpop.trf.xlu0
    %v270 = vpop.trf.xlu0
    %v271 = vpop.trf.xlu0
    %v272 = vpop.trf.xlu0
    %v273 = vpop.trf.xlu0
    %v274 = vpop.trf.xlu0
    %v275 = vpop.trf.xlu0
    %v276 = vpop.trf.xlu0
    %v277 = vpop.trf.xlu0
    %v278 = vpop.trf.xlu0
    %v279 = vpop.trf.xlu0
    %v280 = vpop.trf.xlu0
    %v281 = vpop.trf.xlu0
    %v282 = vpop.trf.xlu0
    %283 = vxpose.xlu0.b32.start [1/16] %v204, 128
    %284 = vxpose.xlu0.b32.cont [2/16] 0.0, 128
    %285 = vxpose.xlu0.b32.cont [3/16] 0.0, 128
    %286 = vxpose.xlu0.b32.cont [4/16] 0.0, 128
    %287 = vxpose.xlu0.b32.cont [5/16] 0.0, 128
    %288 = vxpose.xlu0.b32.cont [6/16] 0.0, 128
    %289 = vxpose.xlu0.b32.cont [7/16] 0.0, 128
    %290 = vxpose.xlu0.b32.cont [8/16] 0.0, 128
    %291 = vxpose.xlu0.b32.cont [9/16] 0.0, 128
    %292 = vxpose.xlu0.b32.cont [10/16] 0.0, 128
    %293 = vxpose.xlu0.b32.cont [11/16] 0.0, 128
    %294 = vxpose.xlu0.b32.cont [12/16] 0.0, 128
    %295 = vxpose.xlu0.b32.cont [13/16] 0.0, 128
    %296 = vxpose.xlu0.b32.cont [14/16] 0.0, 128
    %297 = vxpose.xlu0.b32.cont [15/16] 0.0, 128
    %298 = vxpose.xlu0.b32.end [16/16] 0.0, 128
    %v299 = vpop.trf.xlu0
    %v300 = vpop.trf.xlu0
    %v301 = vpop.trf.xlu0
    %v302 = vpop.trf.xlu0
    %v303 = vpop.trf.xlu0
    %v304 = vpop.trf.xlu0
    %v305 = vpop.trf.xlu0
    %v306 = vpop.trf.xlu0
    %v307 = vpop.trf.xlu0
    %v308 = vpop.trf.xlu0
    %v309 = vpop.trf.xlu0
    %v310 = vpop.trf.xlu0
    %v311 = vpop.trf.xlu0
    %v312 = vpop.trf.xlu0
    %v313 = vpop.trf.xlu0
    %v314 = vpop.trf.xlu0
    %315 = vxpose.xlu0.b32.start [1/16] %v205, 128
    %316 = vxpose.xlu0.b32.cont [2/16] 0.0, 128
    %317 = vxpose.xlu0.b32.cont [3/16] 0.0, 128
    %318 = vxpose.xlu0.b32.cont [4/16] 0.0, 128
    %319 = vxpose.xlu0.b32.cont [5/16] 0.0, 128
    %320 = vxpose.xlu0.b32.cont [6/16] 0.0, 128
    %321 = vxpose.xlu0.b32.cont [7/16] 0.0, 128
    %322 = vxpose.xlu0.b32.cont [8/16] 0.0, 128
    %323 = vxpose.xlu0.b32.cont [9/16] 0.0, 128
    %324 = vxpose.xlu0.b32.cont [10/16] 0.0, 128
    %325 = vxpose.xlu0.b32.cont [11/16] 0.0, 128
    %326 = vxpose.xlu0.b32.cont [12/16] 0.0, 128
    %327 = vxpose.xlu0.b32.cont [13/16] 0.0, 128
    %328 = vxpose.xlu0.b32.cont [14/16] 0.0, 128
    %329 = vxpose.xlu0.b32.cont [15/16] 0.0, 128
    %330 = vxpose.xlu0.b32.end [16/16] 0.0, 128
    %v331 = vpop.trf.xlu0
    %v332 = vpop.trf.xlu0
    %v333 = vpop.trf.xlu0
    %v334 = vpop.trf.xlu0
    %v335 = vpop.trf.xlu0
    %v336 = vpop.trf.xlu0
    %v337 = vpop.trf.xlu0
    %v338 = vpop.trf.xlu0
    %v339 = vpop.trf.xlu0
    %v340 = vpop.trf.xlu0
    %v341 = vpop.trf.xlu0
    %v342 = vpop.trf.xlu0
    %v343 = vpop.trf.xlu0
    %v344 = vpop.trf.xlu0
    %v345 = vpop.trf.xlu0
    %v346 = vpop.trf.xlu0
    %347 = vxpose.xlu0.b32.start [1/16] %v206, 128
    %348 = vxpose.xlu0.b32.cont [2/16] 0.0, 128
    %349 = vxpose.xlu0.b32.cont [3/16] 0.0, 128
    %350 = vxpose.xlu0.b32.cont [4/16] 0.0, 128
    %351 = vxpose.xlu0.b32.cont [5/16] 0.0, 128
    %352 = vxpose.xlu0.b32.cont [6/16] 0.0, 128
    %353 = vxpose.xlu0.b32.cont [7/16] 0.0, 128
    %354 = vxpose.xlu0.b32.cont [8/16] 0.0, 128
    %355 = vxpose.xlu0.b32.cont [9/16] 0.0, 128
    %356 = vxpose.xlu0.b32.cont [10/16] 0.0, 128
    %357 = vxpose.xlu0.b32.cont [11/16] 0.0, 128
    %358 = vxpose.xlu0.b32.cont [12/16] 0.0, 128
    %359 = vxpose.xlu0.b32.cont [13/16] 0.0, 128
    %360 = vxpose.xlu0.b32.cont [14/16] 0.0, 128
    %361 = vxpose.xlu0.b32.cont [15/16] 0.0, 128
    %362 = vxpose.xlu0.b32.end [16/16] 0.0, 128
    %v363 = vpop.trf.xlu0
    %v364 = vpop.trf.xlu0
    %v365 = vpop.trf.xlu0
    %v366 = vpop.trf.xlu0
    %v367 = vpop.trf.xlu0
    %v368 = vpop.trf.xlu0
    %v369 = vpop.trf.xlu0
    %v370 = vpop.trf.xlu0
    %v371 = vpop.trf.xlu0
    %v372 = vpop.trf.xlu0
    %v373 = vpop.trf.xlu0
    %v374 = vpop.trf.xlu0
    %v375 = vpop.trf.xlu0
    %v376 = vpop.trf.xlu0
    %v377 = vpop.trf.xlu0
    %v378 = vpop.trf.xlu0
    %379 = vxpose.xlu0.b32.start [1/16] %v235, 128
    %380 = vxpose.xlu0.b32.cont [2/16] 0.0, 128
    %381 = vxpose.xlu0.b32.cont [3/16] 0.0, 128
    %382 = vxpose.xlu0.b32.cont [4/16] 0.0, 128
    %383 = vxpose.xlu0.b32.cont [5/16] 0.0, 128
    %384 = vxpose.xlu0.b32.cont [6/16] 0.0, 128
    %385 = vxpose.xlu0.b32.cont [7/16] 0.0, 128
    %386 = vxpose.xlu0.b32.cont [8/16] 0.0, 128
    %387 = vxpose.xlu0.b32.cont [9/16] 0.0, 128
    %388 = vxpose.xlu0.b32.cont [10/16] 0.0, 128
    %389 = vxpose.xlu0.b32.cont [11/16] 0.0, 128
    %390 = vxpose.xlu0.b32.cont [12/16] 0.0, 128
    %391 = vxpose.xlu0.b32.cont [13/16] 0.0, 128
    %392 = vxpose.xlu0.b32.cont [14/16] 0.0, 128
    %393 = vxpose.xlu0.b32.cont [15/16] 0.0, 128
    %394 = vxpose.xlu0.b32.end [16/16] 0.0, 128
    %v395 = vpop.trf.xlu0
    %v396 = vpop.trf.xlu0
    %v397 = vpop.trf.xlu0
    %v398 = vpop.trf.xlu0
    %v399 = vpop.trf.xlu0
    %v400 = vpop.trf.xlu0
    %v401 = vpop.trf.xlu0
    %v402 = vpop.trf.xlu0
    %v403 = vpop.trf.xlu0
    %v404 = vpop.trf.xlu0
    %v405 = vpop.trf.xlu0
    %v406 = vpop.trf.xlu0
    %v407 = vpop.trf.xlu0
    %v408 = vpop.trf.xlu0
    %v409 = vpop.trf.xlu0
    %v410 = vpop.trf.xlu0
    %411 = vxpose.xlu0.b32.start [1/16] %v236, 128
    %412 = vxpose.xlu0.b32.cont [2/16] 0.0, 128
    %413 = vxpose.xlu0.b32.cont [3/16] 0.0, 128
    %414 = vxpose.xlu0.b32.cont [4/16] 0.0, 128
    %415 = vxpose.xlu0.b32.cont [5/16] 0.0, 128
    %416 = vxpose.xlu0.b32.cont [6/16] 0.0, 128
    %417 = vxpose.xlu0.b32.cont [7/16] 0.0, 128
    %418 = vxpose.xlu0.b32.cont [8/16] 0.0, 128
    %419 = vxpose.xlu0.b32.cont [9/16] 0.0, 128
    %420 = vxpose.xlu0.b32.cont [10/16] 0.0, 128
    %421 = vxpose.xlu0.b32.cont [11/16] 0.0, 128
    %422 = vxpose.xlu0.b32.cont [12/16] 0.0, 128
    %423 = vxpose.xlu0.b32.cont [13/16] 0.0, 128
    %424 = vxpose.xlu0.b32.cont [14/16] 0.0, 128
    %425 = vxpose.xlu0.b32.cont [15/16] 0.0, 128
    %426 = vxpose.xlu0.b32.end [16/16] 0.0, 128
    %v427 = vpop.trf.xlu0
    %v428 = vpop.trf.xlu0
    %v429 = vpop.trf.xlu0
    %v430 = vpop.trf.xlu0
    %v431 = vpop.trf.xlu0
    %v432 = vpop.trf.xlu0
    %v433 = vpop.trf.xlu0
    %v434 = vpop.trf.xlu0
    %v435 = vpop.trf.xlu0
    %v436 = vpop.trf.xlu0
    %v437 = vpop.trf.xlu0
    %v438 = vpop.trf.xlu0
    %v439 = vpop.trf.xlu0
    %v440 = vpop.trf.xlu0
    %v441 = vpop.trf.xlu0
    %v442 = vpop.trf.xlu0
    %443 = vxpose.xlu0.b32.start [1/16] %v237, 128
    %444 = vxpose.xlu0.b32.cont [2/16] 0.0, 128
    %445 = vxpose.xlu0.b32.cont [3/16] 0.0, 128
    %446 = vxpose.xlu0.b32.cont [4/16] 0.0, 128
    %447 = vxpose.xlu0.b32.cont [5/16] 0.0, 128
    %448 = vxpose.xlu0.b32.cont [6/16] 0.0, 128
    %449 = vxpose.xlu0.b32.cont [7/16] 0.0, 128
    %450 = vxpose.xlu0.b32.cont [8/16] 0.0, 128
    %451 = vxpose.xlu0.b32.cont [9/16] 0.0, 128
    %452 = vxpose.xlu0.b32.cont [10/16] 0.0, 128
    %453 = vxpose.xlu0.b32.cont [11/16] 0.0, 128
    %454 = vxpose.xlu0.b32.cont [12/16] 0.0, 128
    %455 = vxpose.xlu0.b32.cont [13/16] 0.0, 128
    %456 = vxpose.xlu0.b32.cont [14/16] 0.0, 128
    %457 = vxpose.xlu0.b32.cont [15/16] 0.0, 128
    %458 = vxpose.xlu0.b32.end [16/16] 0.0, 128
    %v459 = vpop.trf.xlu0
    %v460 = vpop.trf.xlu0
    %v461 = vpop.trf.xlu0
    %v462 = vpop.trf.xlu0
    %v463 = vpop.trf.xlu0
    %v464 = vpop.trf.xlu0
    %v465 = vpop.trf.xlu0
    %v466 = vpop.trf.xlu0
    %v467 = vpop.trf.xlu0
    %v468 = vpop.trf.xlu0
    %v469 = vpop.trf.xlu0
    %v470 = vpop.trf.xlu0
    %v471 = vpop.trf.xlu0
    %v472 = vpop.trf.xlu0
    %v473 = vpop.trf.xlu0
    %v474 = vpop.trf.xlu0
    %475 = vxpose.xlu0.b32.start [1/16] %v238, 128
    %476 = vxpose.xlu0.b32.cont [2/16] 0.0, 128
    %477 = vxpose.xlu0.b32.cont [3/16] 0.0, 128
    %478 = vxpose.xlu0.b32.cont [4/16] 0.0, 128
    %479 = vxpose.xlu0.b32.cont [5/16] 0.0, 128
    %480 = vxpose.xlu0.b32.cont [6/16] 0.0, 128
    %481 = vxpose.xlu0.b32.cont [7/16] 0.0, 128
    %482 = vxpose.xlu0.b32.cont [8/16] 0.0, 128
    %483 = vxpose.xlu0.b32.cont [9/16] 0.0, 128
    %484 = vxpose.xlu0.b32.cont [10/16] 0.0, 128
    %485 = vxpose.xlu0.b32.cont [11/16] 0.0, 128
    %486 = vxpose.xlu0.b32.cont [12/16] 0.0, 128
    %487 = vxpose.xlu0.b32.cont [13/16] 0.0, 128
    %488 = vxpose.xlu0.b32.cont [14/16] 0.0, 128
    %489 = vxpose.xlu0.b32.cont [15/16] 0.0, 128
    %490 = vxpose.xlu0.b32.end [16/16] 0.0, 128
    %v491 = vpop.trf.xlu0
    %v492 = vpop.trf.xlu0
    %v493 = vpop.trf.xlu0
    %v494 = vpop.trf.xlu0
    %v495 = vpop.trf.xlu0
    %v496 = vpop.trf.xlu0
    %v497 = vpop.trf.xlu0
    %v498 = vpop.trf.xlu0
    %v499 = vpop.trf.xlu0
    %v500 = vpop.trf.xlu0
    %v501 = vpop.trf.xlu0
    %v502 = vpop.trf.xlu0
    %v503 = vpop.trf.xlu0
    %v504 = vpop.trf.xlu0
    %v505 = vpop.trf.xlu0
    %v506 = vpop.trf.xlu0
    %v507 = vpack.c.bf16 %v267, %v267
    %v508 = vpack.c.bf16 %v299, %v299
    %v509 = vpack.c.bf16 %v331, %v331
    %v510 = vpack.c.bf16 %v363, %v363
    %v511 = vpack.c.bf16 %v395, %v395
    %v512 = vpack.c.bf16 %v427, %v427
    %v513 = vpack.c.bf16 %v459, %v459
    %v514 = vpack.c.bf16 %v491, %v491
    %v515 = vpack.c.bf16 %v207, %v207
    %v516 = vpack.c.bf16 %v208, %v208
    %v517 = vpack.c.bf16 %v209, %v209
    %v518 = vpack.c.bf16 %v210, %v210
    %v519 = vpack.c.bf16 %v239, %v239
    %v520 = vpack.c.bf16 %v240, %v240
    %v521 = vpack.c.bf16 %v241, %v241
    %v522 = vpack.c.bf16 %v242, %v242
    %vm523 = vcmask 64512
    %v525 = vsel %vm523, %v507, 0
    %vm527 = vcmask 1043456
    %v529 = vsel %vm527, %v515, 0
    %531 = vmatpush.bf16.msra.mxu0 0
    %532 = vmatpush.bf16.msra.mxu0 0
    %533 = vmatpush.bf16.msra.mxu0 0
    %534 = vmatpush.bf16.msra.mxu0 0
    %535 = vmatpush.bf16.msra.mxu0 0
    %536 = vmatpush.bf16.msra.mxu0 0
    %537 = vmatpush.bf16.msra.mxu0 0
    %538 = vmatpush.bf16.msra.mxu0 %v529
    %539 = vmatmul.bf16.gmra.mxu0 %v525
    %v540 = vpop.f32.mrf.mxu0
    %v541 = vadd.f32 0.0, %v540
    %v542 = vpop.f32.mrf.mxu0
    %543 = vdwg.mxu0
    %v545 = vsel %vm523, %v508, 0
    %v548 = vsel %vm527, %v516, 0
    %550 = vmatpush.bf16.msra.mxu0 0
    %551 = vmatpush.bf16.msra.mxu0 0
    %552 = vmatpush.bf16.msra.mxu0 0
    %553 = vmatpush.bf16.msra.mxu0 0
    %554 = vmatpush.bf16.msra.mxu0 0
    %555 = vmatpush.bf16.msra.mxu0 0
    %556 = vmatpush.bf16.msra.mxu0 0
    %557 = vmatpush.bf16.msra.mxu0 %v548
    %558 = vmatmul.bf16.gmra.mxu0 %v545
    %v559 = vpop.f32.mrf.mxu0
    %v560 = vadd.f32 0.0, %v559
    %v561 = vpop.f32.mrf.mxu0
    %562 = vdwg.mxu0
    %v564 = vsel %vm523, %v509, 0
    %v567 = vsel %vm527, %v517, 0
    %569 = vmatpush.bf16.msra.mxu0 0
    %570 = vmatpush.bf16.msra.mxu0 0
    %571 = vmatpush.bf16.msra.mxu0 0
    %572 = vmatpush.bf16.msra.mxu0 0
    %573 = vmatpush.bf16.msra.mxu0 0
    %574 = vmatpush.bf16.msra.mxu0 0
    %575 = vmatpush.bf16.msra.mxu0 0
    %576 = vmatpush.bf16.msra.mxu0 %v567
    %577 = vmatmul.bf16.gmra.mxu0 %v564
    %v578 = vpop.f32.mrf.mxu0
    %v579 = vadd.f32 0.0, %v578
    %v580 = vpop.f32.mrf.mxu0
    %581 = vdwg.mxu0
    %v583 = vsel %vm523, %v510, 0
    %v586 = vsel %vm527, %v518, 0
    %588 = vmatpush.bf16.msra.mxu0 0
    %589 = vmatpush.bf16.msra.mxu0 0
    %590 = vmatpush.bf16.msra.mxu0 0
    %591 = vmatpush.bf16.msra.mxu0 0
    %592 = vmatpush.bf16.msra.mxu0 0
    %593 = vmatpush.bf16.msra.mxu0 0
    %594 = vmatpush.bf16.msra.mxu0 0
    %595 = vmatpush.bf16.msra.mxu0 %v586
    %596 = vmatmul.bf16.gmra.mxu0 %v583
    %v597 = vpop.f32.mrf.mxu0
    %v598 = vadd.f32 0.0, %v597
    %v599 = vpop.f32.mrf.mxu0
    %600 = vdwg.mxu0
    %v602 = vsel %vm523, %v511, 0
    %v605 = vsel %vm527, %v519, 0
    %607 = vmatpush.bf16.msra.mxu0 0
    %608 = vmatpush.bf16.msra.mxu0 0
    %609 = vmatpush.bf16.msra.mxu0 0
    %610 = vmatpush.bf16.msra.mxu0 0
    %611 = vmatpush.bf16.msra.mxu0 0
    %612 = vmatpush.bf16.msra.mxu0 0
    %613 = vmatpush.bf16.msra.mxu0 0
    %614 = vmatpush.bf16.msra.mxu0 %v605
    %615 = vmatmul.bf16.gmra.mxu0 %v602
    %v616 = vpop.f32.mrf.mxu0
    %v617 = vadd.f32 0.0, %v616
    %v618 = vpop.f32.mrf.mxu0
    %619 = vdwg.mxu0
    %v621 = vsel %vm523, %v512, 0
    %v624 = vsel %vm527, %v520, 0
    %626 = vmatpush.bf16.msra.mxu0 0
    %627 = vmatpush.bf16.msra.mxu0 0
    %628 = vmatpush.bf16.msra.mxu0 0
    %629 = vmatpush.bf16.msra.mxu0 0
    %630 = vmatpush.bf16.msra.mxu0 0
    %631 = vmatpush.bf16.msra.mxu0 0
    %632 = vmatpush.bf16.msra.mxu0 0
    %633 = vmatpush.bf16.msra.mxu0 %v624
    %634 = vmatmul.bf16.gmra.mxu0 %v621
    %v635 = vpop.f32.mrf.mxu0
    %v636 = vadd.f32 0.0, %v635
    %v637 = vpop.f32.mrf.mxu0
    %638 = vdwg.mxu0
    %v640 = vsel %vm523, %v513, 0
    %v643 = vsel %vm527, %v521, 0
    %645 = vmatpush.bf16.msra.mxu0 0
    %646 = vmatpush.bf16.msra.mxu0 0
    %647 = vmatpush.bf16.msra.mxu0 0
    %648 = vmatpush.bf16.msra.mxu0 0
    %649 = vmatpush.bf16.msra.mxu0 0
    %650 = vmatpush.bf16.msra.mxu0 0
    %651 = vmatpush.bf16.msra.mxu0 0
    %652 = vmatpush.bf16.msra.mxu0 %v643
    %653 = vmatmul.bf16.gmra.mxu0 %v640
    %v654 = vpop.f32.mrf.mxu0
    %v655 = vadd.f32 0.0, %v654
    %v656 = vpop.f32.mrf.mxu0
    %657 = vdwg.mxu0
    %v659 = vsel %vm523, %v514, 0
    %v662 = vsel %vm527, %v522, 0
    %664 = vmatpush.bf16.msra.mxu0 0
    %665 = vmatpush.bf16.msra.mxu0 0
    %666 = vmatpush.bf16.msra.mxu0 0
    %667 = vmatpush.bf16.msra.mxu0 0
    %668 = vmatpush.bf16.msra.mxu0 0
    %669 = vmatpush.bf16.msra.mxu0 0
    %670 = vmatpush.bf16.msra.mxu0 0
    %671 = vmatpush.bf16.msra.mxu0 %v662
    %672 = vmatmul.bf16.gmra.mxu0 %v659
    %v673 = vpop.f32.mrf.mxu0
    %v674 = vadd.f32 0.0, %v673
    %v675 = vpop.f32.mrf.mxu0
    %676 = vdwg.mxu0
    %v677 = vmul.f32 %v541, 0.35355338
    %v678 = vmul.f32 %v560, 0.35355338
    %v679 = vmul.f32 %v579, 0.35355338
    %v680 = vmul.f32 %v598, 0.35355338
    %v681 = vmul.f32 %v617, 0.35355338
    %v682 = vmul.f32 %v636, 0.35355338
    %v683 = vmul.f32 %v655, 0.35355338
    %v684 = vmul.f32 %v674, 0.35355338
    %v685 = vadd.f32 %v677, %v82
    %v686 = vadd.f32 %v678, %v82
    %v687 = vadd.f32 %v679, %v82
    %v688 = vadd.f32 %v680, %v82
    %v689 = vadd.f32 %v681, %v82
    %v690 = vadd.f32 %v682, %v82
    %v691 = vadd.f32 %v683, %v82
    %v692 = vadd.f32 %v684, %v82
    %v693 = vsel %vm523, %v685, -inf
    %694 = vmax.xlane.f32.xlu0 %v693
    %v695 = vpop.xlane.xlu0 %694
    %v696 = vsel %vm523, %v686, -inf
    %697 = vmax.xlane.f32.xlu0 %v696
    %v698 = vpop.xlane.xlu0 %697
    %v699 = vsel %vm523, %v687, -inf
    %700 = vmax.xlane.f32.xlu0 %v699
    %v701 = vpop.xlane.xlu0 %700
    %v702 = vsel %vm523, %v688, -inf
    %703 = vmax.xlane.f32.xlu0 %v702
    %v704 = vpop.xlane.xlu0 %703
    %v705 = vsel %vm523, %v689, -inf
    %706 = vmax.xlane.f32.xlu0 %v705
    %v707 = vpop.xlane.xlu0 %706
    %v708 = vsel %vm523, %v690, -inf
    %709 = vmax.xlane.f32.xlu0 %v708
    %v710 = vpop.xlane.xlu0 %709
    %v711 = vsel %vm523, %v691, -inf
    %712 = vmax.xlane.f32.xlu0 %v711
    %v713 = vpop.xlane.xlu0 %712
    %v714 = vsel %vm523, %v692, -inf
    %715 = vmax.xlane.f32.xlu0 %v714
    %v716 = vpop.xlane.xlu0 %715
    %v717 = vsub.f32 %v685, %v695
    %v718 = vsub.f32 %v686, %v698
    %v719 = vsub.f32 %v687, %v701
    %v720 = vsub.f32 %v688, %v704
    %v721 = vsub.f32 %v689, %v707
    %v722 = vsub.f32 %v690, %v710
    %v723 = vsub.f32 %v691, %v713
    %v724 = vsub.f32 %v692, %v716
    %v725 = vmul.f32 %v717, 1.442695
    %v726 = vpow.pop %v725
    %v727 = vmul.f32 %v718, 1.442695
    %v728 = vpow.pop %v727
    %v729 = vmul.f32 %v719, 1.442695
    %v730 = vpow.pop %v729
    %v731 = vmul.f32 %v720, 1.442695
    %v732 = vpow.pop %v731
    %v733 = vmul.f32 %v721, 1.442695
    %v734 = vpow.pop %v733
    %v735 = vmul.f32 %v722, 1.442695
    %v736 = vpow.pop %v735
    %v737 = vmul.f32 %v723, 1.442695
    %v738 = vpow.pop %v737
    %v739 = vmul.f32 %v724, 1.442695
    %v740 = vpow.pop %v739
    %v741 = vsel %vm523, %v726, 0.0
    %742 = vadd.xlane.f32.xlu0 %v741
    %v743 = vpop.xlane.xlu0 %742
    %v744 = vsel %vm523, %v728, 0.0
    %745 = vadd.xlane.f32.xlu0 %v744
    %v746 = vpop.xlane.xlu0 %745
    %v747 = vsel %vm523, %v730, 0.0
    %748 = vadd.xlane.f32.xlu0 %v747
    %v749 = vpop.xlane.xlu0 %748
    %v750 = vsel %vm523, %v732, 0.0
    %751 = vadd.xlane.f32.xlu0 %v750
    %v752 = vpop.xlane.xlu0 %751
    %v753 = vsel %vm523, %v734, 0.0
    %754 = vadd.xlane.f32.xlu0 %v753
    %v755 = vpop.xlane.xlu0 %754
    %v756 = vsel %vm523, %v736, 0.0
    %757 = vadd.xlane.f32.xlu0 %v756
    %v758 = vpop.xlane.xlu0 %757
    %v759 = vsel %vm523, %v738, 0.0
    %760 = vadd.xlane.f32.xlu0 %v759
    %v761 = vpop.xlane.xlu0 %760
    %v762 = vsel %vm523, %v740, 0.0
    %763 = vadd.xlane.f32.xlu0 %v762
    %v764 = vpop.xlane.xlu0 %763
    %v765 = vrcp.pop %v743
    %v766 = vrcp.pop %v746
    %v767 = vrcp.pop %v749
    %v768 = vrcp.pop %v752
    %v769 = vrcp.pop %v755
    %v770 = vrcp.pop %v758
    %v771 = vrcp.pop %v761
    %v772 = vrcp.pop %v764
    %v773 = vmul.f32 %v726, %v765
    %v774 = vmul.f32 %v728, %v766
    %v775 = vmul.f32 %v730, %v767
    %v776 = vmul.f32 %v732, %v768
    %v777 = vmul.f32 %v734, %v769
    %v778 = vmul.f32 %v736, %v770
    %v779 = vmul.f32 %v738, %v771
    %v780 = vmul.f32 %v740, %v772
    %v781 = vpack.c.bf16 %v211, %v211
    %v782 = vpack.c.bf16 %v212, %v212
    %v783 = vpack.c.bf16 %v213, %v213
    %v784 = vpack.c.bf16 %v214, %v214
    %v785 = vpack.c.bf16 %v243, %v243
    %v786 = vpack.c.bf16 %v244, %v244
    %v787 = vpack.c.bf16 %v245, %v245
    %v788 = vpack.c.bf16 %v246, %v246
    %v789 = vpack.c.bf16 %v773, %v773
    %v790 = vpack.c.bf16 %v774, %v774
    %v791 = vpack.c.bf16 %v775, %v775
    %v792 = vpack.c.bf16 %v776, %v776
    %v793 = vpack.c.bf16 %v777, %v777
    %v794 = vpack.c.bf16 %v778, %v778
    %v795 = vpack.c.bf16 %v779, %v779
    %v796 = vpack.c.bf16 %v780, %v780
    %v798 = vsel %vm523, %v781, 0
    %v801 = vsel %vm523, %v789, 0
    %803 = vmatpush.bf16.xpose.msra.mxu0 0
    %804 = vmatpush.bf16.xpose.msra.mxu0 0
    %805 = vmatpush.bf16.xpose.msra.mxu0 0
    %806 = vmatpush.bf16.xpose.msra.mxu0 0
    %807 = vmatpush.bf16.xpose.msra.mxu0 0
    %808 = vmatpush.bf16.xpose.msra.mxu0 0
    %809 = vmatpush.bf16.xpose.msra.mxu0 0
    %810 = vmatpush.bf16.xpose.msra.mxu0 %v801
    %811 = vmatmul.bf16.gmra.mxu0 %v798
    %v812 = vpop.f32.mrf.mxu0
    %v813 = vadd.f32 0.0, %v812
    %v814 = vpop.f32.mrf.mxu0
    %815 = vdwg.mxu0
    %v817 = vsel %vm523, %v782, 0
    %v820 = vsel %vm523, %v790, 0
    %822 = vmatpush.bf16.xpose.msra.mxu0 0
    %823 = vmatpush.bf16.xpose.msra.mxu0 0
    %824 = vmatpush.bf16.xpose.msra.mxu0 0
    %825 = vmatpush.bf16.xpose.msra.mxu0 0
    %826 = vmatpush.bf16.xpose.msra.mxu0 0
    %827 = vmatpush.bf16.xpose.msra.mxu0 0
    %828 = vmatpush.bf16.xpose.msra.mxu0 0
    %829 = vmatpush.bf16.xpose.msra.mxu0 %v820
    %830 = vmatmul.bf16.gmra.mxu0 %v817
    %v831 = vpop.f32.mrf.mxu0
    %v832 = vadd.f32 0.0, %v831
    %v833 = vpop.f32.mrf.mxu0
    %834 = vdwg.mxu0
    %v836 = vsel %vm523, %v783, 0
    %v839 = vsel %vm523, %v791, 0
    %841 = vmatpush.bf16.xpose.msra.mxu0 0
    %842 = vmatpush.bf16.xpose.msra.mxu0 0
    %843 = vmatpush.bf16.xpose.msra.mxu0 0
    %844 = vmatpush.bf16.xpose.msra.mxu0 0
    %845 = vmatpush.bf16.xpose.msra.mxu0 0
    %846 = vmatpush.bf16.xpose.msra.mxu0 0
    %847 = vmatpush.bf16.xpose.msra.mxu0 0
    %848 = vmatpush.bf16.xpose.msra.mxu0 %v839
    %849 = vmatmul.bf16.gmra.mxu0 %v836
    %v850 = vpop.f32.mrf.mxu0
    %v851 = vadd.f32 0.0, %v850
    %v852 = vpop.f32.mrf.mxu0
    %853 = vdwg.mxu0
    %v855 = vsel %vm523, %v784, 0
    %v858 = vsel %vm523, %v792, 0
    %860 = vmatpush.bf16.xpose.msra.mxu0 0
    %861 = vmatpush.bf16.xpose.msra.mxu0 0
    %862 = vmatpush.bf16.xpose.msra.mxu0 0
    %863 = vmatpush.bf16.xpose.msra.mxu0 0
    %864 = vmatpush.bf16.xpose.msra.mxu0 0
    %865 = vmatpush.bf16.xpose.msra.mxu0 0
    %866 = vmatpush.bf16.xpose.msra.mxu0 0
    %867 = vmatpush.bf16.xpose.msra.mxu0 %v858
    %868 = vmatmul.bf16.gmra.mxu0 %v855
    %v869 = vpop.f32.mrf.mxu0
    %v870 = vadd.f32 0.0, %v869
    %v871 = vpop.f32.mrf.mxu0
    %872 = vdwg.mxu0
    %v874 = vsel %vm523, %v785, 0
    %v877 = vsel %vm523, %v793, 0
    %879 = vmatpush.bf16.xpose.msra.mxu0 0
    %880 = vmatpush.bf16.xpose.msra.mxu0 0
    %881 = vmatpush.bf16.xpose.msra.mxu0 0
    %882 = vmatpush.bf16.xpose.msra.mxu0 0
    %883 = vmatpush.bf16.xpose.msra.mxu0 0
    %884 = vmatpush.bf16.xpose.msra.mxu0 0
    %885 = vmatpush.bf16.xpose.msra.mxu0 0
    %886 = vmatpush.bf16.xpose.msra.mxu0 %v877
    %887 = vmatmul.bf16.gmra.mxu0 %v874
    %v888 = vpop.f32.mrf.mxu0
    %v889 = vadd.f32 0.0, %v888
    %v890 = vpop.f32.mrf.mxu0
    %891 = vdwg.mxu0
    %v893 = vsel %vm523, %v786, 0
    %v896 = vsel %vm523, %v794, 0
    %898 = vmatpush.bf16.xpose.msra.mxu0 0
    %899 = vmatpush.bf16.xpose.msra.mxu0 0
    %900 = vmatpush.bf16.xpose.msra.mxu0 0
    %901 = vmatpush.bf16.xpose.msra.mxu0 0
    %902 = vmatpush.bf16.xpose.msra.mxu0 0
    %903 = vmatpush.bf16.xpose.msra.mxu0 0
    %904 = vmatpush.bf16.xpose.msra.mxu0 0
    %905 = vmatpush.bf16.xpose.msra.mxu0 %v896
    %906 = vmatmul.bf16.gmra.mxu0 %v893
    %v907 = vpop.f32.mrf.mxu0
    %v908 = vadd.f32 0.0, %v907
    %v909 = vpop.f32.mrf.mxu0
    %910 = vdwg.mxu0
    %v912 = vsel %vm523, %v787, 0
    %v915 = vsel %vm523, %v795, 0
    %917 = vmatpush.bf16.xpose.msra.mxu0 0
    %918 = vmatpush.bf16.xpose.msra.mxu0 0
    %919 = vmatpush.bf16.xpose.msra.mxu0 0
    %920 = vmatpush.bf16.xpose.msra.mxu0 0
    %921 = vmatpush.bf16.xpose.msra.mxu0 0
    %922 = vmatpush.bf16.xpose.msra.mxu0 0
    %923 = vmatpush.bf16.xpose.msra.mxu0 0
    %924 = vmatpush.bf16.xpose.msra.mxu0 %v915
    %925 = vmatmul.bf16.gmra.mxu0 %v912
    %v926 = vpop.f32.mrf.mxu0
    %v927 = vadd.f32 0.0, %v926
    %v928 = vpop.f32.mrf.mxu0
    %929 = vdwg.mxu0
    %v931 = vsel %vm523, %v788, 0
    %v934 = vsel %vm523, %v796, 0
    %936 = vmatpush.bf16.xpose.msra.mxu0 0
    %937 = vmatpush.bf16.xpose.msra.mxu0 0
    %938 = vmatpush.bf16.xpose.msra.mxu0 0
    %939 = vmatpush.bf16.xpose.msra.mxu0 0
    %940 = vmatpush.bf16.xpose.msra.mxu0 0
    %941 = vmatpush.bf16.xpose.msra.mxu0 0
    %942 = vmatpush.bf16.xpose.msra.mxu0 0
    %943 = vmatpush.bf16.xpose.msra.mxu0 %v934
    %944 = vmatmul.bf16.gmra.mxu0 %v931
    %v945 = vpop.f32.mrf.mxu0
    %v946 = vadd.f32 0.0, %v945
    %v947 = vpop.f32.mrf.mxu0
    %948 = vdwg.mxu0
    %949 = vxpose.xlu0.b32.start [1/16] %v813, 128
    %950 = vxpose.xlu0.b32.cont [2/16] %v832, 128
    %951 = vxpose.xlu0.b32.cont [3/16] %v851, 128
    %952 = vxpose.xlu0.b32.cont [4/16] %v870, 128
    %953 = vxpose.xlu0.b32.cont [5/16] 0.0, 128
    %954 = vxpose.xlu0.b32.cont [6/16] 0.0, 128
    %955 = vxpose.xlu0.b32.cont [7/16] 0.0, 128
    %956 = vxpose.xlu0.b32.cont [8/16] 0.0, 128
    %957 = vxpose.xlu0.b32.cont [9/16] 0.0, 128
    %958 = vxpose.xlu0.b32.cont [10/16] 0.0, 128
    %959 = vxpose.xlu0.b32.cont [11/16] 0.0, 128
    %960 = vxpose.xlu0.b32.cont [12/16] 0.0, 128
    %961 = vxpose.xlu0.b32.cont [13/16] 0.0, 128
    %962 = vxpose.xlu0.b32.cont [14/16] 0.0, 128
    %963 = vxpose.xlu0.b32.cont [15/16] 0.0, 128
    %964 = vxpose.xlu0.b32.end [16/16] 0.0, 128
    %v965 = vpop.trf.xlu0
    %v966 = vpop.trf.xlu0
    %v967 = vpop.trf.xlu0
    %v968 = vpop.trf.xlu0
    %v969 = vpop.trf.xlu0
    %v970 = vpop.trf.xlu0
    %v971 = vpop.trf.xlu0
    %v972 = vpop.trf.xlu0
    %v973 = vpop.trf.xlu0
    %v974 = vpop.trf.xlu0
    %v975 = vpop.trf.xlu0
    %v976 = vpop.trf.xlu0
    %v977 = vpop.trf.xlu0
    %v978 = vpop.trf.xlu0
    %v979 = vpop.trf.xlu0
    %v980 = vpop.trf.xlu0
    %981 = vxpose.xlu0.b32.start [1/16] %v889, 128
    %982 = vxpose.xlu0.b32.cont [2/16] %v908, 128
    %983 = vxpose.xlu0.b32.cont [3/16] %v927, 128
    %984 = vxpose.xlu0.b32.cont [4/16] %v946, 128
    %985 = vxpose.xlu0.b32.cont [5/16] 0.0, 128
    %986 = vxpose.xlu0.b32.cont [6/16] 0.0, 128
    %987 = vxpose.xlu0.b32.cont [7/16] 0.0, 128
    %988 = vxpose.xlu0.b32.cont [8/16] 0.0, 128
    %989 = vxpose.xlu0.b32.cont [9/16] 0.0, 128
    %990 = vxpose.xlu0.b32.cont [10/16] 0.0, 128
    %991 = vxpose.xlu0.b32.cont [11/16] 0.0, 128
    %992 = vxpose.xlu0.b32.cont [12/16] 0.0, 128
    %993 = vxpose.xlu0.b32.cont [13/16] 0.0, 128
    %994 = vxpose.xlu0.b32.cont [14/16] 0.0, 128
    %995 = vxpose.xlu0.b32.cont [15/16] 0.0, 128
    %996 = vxpose.xlu0.b32.end [16/16] 0.0, 128
    %v997 = vpop.trf.xlu0
    %v998 = vpop.trf.xlu0
    %v999 = vpop.trf.xlu0
    %v1000 = vpop.trf.xlu0
    %v1001 = vpop.trf.xlu0
    %v1002 = vpop.trf.xlu0
    %v1003 = vpop.trf.xlu0
    %v1004 = vpop.trf.xlu0
    %v1005 = vpop.trf.xlu0
    %v1006 = vpop.trf.xlu0
    %v1007 = vpop.trf.xlu0
    %v1008 = vpop.trf.xlu0
    %v1009 = vpop.trf.xlu0
    %v1010 = vpop.trf.xlu0
    %v1011 = vpop.trf.xlu0
    %v1012 = vpop.trf.xlu0
    %v1013 = vpack.c.bf16 %v997, %v965
    %v1014 = vld [vmem:[%s8] sm:$0xf]
    %v1015 = vld [vmem:[%s8 + $0x4] sm:$0xf]
    %v1016 = vld [vmem:[%s8 + $0x8] sm:$0xf]
    %v1017 = vld [vmem:[%s8 + $0xc] sm:$0xf]
    %v1022 = vunpack.c.l.b16 %v1014
    %v1023 = vunpack.c.l.b16 %v1015
    %v1024 = vunpack.c.l.b16 %v1016
    %v1025 = vunpack.c.l.b16 %v1017
    %v1026 = vpack.c.b16 %v1023, %v1022
    %v1027 = vpack.c.b16 %v1025, %v1024
    %v1031 = vsel %vm87, %v1013, 0
    %1033 = vmatpush.bf16.msra.mxu0 0
    %1034 = vmatpush.bf16.msra.mxu0 0
    %1035 = vmatpush.bf16.msra.mxu0 0
    %1036 = vmatpush.bf16.msra.mxu0 0
    %1037 = vmatpush.bf16.msra.mxu0 0
    %1038 = vmatpush.bf16.msra.mxu0 0
    %1039 = vmatpush.bf16.msra.mxu0 %v1027
    %1040 = vmatpush.bf16.msra.mxu0 %v1026
    %1041 = vmatmul.bf16.gmra.mxu0 %v1031
    %v1042 = vpop.f32.mrf.mxu0
    %v1043 = vadd.f32 0.0, %v1042
    %v1044 = vpop.f32.mrf.mxu0
    %v1045 = vadd.f32 0.0, %v1044
    %1046 = vdwg.mxu0
    %v1047 = vadd.f32 %v83, %v1043
    %v1048 = vadd.f32 %v84, %v1045
    %v1049 = vld [vmem:[%s9] sm:$0x1]
    %v1051 = vperm.slane %v1049, 0
    %v1053 = vadd.f32 %v1047, %v1051
    %v1054 = vadd.f32 %v1048, %v1051
    %v1055 = vld [vmem:[%s10] sm:$0x1]
    %v1056 = vld [vmem:[%s11] sm:$0x1]
    %v1057 = vsel %vm87, %v1053, 0.0
    %1058 = vadd.xlane.f32.xlu0 %v1057
    %v1059 = vpop.xlane.xlu0 %1058
    %v1060 = vsel %vm87, %v1054, 0.0
    %1061 = vadd.xlane.f32.xlu0 %v1060
    %v1062 = vpop.xlane.xlu0 %1061
    %v1063 = vmul.f32 %v1059, %v100
    %v1064 = vmul.f32 %v1062, %v100
    %v1065 = vsub.f32 %v1053, %v1063
    %v1066 = vsub.f32 %v1054, %v1064
    %v1067 = vmul.f32 %v1065, %v1065
    %v1068 = vmul.f32 %v1066, %v1066
    %v1069 = vsel %vm87, %v1067, 0.0
    %1070 = vadd.xlane.f32.xlu0 %v1069
    %v1071 = vpop.xlane.xlu0 %1070
    %v1072 = vsel %vm87, %v1068, 0.0
    %1073 = vadd.xlane.f32.xlu0 %v1072
    %v1074 = vpop.xlane.xlu0 %1073
    %v1075 = vmul.f32 %v1071, %v100
    %v1076 = vmul.f32 %v1074, %v100
    %v1077 = vadd.f32 %v1075, 1e-05
    %v1078 = vadd.f32 %v1076, 1e-05
    %v1079 = vrsqrt.pop %v1077
    %v1080 = vmul.f32 %v1079, %v1077
    %v1081 = vmul.f32 %v1080, %v1079
    %v1082 = vmul.f32 0.5, %v1081
    %v1083 = vsub.f32 1.5, %v1082
    %v1084 = vmul.f32 %v1079, %v1083
    %vm1085 = vweird.f32 %v1077
    %vm1086 = vweird.f32 %v1079
    %vm1087 = vmor %vm1085, %vm1086
    %v1088 = vsel %vm1087, %v1079, %v1084
    %v1089 = vrsqrt.pop %v1078
    %v1090 = vmul.f32 %v1089, %v1078
    %v1091 = vmul.f32 %v1090, %v1089
    %v1092 = vmul.f32 0.5, %v1091
    %v1093 = vsub.f32 1.5, %v1092
    %v1094 = vmul.f32 %v1089, %v1093
    %vm1095 = vweird.f32 %v1078
    %vm1096 = vweird.f32 %v1089
    %vm1097 = vmor %vm1095, %vm1096
    %v1098 = vsel %vm1097, %v1089, %v1094
    %v1099 = vmul.f32 %v1065, %v1088
    %v1100 = vmul.f32 %v1066, %v1098
    %v1102 = vperm.slane %v1055, 0
    %v1104 = vmul.f32 %v1099, %v1102
    %v1105 = vmul.f32 %v1100, %v1102
    %v1107 = vperm.slane %v1056, 0
    %v1109 = vadd.f32 %v1104, %v1107
    %v1110 = vadd.f32 %v1105, %v1107
    %v1111 = vpack.c.bf16 %v1110, %v1109
    %v1112 = vld [vmem:[%s12] sm:$0xf]
    %v1113 = vld [vmem:[%s12 + $0x4] sm:$0xf]
    %v1114 = vld [vmem:[%s12 + $0x8] sm:$0xf]
    %v1115 = vld [vmem:[%s12 + $0xc] sm:$0xf]
    %v1116 = vld [vmem:[%s13] sm:$0x1]
    %v1118 = vperm.slane %v1116, 0
    %v1124 = vunpack.c.l.b16 %v1112
    %v1125 = vunpack.c.l.b16 %v1113
    %v1126 = vunpack.c.l.b16 %v1114
    %v1127 = vunpack.c.l.b16 %v1115
    %v1128 = vpack.c.b16 %v1125, %v1124
    %v1129 = vpack.c.b16 %v1127, %v1126
    %v1133 = vsel %vm87, %v1111, 0
    %1135 = vmatpush.bf16.msra.mxu0 0
    %1136 = vmatpush.bf16.msra.mxu0 0
    %1137 = vmatpush.bf16.msra.mxu0 0
    %1138 = vmatpush.bf16.msra.mxu0 0
    %1139 = vmatpush.bf16.msra.mxu0 0
    %1140 = vmatpush.bf16.msra.mxu0 0
    %1141 = vmatpush.bf16.msra.mxu0 %v1129
    %1142 = vmatpush.bf16.msra.mxu0 %v1128
    %1143 = vmatmul.bf16.gmra.mxu0 %v1133
    %v1144 = vpop.f32.mrf.mxu0
    %v1145 = vadd.f32 %v1118, %v1144
    %v1146 = vpop.f32.mrf.mxu0
    %v1147 = vadd.f32 %v1118, %v1146
    %1148 = vdwg.mxu0
    %v1149 = vmul.f32 %v1145, 1.702
    %v1150 = vmul.f32 %v1147, 1.702
    %v1151 = vxor.u32 %v1149, 2147483648
    %v1152 = vxor.u32 %v1150, 2147483648
    %v1153 = vmul.f32 %v1151, 1.442695
    %v1154 = vpow.pop %v1153
    %v1155 = vmul.f32 %v1152, 1.442695
    %v1156 = vpow.pop %v1155
    %v1157 = vadd.f32 %v1154, 1.0
    %v1158 = vadd.f32 %v1156, 1.0
    %v1159 = vrcp.pop %v1157
    %v1160 = vmul.f32 %v1157, %v1159
    %v1161 = vsub.f32 1.0, %v1160
    %v1162 = vmul.f32 %v1159, %v1161
    %v1163 = vadd.f32 %v1159, %v1162
    %vm1164 = vweird.f32 %v1157
    %vm1165 = vweird.f32 %v1159
    %vm1166 = vmor %vm1164, %vm1165
    %v1167 = vsel %vm1166, %v1159, %v1163
    %v1168 = vand.u32 2147483647, %v1157
    %vm1169 = vcmp.eq.f32.partialorder %v1168, 8.507059e+37
    %v1170 = vand.u32 %v1157, 2147483648
    %v1171 = vor.u32 1.1754944e-38, %v1170
    %v1172 = vsel %vm1169, %v1171, %v1167
    %v1173 = vmul.f32 1.0, %v1172
    %v1174 = vrcp.pop %v1158
    %v1175 = vmul.f32 %v1158, %v1174
    %v1176 = vsub.f32 1.0, %v1175
    %v1177 = vmul.f32 %v1174, %v1176
    %v1178 = vadd.f32 %v1174, %v1177
    %vm1179 = vweird.f32 %v1158
    %vm1180 = vweird.f32 %v1174
    %vm1181 = vmor %vm1179, %vm1180
    %v1182 = vsel %vm1181, %v1174, %v1178
    %v1183 = vand.u32 2147483647, %v1158
    %vm1184 = vcmp.eq.f32.partialorder %v1183, 8.507059e+37
    %v1185 = vand.u32 %v1158, 2147483648
    %v1186 = vor.u32 1.1754944e-38, %v1185
    %v1187 = vsel %vm1184, %v1186, %v1182
    %v1188 = vmul.f32 1.0, %v1187
    %v1189 = vmul.f32 %v1145, %v1173
    %v1190 = vmul.f32 %v1147, %v1188
    %v1191 = vpack.c.bf16 %v1190, %v1189
    %v1192 = vld [vmem:[%s14] sm:$0xf]
    %v1193 = vld [vmem:[%s14 + $0x4] sm:$0xf]
    %v1194 = vld [vmem:[%s14 + $0x8] sm:$0xf]
    %v1195 = vld [vmem:[%s14 + $0xc] sm:$0xf]
    %v1196 = vld [vmem:[%s14 + $0x10] sm:$0xf]
    %v1197 = vld [vmem:[%s14 + $0x14] sm:$0xf]
    %v1198 = vld [vmem:[%s14 + $0x18] sm:$0xf]
    %v1199 = vld [vmem:[%s14 + $0x1c] sm:$0xf]
    %v1200 = vld [vmem:[%s14 + $0x20] sm:$0xf]
    %v1201 = vld [vmem:[%s14 + $0x24] sm:$0xf]
    %v1202 = vld [vmem:[%s14 + $0x28] sm:$0xf]
    %v1203 = vld [vmem:[%s14 + $0x2c] sm:$0xf]
    %v1204 = vld [vmem:[%s14 + $0x30] sm:$0xf]
    %v1205 = vld [vmem:[%s14 + $0x34] sm:$0xf]
    %v1206 = vld [vmem:[%s14 + $0x38] sm:$0xf]
    %v1207 = vld [vmem:[%s14 + $0x3c] sm:$0xf]
    %v1224 = vunpack.c.l.b16 %v1192
    %v1225 = vunpack.c.l.b16 %v1193
    %v1226 = vunpack.c.l.b16 %v1194
    %v1227 = vunpack.c.l.b16 %v1195
    %v1228 = vunpack.c.l.b16 %v1196
    %v1229 = vunpack.c.l.b16 %v1197
    %v1230 = vunpack.c.l.b16 %v1198
    %v1231 = vunpack.c.l.b16 %v1199
    %v1232 = vunpack.c.l.b16 %v1200
    %v1233 = vunpack.c.l.b16 %v1201
    %v1234 = vunpack.c.l.b16 %v1202
    %v1235 = vunpack.c.l.b16 %v1203
    %v1236 = vunpack.c.l.b16 %v1204
    %v1237 = vunpack.c.l.b16 %v1205
    %v1238 = vunpack.c.l.b16 %v1206
    %v1239 = vunpack.c.l.b16 %v1207
    %v1240 = vpack.c.b16 %v1225, %v1224
    %v1241 = vpack.c.b16 %v1227, %v1226
    %v1242 = vpack.c.b16 %v1229, %v1228
    %v1243 = vpack.c.b16 %v1231, %v1230
    %v1244 = vpack.c.b16 %v1233, %v1232
    %v1245 = vpack.c.b16 %v1235, %v1234
    %v1246 = vpack.c.b16 %v1237, %v1236
    %v1247 = vpack.c.b16 %v1239, %v1238
    %1256 = vmatpush.bf16.msra.mxu0 %v1247
    %1257 = vmatpush.bf16.msra.mxu0 %v1246
    %1258 = vmatpush.bf16.msra.mxu0 %v1245
    %1259 = vmatpush.bf16.msra.mxu0 %v1244
    %1260 = vmatpush.bf16.msra.mxu0 %v1243
    %1261 = vmatpush.bf16.msra.mxu0 %v1242
    %1262 = vmatpush.bf16.msra.mxu0 %v1241
    %1263 = vmatpush.bf16.msra.mxu0 %v1240
    %1264 = vmatmul.bf16.gmra.mxu0 %v1191
    %v1265 = vpop.f32.mrf.mxu0
    %v1266 = vadd.f32 0.0, %v1265
    %v1267 = vpop.f32.mrf.mxu0
    %v1268 = vadd.f32 0.0, %v1267
    %1269 = vdwg.mxu0
    %v1270 = vadd.f32 %v1053, %v1266
    %v1271 = vadd.f32 %v1054, %v1268
    %v1272 = vld [vmem:[%s15] sm:$0x1]
    %v1274 = vperm.slane %v1272, 0
    %v1276 = vadd.f32 %v1270, %v1274
    %v1277 = vadd.f32 %v1271, %v1274
    %s1278 = scalar_lea.vmem %s4, 1
    %v1279 = vld [vmem:[%s1278] sm:$0x1]
    %s1280 = scalar_lea.vmem %s5, 1
    %v1281 = vld [vmem:[%s1280] sm:$0x1]
    %v1282 = vsel %vm87, %v1276, 0.0
    %1283 = vadd.xlane.f32.xlu0 %v1282
    %v1284 = vpop.xlane.xlu0 %1283
    %v1285 = vsel %vm87, %v1277, 0.0
    %1286 = vadd.xlane.f32.xlu0 %v1285
    %v1287 = vpop.xlane.xlu0 %1286
    %v1288 = vmul.f32 %v1284, %v100
    %v1289 = vmul.f32 %v1287, %v100
    %v1290 = vsub.f32 %v1276, %v1288
    %v1291 = vsub.f32 %v1277, %v1289
    %v1292 = vmul.f32 %v1290, %v1290
    %v1293 = vmul.f32 %v1291, %v1291
    %v1294 = vsel %vm87, %v1292, 0.0
    %1295 = vadd.xlane.f32.xlu0 %v1294
    %v1296 = vpop.xlane.xlu0 %1295
    %v1297 = vsel %vm87, %v1293, 0.0
    %1298 = vadd.xlane.f32.xlu0 %v1297
    %v1299 = vpop.xlane.xlu0 %1298
    %v1300 = vmul.f32 %v1296, %v100
    %v1301 = vmul.f32 %v1299, %v100
    %v1302 = vadd.f32 %v1300, 1e-05
    %v1303 = vadd.f32 %v1301, 1e-05
    %v1304 = vrsqrt.pop %v1302
    %v1305 = vmul.f32 %v1304, %v1302
    %v1306 = vmul.f32 %v1305, %v1304
    %v1307 = vmul.f32 0.5, %v1306
    %v1308 = vsub.f32 1.5, %v1307
    %v1309 = vmul.f32 %v1304, %v1308
    %vm1310 = vweird.f32 %v1302
    %vm1311 = vweird.f32 %v1304
    %vm1312 = vmor %vm1310, %vm1311
    %v1313 = vsel %vm1312, %v1304, %v1309
    %v1314 = vrsqrt.pop %v1303
    %v1315 = vmul.f32 %v1314, %v1303
    %v1316 = vmul.f32 %v1315, %v1314
    %v1317 = vmul.f32 0.5, %v1316
    %v1318 = vsub.f32 1.5, %v1317
    %v1319 = vmul.f32 %v1314, %v1318
    %vm1320 = vweird.f32 %v1303
    %vm1321 = vweird.f32 %v1314
    %vm1322 = vmor %vm1320, %vm1321
    %v1323 = vsel %vm1322, %v1314, %v1319
    %v1324 = vmul.f32 %v1290, %v1313
    %v1325 = vmul.f32 %v1291, %v1323
    %v1327 = vperm.slane %v1279, 0
    %v1329 = vmul.f32 %v1324, %v1327
    %v1330 = vmul.f32 %v1325, %v1327
    %v1332 = vperm.slane %v1281, 0
    %v1334 = vadd.f32 %v1329, %v1332
    %v1335 = vadd.f32 %v1330, %v1332
    %v1336 = vpack.c.bf16 %v1335, %v1334
    %s1337 = scalar_lea.vmem %s6, 16
    %v1338 = vld [vmem:[%s1337] sm:$0xf]
    %v1339 = vld [vmem:[%s1337 + $0x4] sm:$0xf]
    %v1340 = vld [vmem:[%s1337 + $0x8] sm:$0xf]
    %v1341 = vld [vmem:[%s1337 + $0xc] sm:$0xf]
    %s1342 = scalar_lea.vmem %s7, 1
    %v1343 = vld [vmem:[%s1342] sm:$0x1]
    %v1345 = vperm.slane %v1343, 0
    %v1351 = vunpack.c.l.b16 %v1338
    %v1352 = vunpack.c.l.b16 %v1339
    %v1353 = vunpack.c.l.b16 %v1340
    %v1354 = vunpack.c.l.b16 %v1341
    %v1355 = vpack.c.b16 %v1352, %v1351
    %v1356 = vpack.c.b16 %v1354, %v1353
    %v1360 = vsel %vm87, %v1336, 0
    %1362 = vmatpush.bf16.msra.mxu0 0
    %1363 = vmatpush.bf16.msra.mxu0 0
    %1364 = vmatpush.bf16.msra.mxu0 0
    %1365 = vmatpush.bf16.msra.mxu0 0
    %1366 = vmatpush.bf16.msra.mxu0 0
    %1367 = vmatpush.bf16.msra.mxu0 0
    %1368 = vmatpush.bf16.msra.mxu0 %v1356
    %1369 = vmatpush.bf16.msra.mxu0 %v1355
    %1370 = vmatmul.bf16.gmra.mxu0 %v1360
    %v1371 = vpop.f32.mrf.mxu0
    %v1372 = vadd.f32 %v1345, %v1371
    %v1373 = vpop.f32.mrf.mxu0
    %v1374 = vadd.f32 %v1345, %v1373
    %1375 = vdwg.mxu0
    %1376 = vxpose.xlu0.b32.start [1/16] %v1372, 128
    %1377 = vxpose.xlu0.b32.cont [2/16] 0.0, 128
    %1378 = vxpose.xlu0.b32.cont [3/16] 0.0, 128
    %1379 = vxpose.xlu0.b32.cont [4/16] 0.0, 128
    %1380 = vxpose.xlu0.b32.cont [5/16] 0.0, 128
    %1381 = vxpose.xlu0.b32.cont [6/16] 0.0, 128
    %1382 = vxpose.xlu0.b32.cont [7/16] 0.0, 128
    %1383 = vxpose.xlu0.b32.cont [8/16] 0.0, 128
    %1384 = vxpose.xlu0.b32.cont [9/16] 0.0, 128
    %1385 = vxpose.xlu0.b32.cont [10/16] 0.0, 128
    %1386 = vxpose.xlu0.b32.cont [11/16] 0.0, 128
    %1387 = vxpose.xlu0.b32.cont [12/16] 0.0, 128
    %1388 = vxpose.xlu0.b32.cont [13/16] 0.0, 128
    %1389 = vxpose.xlu0.b32.cont [14/16] 0.0, 128
    %1390 = vxpose.xlu0.b32.cont [15/16] 0.0, 128
    %1391 = vxpose.xlu0.b32.end [16/16] 0.0, 128
    %v1392 = vpop.trf.xlu0
    %v1393 = vpop.trf.xlu0
    %v1394 = vpop.trf.xlu0
    %v1395 = vpop.trf.xlu0
    %v1396 = vpop.trf.xlu0
    %v1397 = vpop.trf.xlu0
    %v1398 = vpop.trf.xlu0
    %v1399 = vpop.trf.xlu0
    %v1400 = vpop.trf.xlu0
    %v1401 = vpop.trf.xlu0
    %v1402 = vpop.trf.xlu0
    %v1403 = vpop.trf.xlu0
    %v1404 = vpop.trf.xlu0
    %v1405 = vpop.trf.xlu0
    %v1406 = vpop.trf.xlu0
    %v1407 = vpop.trf.xlu0
    %1408 = vxpose.xlu0.b32.start [1/16] %v1374, 128
    %1409 = vxpose.xlu0.b32.cont [2/16] 0.0, 128
    %1410 = vxpose.xlu0.b32.cont [3/16] 0.0, 128
    %1411 = vxpose.xlu0.b32.cont [4/16] 0.0, 128
    %1412 = vxpose.xlu0.b32.cont [5/16] 0.0, 128
    %1413 = vxpose.xlu0.b32.cont [6/16] 0.0, 128
    %1414 = vxpose.xlu0.b32.cont [7/16] 0.0, 128
    %1415 = vxpose.xlu0.b32.cont [8/16] 0.0, 128
    %1416 = vxpose.xlu0.b32.cont [9/16] 0.0, 128
    %1417 = vxpose.xlu0.b32.cont [10/16] 0.0, 128
    %1418 = vxpose.xlu0.b32.cont [11/16] 0.0, 128
    %1419 = vxpose.xlu0.b32.cont [12/16] 0.0, 128
    %1420 = vxpose.xlu0.b32.cont [13/16] 0.0, 128
    %1421 = vxpose.xlu0.b32.cont [14/16] 0.0, 128
    %1422 = vxpose.xlu0.b32.cont [15/16] 0.0, 128
    %1423 = vxpose.xlu0.b32.end [16/16] 0.0, 128
    %v1424 = vpop.trf.xlu0
    %v1425 = vpop.trf.xlu0
    %v1426 = vpop.trf.xlu0
    %v1427 = vpop.trf.xlu0
    %v1428 = vpop.trf.xlu0
    %v1429 = vpop.trf.xlu0
    %v1430 = vpop.trf.xlu0
    %v1431 = vpop.trf.xlu0
    %v1432 = vpop.trf.xlu0
    %v1433 = vpop.trf.xlu0
    %v1434 = vpop.trf.xlu0
    %v1435 = vpop.trf.xlu0
    %v1436 = vpop.trf.xlu0
    %v1437 = vpop.trf.xlu0
    %v1438 = vpop.trf.xlu0
    %v1439 = vpop.trf.xlu0
    %1440 = vxpose.xlu0.b32.start [1/16] %v1392, 128
    %1441 = vxpose.xlu0.b32.cont [2/16] 0.0, 128
    %1442 = vxpose.xlu0.b32.cont [3/16] 0.0, 128
    %1443 = vxpose.xlu0.b32.cont [4/16] 0.0, 128
    %1444 = vxpose.xlu0.b32.cont [5/16] 0.0, 128
    %1445 = vxpose.xlu0.b32.cont [6/16] 0.0, 128
    %1446 = vxpose.xlu0.b32.cont [7/16] 0.0, 128
    %1447 = vxpose.xlu0.b32.cont [8/16] 0.0, 128
    %1448 = vxpose.xlu0.b32.cont [9/16] 0.0, 128
    %1449 = vxpose.xlu0.b32.cont [10/16] 0.0, 128
    %1450 = vxpose.xlu0.b32.cont [11/16] 0.0, 128
    %1451 = vxpose.xlu0.b32.cont [12/16] 0.0, 128
    %1452 = vxpose.xlu0.b32.cont [13/16] 0.0, 128
    %1453 = vxpose.xlu0.b32.cont [14/16] 0.0, 128
    %1454 = vxpose.xlu0.b32.cont [15/16] 0.0, 128
    %1455 = vxpose.xlu0.b32.end [16/16] 0.0, 128
    %v1456 = vpop.trf.xlu0
    %v1457 = vpop.trf.xlu0
    %v1458 = vpop.trf.xlu0
    %v1459 = vpop.trf.xlu0
    %v1460 = vpop.trf.xlu0
    %v1461 = vpop.trf.xlu0
    %v1462 = vpop.trf.xlu0
    %v1463 = vpop.trf.xlu0
    %v1464 = vpop.trf.xlu0
    %v1465 = vpop.trf.xlu0
    %v1466 = vpop.trf.xlu0
    %v1467 = vpop.trf.xlu0
    %v1468 = vpop.trf.xlu0
    %v1469 = vpop.trf.xlu0
    %v1470 = vpop.trf.xlu0
    %v1471 = vpop.trf.xlu0
    %1472 = vxpose.xlu0.b32.start [1/16] %v1393, 128
    %1473 = vxpose.xlu0.b32.cont [2/16] 0.0, 128
    %1474 = vxpose.xlu0.b32.cont [3/16] 0.0, 128
    %1475 = vxpose.xlu0.b32.cont [4/16] 0.0, 128
    %1476 = vxpose.xlu0.b32.cont [5/16] 0.0, 128
    %1477 = vxpose.xlu0.b32.cont [6/16] 0.0, 128
    %1478 = vxpose.xlu0.b32.cont [7/16] 0.0, 128
    %1479 = vxpose.xlu0.b32.cont [8/16] 0.0, 128
    %1480 = vxpose.xlu0.b32.cont [9/16] 0.0, 128
    %1481 = vxpose.xlu0.b32.cont [10/16] 0.0, 128
    %1482 = vxpose.xlu0.b32.cont [11/16] 0.0, 128
    %1483 = vxpose.xlu0.b32.cont [12/16] 0.0, 128
    %1484 = vxpose.xlu0.b32.cont [13/16] 0.0, 128
    %1485 = vxpose.xlu0.b32.cont [14/16] 0.0, 128
    %1486 = vxpose.xlu0.b32.cont [15/16] 0.0, 128
    %1487 = vxpose.xlu0.b32.end [16/16] 0.0, 128
    %v1488 = vpop.trf.xlu0
    %v1489 = vpop.trf.xlu0
    %v1490 = vpop.trf.xlu0
    %v1491 = vpop.trf.xlu0
    %v1492 = vpop.trf.xlu0
    %v1493 = vpop.trf.xlu0
    %v1494 = vpop.trf.xlu0
    %v1495 = vpop.trf.xlu0
    %v1496 = vpop.trf.xlu0
    %v1497 = vpop.trf.xlu0
    %v1498 = vpop.trf.xlu0
    %v1499 = vpop.trf.xlu0
    %v1500 = vpop.trf.xlu0
    %v1501 = vpop.trf.xlu0
    %v1502 = vpop.trf.xlu0
    %v1503 = vpop.trf.xlu0
    %1504 = vxpose.xlu0.b32.start [1/16] %v1394, 128
    %1505 = vxpose.xlu0.b32.cont [2/16] 0.0, 128
    %1506 = vxpose.xlu0.b32.cont [3/16] 0.0, 128
    %1507 = vxpose.xlu0.b32.cont [4/16] 0.0, 128
    %1508 = vxpose.xlu0.b32.cont [5/16] 0.0, 128
    %1509 = vxpose.xlu0.b32.cont [6/16] 0.0, 128
    %1510 = vxpose.xlu0.b32.cont [7/16] 0.0, 128
    %1511 = vxpose.xlu0.b32.cont [8/16] 0.0, 128
    %1512 = vxpose.xlu0.b32.cont [9/16] 0.0, 128
    %1513 = vxpose.xlu0.b32.cont [10/16] 0.0, 128
    %1514 = vxpose.xlu0.b32.cont [11/16] 0.0, 128
    %1515 = vxpose.xlu0.b32.cont [12/16] 0.0, 128
    %1516 = vxpose.xlu0.b32.cont [13/16] 0.0, 128
    %1517 = vxpose.xlu0.b32.cont [14/16] 0.0, 128
    %1518 = vxpose.xlu0.b32.cont [15/16] 0.0, 128
    %1519 = vxpose.xlu0.b32.end [16/16] 0.0, 128
    %v1520 = vpop.trf.xlu0
    %v1521 = vpop.trf.xlu0
    %v1522 = vpop.trf.xlu0
    %v1523 = vpop.trf.xlu0
    %v1524 = vpop.trf.xlu0
    %v1525 = vpop.trf.xlu0
    %v1526 = vpop.trf.xlu0
    %v1527 = vpop.trf.xlu0
    %v1528 = vpop.trf.xlu0
    %v1529 = vpop.trf.xlu0
    %v1530 = vpop.trf.xlu0
    %v1531 = vpop.trf.xlu0
    %v1532 = vpop.trf.xlu0
    %v1533 = vpop.trf.xlu0
    %v1534 = vpop.trf.xlu0
    %v1535 = vpop.trf.xlu0
    %1536 = vxpose.xlu0.b32.start [1/16] %v1395, 128
    %1537 = vxpose.xlu0.b32.cont [2/16] 0.0, 128
    %1538 = vxpose.xlu0.b32.cont [3/16] 0.0, 128
    %1539 = vxpose.xlu0.b32.cont [4/16] 0.0, 128
    %1540 = vxpose.xlu0.b32.cont [5/16] 0.0, 128
    %1541 = vxpose.xlu0.b32.cont [6/16] 0.0, 128
    %1542 = vxpose.xlu0.b32.cont [7/16] 0.0, 128
    %1543 = vxpose.xlu0.b32.cont [8/16] 0.0, 128
    %1544 = vxpose.xlu0.b32.cont [9/16] 0.0, 128
    %1545 = vxpose.xlu0.b32.cont [10/16] 0.0, 128
    %1546 = vxpose.xlu0.b32.cont [11/16] 0.0, 128
    %1547 = vxpose.xlu0.b32.cont [12/16] 0.0, 128
    %1548 = vxpose.xlu0.b32.cont [13/16] 0.0, 128
    %1549 = vxpose.xlu0.b32.cont [14/16] 0.0, 128
    %1550 = vxpose.xlu0.b32.cont [15/16] 0.0, 128
    %1551 = vxpose.xlu0.b32.end [16/16] 0.0, 128
    %v1552 = vpop.trf.xlu0
    %v1553 = vpop.trf.xlu0
    %v1554 = vpop.trf.xlu0
    %v1555 = vpop.trf.xlu0
    %v1556 = vpop.trf.xlu0
    %v1557 = vpop.trf.xlu0
    %v1558 = vpop.trf.xlu0
    %v1559 = vpop.trf.xlu0
    %v1560 = vpop.trf.xlu0
    %v1561 = vpop.trf.xlu0
    %v1562 = vpop.trf.xlu0
    %v1563 = vpop.trf.xlu0
    %v1564 = vpop.trf.xlu0
    %v1565 = vpop.trf.xlu0
    %v1566 = vpop.trf.xlu0
    %v1567 = vpop.trf.xlu0
    %1568 = vxpose.xlu0.b32.start [1/16] %v1424, 128
    %1569 = vxpose.xlu0.b32.cont [2/16] 0.0, 128
    %1570 = vxpose.xlu0.b32.cont [3/16] 0.0, 128
    %1571 = vxpose.xlu0.b32.cont [4/16] 0.0, 128
    %1572 = vxpose.xlu0.b32.cont [5/16] 0.0, 128
    %1573 = vxpose.xlu0.b32.cont [6/16] 0.0, 128
    %1574 = vxpose.xlu0.b32.cont [7/16] 0.0, 128
    %1575 = vxpose.xlu0.b32.cont [8/16] 0.0, 128
    %1576 = vxpose.xlu0.b32.cont [9/16] 0.0, 128
    %1577 = vxpose.xlu0.b32.cont [10/16] 0.0, 128
    %1578 = vxpose.xlu0.b32.cont [11/16] 0.0, 128
    %1579 = vxpose.xlu0.b32.cont [12/16] 0.0, 128
    %1580 = vxpose.xlu0.b32.cont [13/16] 0.0, 128
    %1581 = vxpose.xlu0.b32.cont [14/16] 0.0, 128
    %1582 = vxpose.xlu0.b32.cont [15/16] 0.0, 128
    %1583 = vxpose.xlu0.b32.end [16/16] 0.0, 128
    %v1584 = vpop.trf.xlu0
    %v1585 = vpop.trf.xlu0
    %v1586 = vpop.trf.xlu0
    %v1587 = vpop.trf.xlu0
    %v1588 = vpop.trf.xlu0
    %v1589 = vpop.trf.xlu0
    %v1590 = vpop.trf.xlu0
    %v1591 = vpop.trf.xlu0
    %v1592 = vpop.trf.xlu0
    %v1593 = vpop.trf.xlu0
    %v1594 = vpop.trf.xlu0
    %v1595 = vpop.trf.xlu0
    %v1596 = vpop.trf.xlu0
    %v1597 = vpop.trf.xlu0
    %v1598 = vpop.trf.xlu0
    %v1599 = vpop.trf.xlu0
    %1600 = vxpose.xlu0.b32.start [1/16] %v1425, 128
    %1601 = vxpose.xlu0.b32.cont [2/16] 0.0, 128
    %1602 = vxpose.xlu0.b32.cont [3/16] 0.0, 128
    %1603 = vxpose.xlu0.b32.cont [4/16] 0.0, 128
    %1604 = vxpose.xlu0.b32.cont [5/16] 0.0, 128
    %1605 = vxpose.xlu0.b32.cont [6/16] 0.0, 128
    %1606 = vxpose.xlu0.b32.cont [7/16] 0.0, 128
    %1607 = vxpose.xlu0.b32.cont [8/16] 0.0, 128
    %1608 = vxpose.xlu0.b32.cont [9/16] 0.0, 128
    %1609 = vxpose.xlu0.b32.cont [10/16] 0.0, 128
    %1610 = vxpose.xlu0.b32.cont [11/16] 0.0, 128
    %1611 = vxpose.xlu0.b32.cont [12/16] 0.0, 128
    %1612 = vxpose.xlu0.b32.cont [13/16] 0.0, 128
    %1613 = vxpose.xlu0.b32.cont [14/16] 0.0, 128
    %1614 = vxpose.xlu0.b32.cont [15/16] 0.0, 128
    %1615 = vxpose.xlu0.b32.end [16/16] 0.0, 128
    %v1616 = vpop.trf.xlu0
    %v1617 = vpop.trf.xlu0
    %v1618 = vpop.trf.xlu0
    %v1619 = vpop.trf.xlu0
    %v1620 = vpop.trf.xlu0
    %v1621 = vpop.trf.xlu0
    %v1622 = vpop.trf.xlu0
    %v1623 = vpop.trf.xlu0
    %v1624 = vpop.trf.xlu0
    %v1625 = vpop.trf.xlu0
    %v1626 = vpop.trf.xlu0
    %v1627 = vpop.trf.xlu0
    %v1628 = vpop.trf.xlu0
    %v1629 = vpop.trf.xlu0
    %v1630 = vpop.trf.xlu0
    %v1631 = vpop.trf.xlu0
    %1632 = vxpose.xlu0.b32.start [1/16] %v1426, 128
    %1633 = vxpose.xlu0.b32.cont [2/16] 0.0, 128
    %1634 = vxpose.xlu0.b32.cont [3/16] 0.0, 128
    %1635 = vxpose.xlu0.b32.cont [4/16] 0.0, 128
    %1636 = vxpose.xlu0.b32.cont [5/16] 0.0, 128
    %1637 = vxpose.xlu0.b32.cont [6/16] 0.0, 128
    %1638 = vxpose.xlu0.b32.cont [7/16] 0.0, 128
    %1639 = vxpose.xlu0.b32.cont [8/16] 0.0, 128
    %1640 = vxpose.xlu0.b32.cont [9/16] 0.0, 128
    %1641 = vxpose.xlu0.b32.cont [10/16] 0.0, 128
    %1642 = vxpose.xlu0.b32.cont [11/16] 0.0, 128
    %1643 = vxpose.xlu0.b32.cont [12/16] 0.0, 128
    %1644 = vxpose.xlu0.b32.cont [13/16] 0.0, 128
    %1645 = vxpose.xlu0.b32.cont [14/16] 0.0, 128
    %1646 = vxpose.xlu0.b32.cont [15/16] 0.0, 128
    %1647 = vxpose.xlu0.b32.end [16/16] 0.0, 128
    %v1648 = vpop.trf.xlu0
    %v1649 = vpop.trf.xlu0
    %v1650 = vpop.trf.xlu0
    %v1651 = vpop.trf.xlu0
    %v1652 = vpop.trf.xlu0
    %v1653 = vpop.trf.xlu0
    %v1654 = vpop.trf.xlu0
    %v1655 = vpop.trf.xlu0
    %v1656 = vpop.trf.xlu0
    %v1657 = vpop.trf.xlu0
    %v1658 = vpop.trf.xlu0
    %v1659 = vpop.trf.xlu0
    %v1660 = vpop.trf.xlu0
    %v1661 = vpop.trf.xlu0
    %v1662 = vpop.trf.xlu0
    %v1663 = vpop.trf.xlu0
    %1664 = vxpose.xlu0.b32.start [1/16] %v1427, 128
    %1665 = vxpose.xlu0.b32.cont [2/16] 0.0, 128
    %1666 = vxpose.xlu0.b32.cont [3/16] 0.0, 128
    %1667 = vxpose.xlu0.b32.cont [4/16] 0.0, 128
    %1668 = vxpose.xlu0.b32.cont [5/16] 0.0, 128
    %1669 = vxpose.xlu0.b32.cont [6/16] 0.0, 128
    %1670 = vxpose.xlu0.b32.cont [7/16] 0.0, 128
    %1671 = vxpose.xlu0.b32.cont [8/16] 0.0, 128
    %1672 = vxpose.xlu0.b32.cont [9/16] 0.0, 128
    %1673 = vxpose.xlu0.b32.cont [10/16] 0.0, 128
    %1674 = vxpose.xlu0.b32.cont [11/16] 0.0, 128
    %1675 = vxpose.xlu0.b32.cont [12/16] 0.0, 128
    %1676 = vxpose.xlu0.b32.cont [13/16] 0.0, 128
    %1677 = vxpose.xlu0.b32.cont [14/16] 0.0, 128
    %1678 = vxpose.xlu0.b32.cont [15/16] 0.0, 128
    %1679 = vxpose.xlu0.b32.end [16/16] 0.0, 128
    %v1680 = vpop.trf.xlu0
    %v1681 = vpop.trf.xlu0
    %v1682 = vpop.trf.xlu0
    %v1683 = vpop.trf.xlu0
    %v1684 = vpop.trf.xlu0
    %v1685 = vpop.trf.xlu0
    %v1686 = vpop.trf.xlu0
    %v1687 = vpop.trf.xlu0
    %v1688 = vpop.trf.xlu0
    %v1689 = vpop.trf.xlu0
    %v1690 = vpop.trf.xlu0
    %v1691 = vpop.trf.xlu0
    %v1692 = vpop.trf.xlu0
    %v1693 = vpop.trf.xlu0
    %v1694 = vpop.trf.xlu0
    %v1695 = vpop.trf.xlu0
    %v1696 = vpack.c.bf16 %v1456, %v1456
    %v1697 = vpack.c.bf16 %v1488, %v1488
    %v1698 = vpack.c.bf16 %v1520, %v1520
    %v1699 = vpack.c.bf16 %v1552, %v1552
    %v1700 = vpack.c.bf16 %v1584, %v1584
    %v1701 = vpack.c.bf16 %v1616, %v1616
    %v1702 = vpack.c.bf16 %v1648, %v1648
    %v1703 = vpack.c.bf16 %v1680, %v1680
    %v1704 = vpack.c.bf16 %v1396, %v1396
    %v1705 = vpack.c.bf16 %v1397, %v1397
    %v1706 = vpack.c.bf16 %v1398, %v1398
    %v1707 = vpack.c.bf16 %v1399, %v1399
    %v1708 = vpack.c.bf16 %v1428, %v1428
    %v1709 = vpack.c.bf16 %v1429, %v1429
    %v1710 = vpack.c.bf16 %v1430, %v1430
    %v1711 = vpack.c.bf16 %v1431, %v1431
    %v1713 = vsel %vm523, %v1696, 0
    %v1716 = vsel %vm527, %v1704, 0
    %1718 = vmatpush.bf16.msra.mxu0 0
    %1719 = vmatpush.bf16.msra.mxu0 0
    %1720 = vmatpush.bf16.msra.mxu0 0
    %1721 = vmatpush.bf16.msra.mxu0 0
    %1722 = vmatpush.bf16.msra.mxu0 0
    %1723 = vmatpush.bf16.msra.mxu0 0
    %1724 = vmatpush.bf16.msra.mxu0 0
    %1725 = vmatpush.bf16.msra.mxu0 %v1716
    %1726 = vmatmul.bf16.gmra.mxu0 %v1713
    %v1727 = vpop.f32.mrf.mxu0
    %v1728 = vadd.f32 0.0, %v1727
    %v1729 = vpop.f32.mrf.mxu0
    %1730 = vdwg.mxu0
    %v1732 = vsel %vm523, %v1697, 0
    %v1735 = vsel %vm527, %v1705, 0
    %1737 = vmatpush.bf16.msra.mxu0 0
    %1738 = vmatpush.bf16.msra.mxu0 0
    %1739 = vmatpush.bf16.msra.mxu0 0
    %1740 = vmatpush.bf16.msra.mxu0 0
    %1741 = vmatpush.bf16.msra.mxu0 0
    %1742 = vmatpush.bf16.msra.mxu0 0
    %1743 = vmatpush.bf16.msra.mxu0 0
    %1744 = vmatpush.bf16.msra.mxu0 %v1735
    %1745 = vmatmul.bf16.gmra.mxu0 %v1732
    %v1746 = vpop.f32.mrf.mxu0
    %v1747 = vadd.f32 0.0, %v1746
    %v1748 = vpop.f32.mrf.mxu0
    %1749 = vdwg.mxu0
    %v1751 = vsel %vm523, %v1698, 0
    %v1754 = vsel %vm527, %v1706, 0
    %1756 = vmatpush.bf16.msra.mxu0 0
    %1757 = vmatpush.bf16.msra.mxu0 0
    %1758 = vmatpush.bf16.msra.mxu0 0
    %1759 = vmatpush.bf16.msra.mxu0 0
    %1760 = vmatpush.bf16.msra.mxu0 0
    %1761 = vmatpush.bf16.msra.mxu0 0
    %1762 = vmatpush.bf16.msra.mxu0 0
    %1763 = vmatpush.bf16.msra.mxu0 %v1754
    %1764 = vmatmul.bf16.gmra.mxu0 %v1751
    %v1765 = vpop.f32.mrf.mxu0
    %v1766 = vadd.f32 0.0, %v1765
    %v1767 = vpop.f32.mrf.mxu0
    %1768 = vdwg.mxu0
    %v1770 = vsel %vm523, %v1699, 0
    %v1773 = vsel %vm527, %v1707, 0
    %1775 = vmatpush.bf16.msra.mxu0 0
    %1776 = vmatpush.bf16.msra.mxu0 0
    %1777 = vmatpush.bf16.msra.mxu0 0
    %1778 = vmatpush.bf16.msra.mxu0 0
    %1779 = vmatpush.bf16.msra.mxu0 0
    %1780 = vmatpush.bf16.msra.mxu0 0
    %1781 = vmatpush.bf16.msra.mxu0 0
    %1782 = vmatpush.bf16.msra.mxu0 %v1773
    %1783 = vmatmul.bf16.gmra.mxu0 %v1770
    %v1784 = vpop.f32.mrf.mxu0
    %v1785 = vadd.f32 0.0, %v1784
    %v1786 = vpop.f32.mrf.mxu0
    %1787 = vdwg.mxu0
    %v1789 = vsel %vm523, %v1700, 0
    %v1792 = vsel %vm527, %v1708, 0
    %1794 = vmatpush.bf16.msra.mxu0 0
    %1795 = vmatpush.bf16.msra.mxu0 0
    %1796 = vmatpush.bf16.msra.mxu0 0
    %1797 = vmatpush.bf16.msra.mxu0 0
    %1798 = vmatpush.bf16.msra.mxu0 0
    %1799 = vmatpush.bf16.msra.mxu0 0
    %1800 = vmatpush.bf16.msra.mxu0 0
    %1801 = vmatpush.bf16.msra.mxu0 %v1792
    %1802 = vmatmul.bf16.gmra.mxu0 %v1789
    %v1803 = vpop.f32.mrf.mxu0
    %v1804 = vadd.f32 0.0, %v1803
    %v1805 = vpop.f32.mrf.mxu0
    %1806 = vdwg.mxu0
    %v1808 = vsel %vm523, %v1701, 0
    %v1811 = vsel %vm527, %v1709, 0
    %1813 = vmatpush.bf16.msra.mxu0 0
    %1814 = vmatpush.bf16.msra.mxu0 0
    %1815 = vmatpush.bf16.msra.mxu0 0
    %1816 = vmatpush.bf16.msra.mxu0 0
    %1817 = vmatpush.bf16.msra.mxu0 0
    %1818 = vmatpush.bf16.msra.mxu0 0
    %1819 = vmatpush.bf16.msra.mxu0 0
    %1820 = vmatpush.bf16.msra.mxu0 %v1811
    %1821 = vmatmul.bf16.gmra.mxu0 %v1808
    %v1822 = vpop.f32.mrf.mxu0
    %v1823 = vadd.f32 0.0, %v1822
    %v1824 = vpop.f32.mrf.mxu0
    %1825 = vdwg.mxu0
    %v1827 = vsel %vm523, %v1702, 0
    %v1830 = vsel %vm527, %v1710, 0
    %1832 = vmatpush.bf16.msra.mxu0 0
    %1833 = vmatpush.bf16.msra.mxu0 0
    %1834 = vmatpush.bf16.msra.mxu0 0
    %1835 = vmatpush.bf16.msra.mxu0 0
    %1836 = vmatpush.bf16.msra.mxu0 0
    %1837 = vmatpush.bf16.msra.mxu0 0
    %1838 = vmatpush.bf16.msra.mxu0 0
    %1839 = vmatpush.bf16.msra.mxu0 %v1830
    %1840 = vmatmul.bf16.gmra.mxu0 %v1827
    %v1841 = vpop.f32.mrf.mxu0
    %v1842 = vadd.f32 0.0, %v1841
    %v1843 = vpop.f32.mrf.mxu0
    %1844 = vdwg.mxu0
    %v1846 = vsel %vm523, %v1703, 0
    %v1849 = vsel %vm527, %v1711, 0
    %1851 = vmatpush.bf16.msra.mxu0 0
    %1852 = vmatpush.bf16.msra.mxu0 0
    %1853 = vmatpush.bf16.msra.mxu0 0
    %1854 = vmatpush.bf16.msra.mxu0 0
    %1855 = vmatpush.bf16.msra.mxu0 0
    %1856 = vmatpush.bf16.msra.mxu0 0
    %1857 = vmatpush.bf16.msra.mxu0 0
    %1858 = vmatpush.bf16.msra.mxu0 %v1849
    %1859 = vmatmul.bf16.gmra.mxu0 %v1846
    %v1860 = vpop.f32.mrf.mxu0
    %v1861 = vadd.f32 0.0, %v1860
    %v1862 = vpop.f32.mrf.mxu0
    %1863 = vdwg.mxu0
    %v1864 = vmul.f32 %v1728, 0.35355338
    %v1865 = vmul.f32 %v1747, 0.35355338
    %v1866 = vmul.f32 %v1766, 0.35355338
    %v1867 = vmul.f32 %v1785, 0.35355338
    %v1868 = vmul.f32 %v1804, 0.35355338
    %v1869 = vmul.f32 %v1823, 0.35355338
    %v1870 = vmul.f32 %v1842, 0.35355338
    %v1871 = vmul.f32 %v1861, 0.35355338
    %v1872 = vadd.f32 %v1864, %v82
    %v1873 = vadd.f32 %v1865, %v82
    %v1874 = vadd.f32 %v1866, %v82
    %v1875 = vadd.f32 %v1867, %v82
    %v1876 = vadd.f32 %v1868, %v82
    %v1877 = vadd.f32 %v1869, %v82
    %v1878 = vadd.f32 %v1870, %v82
    %v1879 = vadd.f32 %v1871, %v82
    %v1880 = vsel %vm523, %v1872, -inf
    %1881 = vmax.xlane.f32.xlu0 %v1880
    %v1882 = vpop.xlane.xlu0 %1881
    %v1883 = vsel %vm523, %v1873, -inf
    %1884 = vmax.xlane.f32.xlu0 %v1883
    %v1885 = vpop.xlane.xlu0 %1884
    %v1886 = vsel %vm523, %v1874, -inf
    %1887 = vmax.xlane.f32.xlu0 %v1886
    %v1888 = vpop.xlane.xlu0 %1887
    %v1889 = vsel %vm523, %v1875, -inf
    %1890 = vmax.xlane.f32.xlu0 %v1889
    %v1891 = vpop.xlane.xlu0 %1890
    %v1892 = vsel %vm523, %v1876, -inf
    %1893 = vmax.xlane.f32.xlu0 %v1892
    %v1894 = vpop.xlane.xlu0 %1893
    %v1895 = vsel %vm523, %v1877, -inf
    %1896 = vmax.xlane.f32.xlu0 %v1895
    %v1897 = vpop.xlane.xlu0 %1896
    %v1898 = vsel %vm523, %v1878, -inf
    %1899 = vmax.xlane.f32.xlu0 %v1898
    %v1900 = vpop.xlane.xlu0 %1899
    %v1901 = vsel %vm523, %v1879, -inf
    %1902 = vmax.xlane.f32.xlu0 %v1901
    %v1903 = vpop.xlane.xlu0 %1902
    %v1904 = vsub.f32 %v1872, %v1882
    %v1905 = vsub.f32 %v1873, %v1885
    %v1906 = vsub.f32 %v1874, %v1888
    %v1907 = vsub.f32 %v1875, %v1891
    %v1908 = vsub.f32 %v1876, %v1894
    %v1909 = vsub.f32 %v1877, %v1897
    %v1910 = vsub.f32 %v1878, %v1900
    %v1911 = vsub.f32 %v1879, %v1903
    %v1912 = vmul.f32 %v1904, 1.442695
    %v1913 = vpow.pop %v1912
    %v1914 = vmul.f32 %v1905, 1.442695
    %v1915 = vpow.pop %v1914
    %v1916 = vmul.f32 %v1906, 1.442695
    %v1917 = vpow.pop %v1916
    %v1918 = vmul.f32 %v1907, 1.442695
    %v1919 = vpow.pop %v1918
    %v1920 = vmul.f32 %v1908, 1.442695
    %v1921 = vpow.pop %v1920
    %v1922 = vmul.f32 %v1909, 1.442695
    %v1923 = vpow.pop %v1922
    %v1924 = vmul.f32 %v1910, 1.442695
    %v1925 = vpow.pop %v1924
    %v1926 = vmul.f32 %v1911, 1.442695
    %v1927 = vpow.pop %v1926
    %v1928 = vsel %vm523, %v1913, 0.0
    %1929 = vadd.xlane.f32.xlu0 %v1928
    %v1930 = vpop.xlane.xlu0 %1929
    %v1931 = vsel %vm523, %v1915, 0.0
    %1932 = vadd.xlane.f32.xlu0 %v1931
    %v1933 = vpop.xlane.xlu0 %1932
    %v1934 = vsel %vm523, %v1917, 0.0
    %1935 = vadd.xlane.f32.xlu0 %v1934
    %v1936 = vpop.xlane.xlu0 %1935
    %v1937 = vsel %vm523, %v1919, 0.0
    %1938 = vadd.xlane.f32.xlu0 %v1937
    %v1939 = vpop.xlane.xlu0 %1938
    %v1940 = vsel %vm523, %v1921, 0.0
    %1941 = vadd.xlane.f32.xlu0 %v1940
    %v1942 = vpop.xlane.xlu0 %1941
    %v1943 = vsel %vm523, %v1923, 0.0
    %1944 = vadd.xlane.f32.xlu0 %v1943
    %v1945 = vpop.xlane.xlu0 %1944
    %v1946 = vsel %vm523, %v1925, 0.0
    %1947 = vadd.xlane.f32.xlu0 %v1946
    %v1948 = vpop.xlane.xlu0 %1947
    %v1949 = vsel %vm523, %v1927, 0.0
    %1950 = vadd.xlane.f32.xlu0 %v1949
    %v1951 = vpop.xlane.xlu0 %1950
    %v1952 = vrcp.pop %v1930
    %v1953 = vrcp.pop %v1933
    %v1954 = vrcp.pop %v1936
    %v1955 = vrcp.pop %v1939
    %v1956 = vrcp.pop %v1942
    %v1957 = vrcp.pop %v1945
    %v1958 = vrcp.pop %v1948
    %v1959 = vrcp.pop %v1951
    %v1960 = vmul.f32 %v1913, %v1952
    %v1961 = vmul.f32 %v1915, %v1953
    %v1962 = vmul.f32 %v1917, %v1954
    %v1963 = vmul.f32 %v1919, %v1955
    %v1964 = vmul.f32 %v1921, %v1956
    %v1965 = vmul.f32 %v1923, %v1957
    %v1966 = vmul.f32 %v1925, %v1958
    %v1967 = vmul.f32 %v1927, %v1959
    %v1968 = vpack.c.bf16 %v1400, %v1400
    %v1969 = vpack.c.bf16 %v1401, %v1401
    %v1970 = vpack.c.bf16 %v1402, %v1402
    %v1971 = vpack.c.bf16 %v1403, %v1403
    %v1972 = vpack.c.bf16 %v1432, %v1432
    %v1973 = vpack.c.bf16 %v1433, %v1433
    %v1974 = vpack.c.bf16 %v1434, %v1434
    %v1975 = vpack.c.bf16 %v1435, %v1435
    %v1976 = vpack.c.bf16 %v1960, %v1960
    %v1977 = vpack.c.bf16 %v1961, %v1961
    %v1978 = vpack.c.bf16 %v1962, %v1962
    %v1979 = vpack.c.bf16 %v1963, %v1963
    %v1980 = vpack.c.bf16 %v1964, %v1964
    %v1981 = vpack.c.bf16 %v1965, %v1965
    %v1982 = vpack.c.bf16 %v1966, %v1966
    %v1983 = vpack.c.bf16 %v1967, %v1967
    %v1985 = vsel %vm523, %v1968, 0
    %v1988 = vsel %vm523, %v1976, 0
    %1990 = vmatpush.bf16.xpose.msra.mxu0 0
    %1991 = vmatpush.bf16.xpose.msra.mxu0 0
    %1992 = vmatpush.bf16.xpose.msra.mxu0 0
    %1993 = vmatpush.bf16.xpose.msra.mxu0 0
    %1994 = vmatpush.bf16.xpose.msra.mxu0 0
    %1995 = vmatpush.bf16.xpose.msra.mxu0 0
    %1996 = vmatpush.bf16.xpose.msra.mxu0 0
    %1997 = vmatpush.bf16.xpose.msra.mxu0 %v1988
    %1998 = vmatmul.bf16.gmra.mxu0 %v1985
    %v1999 = vpop.f32.mrf.mxu0
    %v2000 = vadd.f32 0.0, %v1999
    %v2001 = vpop.f32.mrf.mxu0
    %2002 = vdwg.mxu0
    %v2004 = vsel %vm523, %v1969, 0
    %v2007 = vsel %vm523, %v1977, 0
    %2009 = vmatpush.bf16.xpose.msra.mxu0 0
    %2010 = vmatpush.bf16.xpose.msra.mxu0 0
    %2011 = vmatpush.bf16.xpose.msra.mxu0 0
    %2012 = vmatpush.bf16.xpose.msra.mxu0 0
    %2013 = vmatpush.bf16.xpose.msra.mxu0 0
    %2014 = vmatpush.bf16.xpose.msra.mxu0 0
    %2015 = vmatpush.bf16.xpose.msra.mxu0 0
    %2016 = vmatpush.bf16.xpose.msra.mxu0 %v2007
    %2017 = vmatmul.bf16.gmra.mxu0 %v2004
    %v2018 = vpop.f32.mrf.mxu0
    %v2019 = vadd.f32 0.0, %v2018
    %v2020 = vpop.f32.mrf.mxu0
    %2021 = vdwg.mxu0
    %v2023 = vsel %vm523, %v1970, 0
    %v2026 = vsel %vm523, %v1978, 0
    %2028 = vmatpush.bf16.xpose.msra.mxu0 0
    %2029 = vmatpush.bf16.xpose.msra.mxu0 0
    %2030 = vmatpush.bf16.xpose.msra.mxu0 0
    %2031 = vmatpush.bf16.xpose.msra.mxu0 0
    %2032 = vmatpush.bf16.xpose.msra.mxu0 0
    %2033 = vmatpush.bf16.xpose.msra.mxu0 0
    %2034 = vmatpush.bf16.xpose.msra.mxu0 0
    %2035 = vmatpush.bf16.xpose.msra.mxu0 %v2026
    %2036 = vmatmul.bf16.gmra.mxu0 %v2023
    %v2037 = vpop.f32.mrf.mxu0
    %v2038 = vadd.f32 0.0, %v2037
    %v2039 = vpop.f32.mrf.mxu0
    %2040 = vdwg.mxu0
    %v2042 = vsel %vm523, %v1971, 0
    %v2045 = vsel %vm523, %v1979, 0
    %2047 = vmatpush.bf16.xpose.msra.mxu0 0
    %2048 = vmatpush.bf16.xpose.msra.mxu0 0
    %2049 = vmatpush.bf16.xpose.msra.mxu0 0
    %2050 = vmatpush.bf16.xpose.msra.mxu0 0
    %2051 = vmatpush.bf16.xpose.msra.mxu0 0
    %2052 = vmatpush.bf16.xpose.msra.mxu0 0
    %2053 = vmatpush.bf16.xpose.msra.mxu0 0
    %2054 = vmatpush.bf16.xpose.msra.mxu0 %v2045
    %2055 = vmatmul.bf16.gmra.mxu0 %v2042
    %v2056 = vpop.f32.mrf.mxu0
    %v2057 = vadd.f32 0.0, %v2056
    %v2058 = vpop.f32.mrf.mxu0
    %2059 = vdwg.mxu0
    %v2061 = vsel %vm523, %v1972, 0
    %v2064 = vsel %vm523, %v1980, 0
    %2066 = vmatpush.bf16.xpose.msra.mxu0 0
    %2067 = vmatpush.bf16.xpose.msra.mxu0 0
    %2068 = vmatpush.bf16.xpose.msra.mxu0 0
    %2069 = vmatpush.bf16.xpose.msra.mxu0 0
    %2070 = vmatpush.bf16.xpose.msra.mxu0 0
    %2071 = vmatpush.bf16.xpose.msra.mxu0 0
    %2072 = vmatpush.bf16.xpose.msra.mxu0 0
    %2073 = vmatpush.bf16.xpose.msra.mxu0 %v2064
    %2074 = vmatmul.bf16.gmra.mxu0 %v2061
    %v2075 = vpop.f32.mrf.mxu0
    %v2076 = vadd.f32 0.0, %v2075
    %v2077 = vpop.f32.mrf.mxu0
    %2078 = vdwg.mxu0
    %v2080 = vsel %vm523, %v1973, 0
    %v2083 = vsel %vm523, %v1981, 0
    %2085 = vmatpush.bf16.xpose.msra.mxu0 0
    %2086 = vmatpush.bf16.xpose.msra.mxu0 0
    %2087 = vmatpush.bf16.xpose.msra.mxu0 0
    %2088 = vmatpush.bf16.xpose.msra.mxu0 0
    %2089 = vmatpush.bf16.xpose.msra.mxu0 0
    %2090 = vmatpush.bf16.xpose.msra.mxu0 0
    %2091 = vmatpush.bf16.xpose.msra.mxu0 0
    %2092 = vmatpush.bf16.xpose.msra.mxu0 %v2083
    %2093 = vmatmul.bf16.gmra.mxu0 %v2080
    %v2094 = vpop.f32.mrf.mxu0
    %v2095 = vadd.f32 0.0, %v2094
    %v2096 = vpop.f32.mrf.mxu0
    %2097 = vdwg.mxu0
    %v2099 = vsel %vm523, %v1974, 0
    %v2102 = vsel %vm523, %v1982, 0
    %2104 = vmatpush.bf16.xpose.msra.mxu0 0
    %2105 = vmatpush.bf16.xpose.msra.mxu0 0
    %2106 = vmatpush.bf16.xpose.msra.mxu0 0
    %2107 = vmatpush.bf16.xpose.msra.mxu0 0
    %2108 = vmatpush.bf16.xpose.msra.mxu0 0
    %2109 = vmatpush.bf16.xpose.msra.mxu0 0
    %2110 = vmatpush.bf16.xpose.msra.mxu0 0
    %2111 = vmatpush.bf16.xpose.msra.mxu0 %v2102
    %2112 = vmatmul.bf16.gmra.mxu0 %v2099
    %v2113 = vpop.f32.mrf.mxu0
    %v2114 = vadd.f32 0.0, %v2113
    %v2115 = vpop.f32.mrf.mxu0
    %2116 = vdwg.mxu0
    %v2118 = vsel %vm523, %v1975, 0
    %v2121 = vsel %vm523, %v1983, 0
    %2123 = vmatpush.bf16.xpose.msra.mxu0 0
    %2124 = vmatpush.bf16.xpose.msra.mxu0 0
    %2125 = vmatpush.bf16.xpose.msra.mxu0 0
    %2126 = vmatpush.bf16.xpose.msra.mxu0 0
    %2127 = vmatpush.bf16.xpose.msra.mxu0 0
    %2128 = vmatpush.bf16.xpose.msra.mxu0 0
    %2129 = vmatpush.bf16.xpose.msra.mxu0 0
    %2130 = vmatpush.bf16.xpose.msra.mxu0 %v2121
    %2131 = vmatmul.bf16.gmra.mxu0 %v2118
    %v2132 = vpop.f32.mrf.mxu0
    %v2133 = vadd.f32 0.0, %v2132
    %v2134 = vpop.f32.mrf.mxu0
    %2135 = vdwg.mxu0
    %2136 = vxpose.xlu0.b32.start [1/16] %v2000, 128
    %2137 = vxpose.xlu0.b32.cont [2/16] %v2019, 128
    %2138 = vxpose.xlu0.b32.cont [3/16] %v2038, 128
    %2139 = vxpose.xlu0.b32.cont [4/16] %v2057, 128
    %2140 = vxpose.xlu0.b32.cont [5/16] 0.0, 128
    %2141 = vxpose.xlu0.b32.cont [6/16] 0.0, 128
    %2142 = vxpose.xlu0.b32.cont [7/16] 0.0, 128
    %2143 = vxpose.xlu0.b32.cont [8/16] 0.0, 128
    %2144 = vxpose.xlu0.b32.cont [9/16] 0.0, 128
    %2145 = vxpose.xlu0.b32.cont [10/16] 0.0, 128
    %2146 = vxpose.xlu0.b32.cont [11/16] 0.0, 128
    %2147 = vxpose.xlu0.b32.cont [12/16] 0.0, 128
    %2148 = vxpose.xlu0.b32.cont [13/16] 0.0, 128
    %2149 = vxpose.xlu0.b32.cont [14/16] 0.0, 128
    %2150 = vxpose.xlu0.b32.cont [15/16] 0.0, 128
    %2151 = vxpose.xlu0.b32.end [16/16] 0.0, 128
    %v2152 = vpop.trf.xlu0
    %v2153 = vpop.trf.xlu0
    %v2154 = vpop.trf.xlu0
    %v2155 = vpop.trf.xlu0
    %v2156 = vpop.trf.xlu0
    %v2157 = vpop.trf.xlu0
    %v2158 = vpop.trf.xlu0
    %v2159 = vpop.trf.xlu0
    %v2160 = vpop.trf.xlu0
    %v2161 = vpop.trf.xlu0
    %v2162 = vpop.trf.xlu0
    %v2163 = vpop.trf.xlu0
    %v2164 = vpop.trf.xlu0
    %v2165 = vpop.trf.xlu0
    %v2166 = vpop.trf.xlu0
    %v2167 = vpop.trf.xlu0
    %2168 = vxpose.xlu0.b32.start [1/16] %v2076, 128
    %2169 = vxpose.xlu0.b32.cont [2/16] %v2095, 128
    %2170 = vxpose.xlu0.b32.cont [3/16] %v2114, 128
    %2171 = vxpose.xlu0.b32.cont [4/16] %v2133, 128
    %2172 = vxpose.xlu0.b32.cont [5/16] 0.0, 128
    %2173 = vxpose.xlu0.b32.cont [6/16] 0.0, 128
    %2174 = vxpose.xlu0.b32.cont [7/16] 0.0, 128
    %2175 = vxpose.xlu0.b32.cont [8/16] 0.0, 128
    %2176 = vxpose.xlu0.b32.cont [9/16] 0.0, 128
    %2177 = vxpose.xlu0.b32.cont [10/16] 0.0, 128
    %2178 = vxpose.xlu0.b32.cont [11/16] 0.0, 128
    %2179 = vxpose.xlu0.b32.cont [12/16] 0.0, 128
    %2180 = vxpose.xlu0.b32.cont [13/16] 0.0, 128
    %2181 = vxpose.xlu0.b32.cont [14/16] 0.0, 128
    %2182 = vxpose.xlu0.b32.cont [15/16] 0.0, 128
    %2183 = vxpose.xlu0.b32.end [16/16] 0.0, 128
    %v2184 = vpop.trf.xlu0
    %v2185 = vpop.trf.xlu0
    %v2186 = vpop.trf.xlu0
    %v2187 = vpop.trf.xlu0
    %v2188 = vpop.trf.xlu0
    %v2189 = vpop.trf.xlu0
    %v2190 = vpop.trf.xlu0
    %v2191 = vpop.trf.xlu0
    %v2192 = vpop.trf.xlu0
    %v2193 = vpop.trf.xlu0
    %v2194 = vpop.trf.xlu0
    %v2195 = vpop.trf.xlu0
    %v2196 = vpop.trf.xlu0
    %v2197 = vpop.trf.xlu0
    %v2198 = vpop.trf.xlu0
    %v2199 = vpop.trf.xlu0
    %v2200 = vpack.c.bf16 %v2184, %v2152
    %s2201 = scalar_lea.vmem %s8, 16
    %v2202 = vld [vmem:[%s2201] sm:$0xf]
    %v2203 = vld [vmem:[%s2201 + $0x4] sm:$0xf]
    %v2204 = vld [vmem:[%s2201 + $0x8] sm:$0xf]
    %v2205 = vld [vmem:[%s2201 + $0xc] sm:$0xf]
    %v2210 = vunpack.c.l.b16 %v2202
    %v2211 = vunpack.c.l.b16 %v2203
    %v2212 = vunpack.c.l.b16 %v2204
    %v2213 = vunpack.c.l.b16 %v2205
    %v2214 = vpack.c.b16 %v2211, %v2210
    %v2215 = vpack.c.b16 %v2213, %v2212
    %v2219 = vsel %vm87, %v2200, 0
    %2221 = vmatpush.bf16.msra.mxu0 0
    %2222 = vmatpush.bf16.msra.mxu0 0
    %2223 = vmatpush.bf16.msra.mxu0 0
    %2224 = vmatpush.bf16.msra.mxu0 0
    %2225 = vmatpush.bf16.msra.mxu0 0
    %2226 = vmatpush.bf16.msra.mxu0 0
    %2227 = vmatpush.bf16.msra.mxu0 %v2215
    %2228 = vmatpush.bf16.msra.mxu0 %v2214
    %2229 = vmatmul.bf16.gmra.mxu0 %v2219
    %v2230 = vpop.f32.mrf.mxu0
    %v2231 = vadd.f32 0.0, %v2230
    %v2232 = vpop.f32.mrf.mxu0
    %v2233 = vadd.f32 0.0, %v2232
    %2234 = vdwg.mxu0
    %v2235 = vadd.f32 %v1276, %v2231
    %v2236 = vadd.f32 %v1277, %v2233
    %s2237 = scalar_lea.vmem %s9, 1
    %v2238 = vld [vmem:[%s2237] sm:$0x1]
    %v2240 = vperm.slane %v2238, 0
    %v2242 = vadd.f32 %v2235, %v2240
    %v2243 = vadd.f32 %v2236, %v2240
    %s2244 = scalar_lea.vmem %s10, 1
    %v2245 = vld [vmem:[%s2244] sm:$0x1]
    %s2246 = scalar_lea.vmem %s11, 1
    %v2247 = vld [vmem:[%s2246] sm:$0x1]
    %v2248 = vsel %vm87, %v2242, 0.0
    %2249 = vadd.xlane.f32.xlu0 %v2248
    %v2250 = vpop.xlane.xlu0 %2249
    %v2251 = vsel %vm87, %v2243, 0.0
    %2252 = vadd.xlane.f32.xlu0 %v2251
    %v2253 = vpop.xlane.xlu0 %2252
    %v2254 = vmul.f32 %v2250, %v100
    %v2255 = vmul.f32 %v2253, %v100
    %v2256 = vsub.f32 %v2242, %v2254
    %v2257 = vsub.f32 %v2243, %v2255
    %v2258 = vmul.f32 %v2256, %v2256
    %v2259 = vmul.f32 %v2257, %v2257
    %v2260 = vsel %vm87, %v2258, 0.0
    %2261 = vadd.xlane.f32.xlu0 %v2260
    %v2262 = vpop.xlane.xlu0 %2261
    %v2263 = vsel %vm87, %v2259, 0.0
    %2264 = vadd.xlane.f32.xlu0 %v2263
    %v2265 = vpop.xlane.xlu0 %2264
    %v2266 = vmul.f32 %v2262, %v100
    %v2267 = vmul.f32 %v2265, %v100
    %v2268 = vadd.f32 %v2266, 1e-05
    %v2269 = vadd.f32 %v2267, 1e-05
    %v2270 = vrsqrt.pop %v2268
    %v2271 = vmul.f32 %v2270, %v2268
    %v2272 = vmul.f32 %v2271, %v2270
    %v2273 = vmul.f32 0.5, %v2272
    %v2274 = vsub.f32 1.5, %v2273
    %v2275 = vmul.f32 %v2270, %v2274
    %vm2276 = vweird.f32 %v2268
    %vm2277 = vweird.f32 %v2270
    %vm2278 = vmor %vm2276, %vm2277
    %v2279 = vsel %vm2278, %v2270, %v2275
    %v2280 = vrsqrt.pop %v2269
    %v2281 = vmul.f32 %v2280, %v2269
    %v2282 = vmul.f32 %v2281, %v2280
    %v2283 = vmul.f32 0.5, %v2282
    %v2284 = vsub.f32 1.5, %v2283
    %v2285 = vmul.f32 %v2280, %v2284
    %vm2286 = vweird.f32 %v2269
    %vm2287 = vweird.f32 %v2280
    %vm2288 = vmor %vm2286, %vm2287
    %v2289 = vsel %vm2288, %v2280, %v2285
    %v2290 = vmul.f32 %v2256, %v2279
    %v2291 = vmul.f32 %v2257, %v2289
    %v2293 = vperm.slane %v2245, 0
    %v2295 = vmul.f32 %v2290, %v2293
    %v2296 = vmul.f32 %v2291, %v2293
    %v2298 = vperm.slane %v2247, 0
    %v2300 = vadd.f32 %v2295, %v2298
    %v2301 = vadd.f32 %v2296, %v2298
    %v2302 = vpack.c.bf16 %v2301, %v2300
    %s2303 = scalar_lea.vmem %s12, 16
    %v2304 = vld [vmem:[%s2303] sm:$0xf]
    %v2305 = vld [vmem:[%s2303 + $0x4] sm:$0xf]
    %v2306 = vld [vmem:[%s2303 + $0x8] sm:$0xf]
    %v2307 = vld [vmem:[%s2303 + $0xc] sm:$0xf]
    %s2308 = scalar_lea.vmem %s13, 1
    %v2309 = vld [vmem:[%s2308] sm:$0x1]
    %v2311 = vperm.slane %v2309, 0
    %v2317 = vunpack.c.l.b16 %v2304
    %v2318 = vunpack.c.l.b16 %v2305
    %v2319 = vunpack.c.l.b16 %v2306
    %v2320 = vunpack.c.l.b16 %v2307
    %v2321 = vpack.c.b16 %v2318, %v2317
    %v2322 = vpack.c.b16 %v2320, %v2319
    %v2326 = vsel %vm87, %v2302, 0
    %2328 = vmatpush.bf16.msra.mxu0 0
    %2329 = vmatpush.bf16.msra.mxu0 0
    %2330 = vmatpush.bf16.msra.mxu0 0
    %2331 = vmatpush.bf16.msra.mxu0 0
    %2332 = vmatpush.bf16.msra.mxu0 0
    %2333 = vmatpush.bf16.msra.mxu0 0
    %2334 = vmatpush.bf16.msra.mxu0 %v2322
    %2335 = vmatpush.bf16.msra.mxu0 %v2321
    %2336 = vmatmul.bf16.gmra.mxu0 %v2326
    %v2337 = vpop.f32.mrf.mxu0
    %v2338 = vadd.f32 %v2311, %v2337
    %v2339 = vpop.f32.mrf.mxu0
    %v2340 = vadd.f32 %v2311, %v2339
    %2341 = vdwg.mxu0
    %v2342 = vmul.f32 %v2338, 1.702
    %v2343 = vmul.f32 %v2340, 1.702
    %v2344 = vxor.u32 %v2342, 2147483648
    %v2345 = vxor.u32 %v2343, 2147483648
    %v2346 = vmul.f32 %v2344, 1.442695
    %v2347 = vpow.pop %v2346
    %v2348 = vmul.f32 %v2345, 1.442695
    %v2349 = vpow.pop %v2348
    %v2350 = vadd.f32 %v2347, 1.0
    %v2351 = vadd.f32 %v2349, 1.0
    %v2352 = vrcp.pop %v2350
    %v2353 = vmul.f32 %v2350, %v2352
    %v2354 = vsub.f32 1.0, %v2353
    %v2355 = vmul.f32 %v2352, %v2354
    %v2356 = vadd.f32 %v2352, %v2355
    %vm2357 = vweird.f32 %v2350
    %vm2358 = vweird.f32 %v2352
    %vm2359 = vmor %vm2357, %vm2358
    %v2360 = vsel %vm2359, %v2352, %v2356
    %v2361 = vand.u32 2147483647, %v2350
    %vm2362 = vcmp.eq.f32.partialorder %v2361, 8.507059e+37
    %v2363 = vand.u32 %v2350, 2147483648
    %v2364 = vor.u32 1.1754944e-38, %v2363
    %v2365 = vsel %vm2362, %v2364, %v2360
    %v2366 = vmul.f32 1.0, %v2365
    %v2367 = vrcp.pop %v2351
    %v2368 = vmul.f32 %v2351, %v2367
    %v2369 = vsub.f32 1.0, %v2368
    %v2370 = vmul.f32 %v2367, %v2369
    %v2371 = vadd.f32 %v2367, %v2370
    %vm2372 = vweird.f32 %v2351
    %vm2373 = vweird.f32 %v2367
    %vm2374 = vmor %vm2372, %vm2373
    %v2375 = vsel %vm2374, %v2367, %v2371
    %v2376 = vand.u32 2147483647, %v2351
    %vm2377 = vcmp.eq.f32.partialorder %v2376, 8.507059e+37
    %v2378 = vand.u32 %v2351, 2147483648
    %v2379 = vor.u32 1.1754944e-38, %v2378
    %v2380 = vsel %vm2377, %v2379, %v2375
    %v2381 = vmul.f32 1.0, %v2380
    %v2382 = vmul.f32 %v2338, %v2366
    %v2383 = vmul.f32 %v2340, %v2381
    %v2384 = vpack.c.bf16 %v2383, %v2382
    %s2385 = scalar_lea.vmem %s14, 64
    %v2386 = vld [vmem:[%s2385] sm:$0xf]
    %v2387 = vld [vmem:[%s2385 + $0x4] sm:$0xf]
    %v2388 = vld [vmem:[%s2385 + $0x8] sm:$0xf]
    %v2389 = vld [vmem:[%s2385 + $0xc] sm:$0xf]
    %v2390 = vld [vmem:[%s2385 + $0x10] sm:$0xf]
    %v2391 = vld [vmem:[%s2385 + $0x14] sm:$0xf]
    %v2392 = vld [vmem:[%s2385 + $0x18] sm:$0xf]
    %v2393 = vld [vmem:[%s2385 + $0x1c] sm:$0xf]
    %v2394 = vld [vmem:[%s2385 + $0x20] sm:$0xf]
    %v2395 = vld [vmem:[%s2385 + $0x24] sm:$0xf]
    %v2396 = vld [vmem:[%s2385 + $0x28] sm:$0xf]
    %v2397 = vld [vmem:[%s2385 + $0x2c] sm:$0xf]
    %v2398 = vld [vmem:[%s2385 + $0x30] sm:$0xf]
    %v2399 = vld [vmem:[%s2385 + $0x34] sm:$0xf]
    %v2400 = vld [vmem:[%s2385 + $0x38] sm:$0xf]
    %v2401 = vld [vmem:[%s2385 + $0x3c] sm:$0xf]
    %v2418 = vunpack.c.l.b16 %v2386
    %v2419 = vunpack.c.l.b16 %v2387
    %v2420 = vunpack.c.l.b16 %v2388
    %v2421 = vunpack.c.l.b16 %v2389
    %v2422 = vunpack.c.l.b16 %v2390
    %v2423 = vunpack.c.l.b16 %v2391
    %v2424 = vunpack.c.l.b16 %v2392
    %v2425 = vunpack.c.l.b16 %v2393
    %v2426 = vunpack.c.l.b16 %v2394
    %v2427 = vunpack.c.l.b16 %v2395
    %v2428 = vunpack.c.l.b16 %v2396
    %v2429 = vunpack.c.l.b16 %v2397
    %v2430 = vunpack.c.l.b16 %v2398
    %v2431 = vunpack.c.l.b16 %v2399
    %v2432 = vunpack.c.l.b16 %v2400
    %v2433 = vunpack.c.l.b16 %v2401
    %v2434 = vpack.c.b16 %v2419, %v2418
    %v2435 = vpack.c.b16 %v2421, %v2420
    %v2436 = vpack.c.b16 %v2423, %v2422
    %v2437 = vpack.c.b16 %v2425, %v2424
    %v2438 = vpack.c.b16 %v2427, %v2426
    %v2439 = vpack.c.b16 %v2429, %v2428
    %v2440 = vpack.c.b16 %v2431, %v2430
    %v2441 = vpack.c.b16 %v2433, %v2432
    %2450 = vmatpush.bf16.msra.mxu0 %v2441
    %2451 = vmatpush.bf16.msra.mxu0 %v2440
    %2452 = vmatpush.bf16.msra.mxu0 %v2439
    %2453 = vmatpush.bf16.msra.mxu0 %v2438
    %2454 = vmatpush.bf16.msra.mxu0 %v2437
    %2455 = vmatpush.bf16.msra.mxu0 %v2436
    %2456 = vmatpush.bf16.msra.mxu0 %v2435
    %2457 = vmatpush.bf16.msra.mxu0 %v2434
    %2458 = vmatmul.bf16.gmra.mxu0 %v2384
    %v2459 = vpop.f32.mrf.mxu0
    %v2460 = vadd.f32 0.0, %v2459
    %v2461 = vpop.f32.mrf.mxu0
    %v2462 = vadd.f32 0.0, %v2461
    %2463 = vdwg.mxu0
    %v2464 = vadd.f32 %v2242, %v2460
    %v2465 = vadd.f32 %v2243, %v2462
    %s2466 = scalar_lea.vmem %s15, 1
    %v2467 = vld [vmem:[%s2466] sm:$0x1]
    %v2469 = vperm.slane %v2467, 0
    %v2471 = vadd.f32 %v2464, %v2469
    %v2472 = vadd.f32 %v2465, %v2469
    %2473 = vst.msk [vmem:[#allocation2] sm:$0xff] %vm87, %v2471
    %2474 = vst.msk [vmem:[#allocation2 + $0x8] sm:$0xff] %vm87, %v2472
    // Predicated region
    $region78: #{tpu_custom_call.1} parent=1 // pred_check
      %p2475 = pneg %p70
    $region79: #{tpu_custom_call.1} parent=1 // pred_check_branch
      %2477 = sbr.rel (%p2475) target = $region81
    $region80: #{tpu_custom_call.1} parent=1 // pred_region
      %s2478 = sld [smem:[#allocation4]]
      %s2479 = scalar_lea.vmem [#allocation2], %s2478
      %v2480 = vld [vmem:[%s2479] sm:$0x1]
      %s2481 = sld [smem:[#allocation4 + $0x1]]
      %s2482 = scalar_lea.vmem [#allocation2], %s2481
      %v2483 = vld [vmem:[%s2482] sm:$0x1]
      %v2485 = vrot.slane %v2483, 7
      %vm2487 = vcmask 1040384
      %v2488 = vsel %vm2487, %v2480, %v2485
      %v2489 = vld [vmem:[%s16] sm:$0x1]
      %v2490 = vld [vmem:[%s17] sm:$0x1]
      %vm2491 = vcmask 254976
      %v2492 = vsel %vm2491, %v2488, 0.0
      %2493 = vadd.xlane.f32.xlu0 %v2492
      %v2494 = vpop.xlane.xlu0 %2493
      %v2495 = vmul.f32 %v2494, %v100
      %v2496 = vsub.f32 %v2488, %v2495
      %v2497 = vmul.f32 %v2496, %v2496
      %v2498 = vsel %vm2491, %v2497, 0.0
      %2499 = vadd.xlane.f32.xlu0 %v2498
      %v2500 = vpop.xlane.xlu0 %2499
      %v2501 = vmul.f32 %v2500, %v100
      %v2502 = vadd.f32 %v2501, 1e-05
      %v2503 = vrsqrt.pop %v2502
      %v2504 = vmul.f32 %v2503, %v2502
      %v2505 = vmul.f32 %v2504, %v2503
      %v2506 = vmul.f32 0.5, %v2505
      %v2507 = vsub.f32 1.5, %v2506
      %v2508 = vmul.f32 %v2503, %v2507
      %vm2509 = vweird.f32 %v2502
      %vm2510 = vweird.f32 %v2503
      %vm2511 = vmor %vm2509, %vm2510
      %v2512 = vsel %vm2511, %v2503, %v2508
      %v2513 = vmul.f32 %v2496, %v2512
      %v2515 = vperm.slane %v2489, 0
      %v2517 = vmul.f32 %v2513, %v2515
      %v2519 = vperm.slane %v2490, 0
      %v2521 = vadd.f32 %v2517, %v2519
      %v2522 = vpack.c.bf16 %v2521, %v2521
      %v2523 = vld [vmem:[%s18] sm:$0xf]
      %v2524 = vld [vmem:[%s18 + $0x4] sm:$0xf]
      %v2525 = vld [vmem:[%s18 + $0x8] sm:$0xf]
      %v2526 = vld [vmem:[%s18 + $0xc] sm:$0xf]
      %v2531 = vunpack.c.l.b16 %v2523
      %v2532 = vunpack.c.l.b16 %v2524
      %v2533 = vunpack.c.l.b16 %v2525
      %v2534 = vunpack.c.l.b16 %v2526
      %v2535 = vpack.c.b16 %v2532, %v2531
      %v2536 = vpack.c.b16 %v2534, %v2533
      %v2540 = vsel %vm87, %v2522, 0
      %2542 = vmatpush.bf16.msra.mxu0 0
      %2543 = vmatpush.bf16.msra.mxu0 0
      %2544 = vmatpush.bf16.msra.mxu0 0
      %2545 = vmatpush.bf16.msra.mxu0 0
      %2546 = vmatpush.bf16.msra.mxu0 0
      %2547 = vmatpush.bf16.msra.mxu0 0
      %2548 = vmatpush.bf16.msra.mxu0 %v2536
      %2549 = vmatpush.bf16.msra.mxu0 %v2535
      %2550 = vmatmul.bf16.gmra.mxu0 %v2540
      %v2551 = vpop.f32.mrf.mxu0
      %v2552 = vadd.f32 0.0, %v2551
      %v2553 = vpop.f32.mrf.mxu0
      %2554 = vdwg.mxu0
      %2555 = vst [vmem:[#allocation5] sm:$0x3] %v2552
    $region81: #{tpu_custom_call.1} parent=1 // pred_fallthru
      _
    // Predicated region
    $region82: #{tpu_custom_call.1} parent=1 // pred_check
      _
    $region83: #{tpu_custom_call.1} parent=1 // pred_check_branch
      %2557 = sbr.rel (0) target = $region85
    $region84: #{tpu_custom_call.1} parent=1 // pred_region
      %2559 = vsyncadd [#allocation6], 0
      %s2561 = sshll.u32 [#allocation5], 4
      %s2562 = int_to_ptr.vmem [resolvable:$true] %s2561
      %s2563 = sshll.u32 %s19, 4
      %s2564 = int_to_ptr.hbm [resolvable:$true] %s2563
      %2566 = dma.vmem_to_hbm [thread:$0]  %s2562, 32, %s2564, [#allocation6]
    $region85: #{tpu_custom_call.1} parent=1 // pred_fallthru
      _
    // Predicated region
    $region86: #{tpu_custom_call.1} parent=1 // pred_check
      _
    $region87: #{tpu_custom_call.1} parent=1 // pred_check_branch
      %2568 = sbr.rel (0) target = $region89
    $region88: #{tpu_custom_call.1} parent=1 // pred_region
      %2570 = dma.done [#allocation6], 32
    $region89: #{tpu_custom_call.1} parent=1 // pred_fallthru
      _
    %2571 = vsyncpa [#allocation6], 1

// kernel: tpu_custom_call.1
$region0: #{tpu_custom_call.1}
  #allocation0 [shape = 'u32[]', space=smem, size = 0x4, offset = 0x4, fixed_abs, tag = 'smem constant byte address 0x4 - core index']
  #allocation1 [shape = 'u32[72,128]{1,0:T(1,128)}', space=vmem, size = 0x9000, scoped, tag = 'internal scratch']
  #allocation2 [shape = 'f32[16,32]{1,0:T(8,128)}', space=vmem, size = 0x2000, scoped, tag = 'scratch operand']
  #allocation3 [shape = 's32[1]{0}', space=sflag, size = 0x4, scoped, tag = 'scoped memory for tpu_custom_call.1']
  #allocation4 [shape = 'u8[512]{0}', space=smem, size = 0x200, scoped, tag = 'prefetched SMEM operand 0']
  %s0 = inlined_call_operand.hbm [shape: s32[2], index: 0, kind: input, shape index: {}]
  %s1 = inlined_call_operand.vmem [shape: f32[2,8,32], index: 1, kind: input, shape index: {}]
  %s2 = inlined_call_operand.vmem [shape: f32[8,32], index: 2, kind: input, shape index: {}]
  %s3 = inlined_call_operand.vmem [shape: f32[8,8], index: 3, kind: input, shape index: {}]
  %s4 = inlined_call_operand.vmem [shape: f32[2,1,32], index: 4, kind: input, shape index: {}]
  %s5 = inlined_call_operand.vmem [shape: f32[2,1,32], index: 5, kind: input, shape index: {}]
  %s6 = inlined_call_operand.vmem [shape: bf16[2,32,96], index: 6, kind: input, shape index: {}]
  %s7 = inlined_call_operand.vmem [shape: f32[2,1,96], index: 7, kind: input, shape index: {}]
  %s8 = inlined_call_operand.vmem [shape: bf16[2,32,32], index: 8, kind: input, shape index: {}]
  %s9 = inlined_call_operand.vmem [shape: f32[2,1,32], index: 9, kind: input, shape index: {}]
  %s10 = inlined_call_operand.vmem [shape: f32[2,1,32], index: 10, kind: input, shape index: {}]
  %s11 = inlined_call_operand.vmem [shape: f32[2,1,32], index: 11, kind: input, shape index: {}]
  %s12 = inlined_call_operand.vmem [shape: bf16[2,32,128], index: 12, kind: input, shape index: {}]
  %s13 = inlined_call_operand.vmem [shape: f32[2,1,128], index: 13, kind: input, shape index: {}]
  %s14 = inlined_call_operand.vmem [shape: bf16[2,128,32], index: 14, kind: input, shape index: {}]
  %s15 = inlined_call_operand.vmem [shape: f32[2,1,32], index: 15, kind: input, shape index: {}]
  %s16 = inlined_call_operand.vmem [shape: f32[1,32], index: 16, kind: input, shape index: {}]
  %s17 = inlined_call_operand.vmem [shape: f32[1,32], index: 17, kind: input, shape index: {}]
  %s18 = inlined_call_operand.vmem [shape: bf16[32,128], index: 18, kind: input, shape index: {}]
  %s19 = inlined_call_operand.hbm [shape: f32[2,128], index: 19, kind: output, shape index: {}]
  %s20 = sld [smem:[#allocation0]]
  $region90: #{tpu_custom_call.1} parent=0
    _
  %s22 = ssub.s32 1, %s20
  %s23 = scalar_select 0, %s22, %s20
  %s25 = sshll.u32 %s0, 4
  %s26 = int_to_ptr.hbm [resolvable:$true] %s25
  %28 = dma.hbm_to_smem %s26, 16, [#allocation4], [#allocation3]
  %30 = dma.done [#allocation3], 16
  %31 = sfence
  $region1: #{tpu_custom_call.1} parent=0
    #allocation5 [shape = 'u8[1024]{0}', space=vmem, size = 0x400, scoped, tag = 'output window, operand 0, single buffered']
    #allocation6 [shape = 's32[1]{0}', space=sflag, size = 0x4, scoped, tag = 'scoped memory for tpu_custom_call.1']
    %32 = vsyncpa [#allocation6], 0
    // Predicated region
    $region2: #{tpu_custom_call.1} parent=1 // pred_check
      _
    $region3: #{tpu_custom_call.1} parent=1 // pred_check_branch
      %34 = sbr.rel (0) target = $region5
    $region4: #{tpu_custom_call.1} parent=1 // pred_region
      _
    $region5: #{tpu_custom_call.1} parent=1 // pred_fallthru
      _
    // Predicated region
    $region6: #{tpu_custom_call.1} parent=1 // pred_check
      _
    $region7: #{tpu_custom_call.1} parent=1 // pred_check_branch
      %36 = sbr.rel (0) target = $region9
    $region8: #{tpu_custom_call.1} parent=1 // pred_region
      _
    $region9: #{tpu_custom_call.1} parent=1 // pred_fallthru
      _
    // Predicated region
    $region10: #{tpu_custom_call.1} parent=1 // pred_check
      _
    $region11: #{tpu_custom_call.1} parent=1 // pred_check_branch
      %38 = sbr.rel (0) target = $region13
    $region12: #{tpu_custom_call.1} parent=1 // pred_region
      _
    $region13: #{tpu_custom_call.1} parent=1 // pred_fallthru
      _
    // Predicated region
    $region14: #{tpu_custom_call.1} parent=1 // pred_check
      _
    $region15: #{tpu_custom_call.1} parent=1 // pred_check_branch
      %40 = sbr.rel (0) target = $region17
    $region16: #{tpu_custom_call.1} parent=1 // pred_region
      _
    $region17: #{tpu_custom_call.1} parent=1 // pred_fallthru
      _
    // Predicated region
    $region18: #{tpu_custom_call.1} parent=1 // pred_check
      _
    $region19: #{tpu_custom_call.1} parent=1 // pred_check_branch
      %42 = sbr.rel (0) target = $region21
    $region20: #{tpu_custom_call.1} parent=1 // pred_region
      _
    $region21: #{tpu_custom_call.1} parent=1 // pred_fallthru
      _
    // Predicated region
    $region22: #{tpu_custom_call.1} parent=1 // pred_check
      _
    $region23: #{tpu_custom_call.1} parent=1 // pred_check_branch
      %44 = sbr.rel (0) target = $region25
    $region24: #{tpu_custom_call.1} parent=1 // pred_region
      _
    $region25: #{tpu_custom_call.1} parent=1 // pred_fallthru
      _
    // Predicated region
    $region26: #{tpu_custom_call.1} parent=1 // pred_check
      _
    $region27: #{tpu_custom_call.1} parent=1 // pred_check_branch
      %46 = sbr.rel (0) target = $region29
    $region28: #{tpu_custom_call.1} parent=1 // pred_region
      _
    $region29: #{tpu_custom_call.1} parent=1 // pred_fallthru
      _
    // Predicated region
    $region30: #{tpu_custom_call.1} parent=1 // pred_check
      _
    $region31: #{tpu_custom_call.1} parent=1 // pred_check_branch
      %48 = sbr.rel (0) target = $region33
    $region32: #{tpu_custom_call.1} parent=1 // pred_region
      _
    $region33: #{tpu_custom_call.1} parent=1 // pred_fallthru
      _
    // Predicated region
    $region34: #{tpu_custom_call.1} parent=1 // pred_check
      _
    $region35: #{tpu_custom_call.1} parent=1 // pred_check_branch
      %50 = sbr.rel (0) target = $region37
    $region36: #{tpu_custom_call.1} parent=1 // pred_region
      _
    $region37: #{tpu_custom_call.1} parent=1 // pred_fallthru
      _
    // Predicated region
    $region38: #{tpu_custom_call.1} parent=1 // pred_check
      _
    $region39: #{tpu_custom_call.1} parent=1 // pred_check_branch
      %52 = sbr.rel (0) target = $region41
    $region40: #{tpu_custom_call.1} parent=1 // pred_region
      _
    $region41: #{tpu_custom_call.1} parent=1 // pred_fallthru
      _
    // Predicated region
    $region42: #{tpu_custom_call.1} parent=1 // pred_check
      _
    $region43: #{tpu_custom_call.1} parent=1 // pred_check_branch
      %54 = sbr.rel (0) target = $region45
    $region44: #{tpu_custom_call.1} parent=1 // pred_region
      _
    $region45: #{tpu_custom_call.1} parent=1 // pred_fallthru
      _
    // Predicated region
    $region46: #{tpu_custom_call.1} parent=1 // pred_check
      _
    $region47: #{tpu_custom_call.1} parent=1 // pred_check_branch
      %56 = sbr.rel (0) target = $region49
    $region48: #{tpu_custom_call.1} parent=1 // pred_region
      _
    $region49: #{tpu_custom_call.1} parent=1 // pred_fallthru
      _
    // Predicated region
    $region50: #{tpu_custom_call.1} parent=1 // pred_check
      _
    $region51: #{tpu_custom_call.1} parent=1 // pred_check_branch
      %58 = sbr.rel (0) target = $region53
    $region52: #{tpu_custom_call.1} parent=1 // pred_region
      _
    $region53: #{tpu_custom_call.1} parent=1 // pred_fallthru
      _
    // Predicated region
    $region54: #{tpu_custom_call.1} parent=1 // pred_check
      _
    $region55: #{tpu_custom_call.1} parent=1 // pred_check_branch
      %60 = sbr.rel (0) target = $region57
    $region56: #{tpu_custom_call.1} parent=1 // pred_region
      _
    $region57: #{tpu_custom_call.1} parent=1 // pred_fallthru
      _
    // Predicated region
    $region58: #{tpu_custom_call.1} parent=1 // pred_check
      _
    $region59: #{tpu_custom_call.1} parent=1 // pred_check_branch
      %62 = sbr.rel (0) target = $region61
    $region60: #{tpu_custom_call.1} parent=1 // pred_region
      _
    $region61: #{tpu_custom_call.1} parent=1 // pred_fallthru
      _
    // Predicated region
    $region62: #{tpu_custom_call.1} parent=1 // pred_check
      _
    $region63: #{tpu_custom_call.1} parent=1 // pred_check_branch
      %64 = sbr.rel (0) target = $region65
    $region64: #{tpu_custom_call.1} parent=1 // pred_region
      _
    $region65: #{tpu_custom_call.1} parent=1 // pred_fallthru
      _
    // Predicated region
    $region66: #{tpu_custom_call.1} parent=1 // pred_check
      _
    $region67: #{tpu_custom_call.1} parent=1 // pred_check_branch
      %66 = sbr.rel (0) target = $region69
    $region68: #{tpu_custom_call.1} parent=1 // pred_region
      _
    $region69: #{tpu_custom_call.1} parent=1 // pred_fallthru
      _
    // Predicated region
    $region70: #{tpu_custom_call.1} parent=1 // pred_check
      _
    $region71: #{tpu_custom_call.1} parent=1 // pred_check_branch
      %68 = sbr.rel (0) target = $region73
    $region72: #{tpu_custom_call.1} parent=1 // pred_region
      _
    $region73: #{tpu_custom_call.1} parent=1 // pred_fallthru
      _
    %p70 = scmp.eq.s32.totalorder 0, 0
    // Predicated region
    $region74: #{tpu_custom_call.1} parent=1 // pred_check
      %p71 = pneg %p70
    $region75: #{tpu_custom_call.1} parent=1 // pred_check_branch
      %73 = sbr.rel (%p71) target = $region77
    $region76: #{tpu_custom_call.1} parent=1 // pred_region
      %v74 = vld [vmem:[%s1] sm:$0xff]
      %v75 = vld [vmem:[%s1 + $0x8] sm:$0xff]
      %v76 = vld [vmem:[%s2] sm:$0xff]
      %v77 = vadd.f32 %v74, %v76
      %v78 = vadd.f32 %v75, %v76
      %vm79 = vcmask 261120
      %80 = vst.msk [vmem:[#allocation2] sm:$0xff] %vm79, %v77
      %81 = vst.msk [vmem:[#allocation2 + $0x8] sm:$0xff] %vm79, %v78
    $region77: #{tpu_custom_call.1} parent=1 // pred_fallthru
      _
    %v82 = vld [vmem:[%s3] sm:$0xff]
    %v83 = vld [vmem:[#allocation2] sm:$0xff]
    %v84 = vld [vmem:[#allocation2 + $0x8] sm:$0xff]
    %v85 = vld [vmem:[%s4] sm:$0x1]
    %v86 = vld [vmem:[%s5] sm:$0x1]
    %vm87 = vcmask 261120
    %v88 = vsel %vm87, %v83, 0.0
    %89 = vadd.xlane.f32.xlu0 %v88
    %v90 = vpop.xlane.xlu0 %89
    %v91 = vsel %vm87, %v84, 0.0
    %92 = vadd.xlane.f32.xlu0 %v91
    %v93 = vpop.xlane.xlu0 %92
    %v94 = vrcp.pop 32.0
    %v95 = vmul.f32 32.0, %v94
    %v96 = vsub.f32 1.0, %v95
    %v97 = vmul.f32 %v94, %v96
    %v98 = vadd.f32 %v94, %v97
    %vm99 = vweird.f32 %v94
    %v100 = vsel %vm99, %v94, %v98
    %v101 = vmul.f32 %v90, %v100
    %v102 = vmul.f32 %v93, %v100
    %v103 = vsub.f32 %v83, %v101
    %v104 = vsub.f32 %v84, %v102
    %v105 = vmul.f32 %v103, %v103
    %v106 = vmul.f32 %v104, %v104
    %v107 = vsel %vm87, %v105, 0.0
    %108 = vadd.xlane.f32.xlu0 %v107
    %v109 = vpop.xlane.xlu0 %108
    %v110 = vsel %vm87, %v106, 0.0
    %111 = vadd.xlane.f32.xlu0 %v110
    %v112 = vpop.xlane.xlu0 %111
    %v113 = vmul.f32 %v109, %v100
    %v114 = vmul.f32 %v112, %v100
    %v115 = vadd.f32 %v113, 1e-05
    %v116 = vadd.f32 %v114, 1e-05
    %v117 = vrsqrt.pop %v115
    %v118 = vmul.f32 %v117, %v115
    %v119 = vmul.f32 %v118, %v117
    %v120 = vmul.f32 0.5, %v119
    %v121 = vsub.f32 1.5, %v120
    %v122 = vmul.f32 %v117, %v121
    %vm123 = vweird.f32 %v115
    %vm124 = vweird.f32 %v117
    %vm125 = vmor %vm123, %vm124
    %v126 = vsel %vm125, %v117, %v122
    %v127 = vrsqrt.pop %v116
    %v128 = vmul.f32 %v127, %v116
    %v129 = vmul.f32 %v128, %v127
    %v130 = vmul.f32 0.5, %v129
    %v131 = vsub.f32 1.5, %v130
    %v132 = vmul.f32 %v127, %v131
    %vm133 = vweird.f32 %v116
    %vm134 = vweird.f32 %v127
    %vm135 = vmor %vm133, %vm134
    %v136 = vsel %vm135, %v127, %v132
    %v137 = vmul.f32 %v103, %v126
    %v138 = vmul.f32 %v104, %v136
    %v140 = vperm.slane %v85, 0
    %v142 = vmul.f32 %v137, %v140
    %v143 = vmul.f32 %v138, %v140
    %v145 = vperm.slane %v86, 0
    %v147 = vadd.f32 %v142, %v145
    %v148 = vadd.f32 %v143, %v145
    %v149 = vpack.c.bf16 %v148, %v147
    %v150 = vld [vmem:[%s6] sm:$0xf]
    %v151 = vld [vmem:[%s6 + $0x4] sm:$0xf]
    %v152 = vld [vmem:[%s6 + $0x8] sm:$0xf]
    %v153 = vld [vmem:[%s6 + $0xc] sm:$0xf]
    %v154 = vld [vmem:[%s7] sm:$0x1]
    %v156 = vperm.slane %v154, 0
    %v162 = vunpack.c.l.b16 %v150
    %v163 = vunpack.c.l.b16 %v151
    %v164 = vunpack.c.l.b16 %v152
    %v165 = vunpack.c.l.b16 %v153
    %v166 = vpack.c.b16 %v163, %v162
    %v167 = vpack.c.b16 %v165, %v164
    %v171 = vsel %vm87, %v149, 0
    %173 = vmatpush.bf16.msra.mxu0 0
    %174 = vmatpush.bf16.msra.mxu0 0
    %175 = vmatpush.bf16.msra.mxu0 0
    %176 = vmatpush.bf16.msra.mxu0 0
    %177 = vmatpush.bf16.msra.mxu0 0
    %178 = vmatpush.bf16.msra.mxu0 0
    %179 = vmatpush.bf16.msra.mxu0 %v167
    %180 = vmatpush.bf16.msra.mxu0 %v166
    %181 = vmatmul.bf16.gmra.mxu0 %v171
    %v182 = vpop.f32.mrf.mxu0
    %v183 = vadd.f32 %v156, %v182
    %v184 = vpop.f32.mrf.mxu0
    %v185 = vadd.f32 %v156, %v184
    %186 = vdwg.mxu0
    %v187 = vpack.c.bf16 %v183, %v183
    %v188 = vpack.c.bf16 %v185, %v185
    %v190 = vunpack.c.l.b16 %v187
    %v191 = vpack.c.b16 %v190, %v190
    %192 = vrot.lane.b32.xlu0 %v191, 96
    %v193 = vpop.permute.xlu0 %192
    %vm194 = vcmask 64512
    %v196 = vsel %vm194, %v187, 0
    %v199 = vsel %vm194, %v193, 0
    %201 = vmatpush.bf16.xpose.msra.mxu0 0
    %202 = vmatpush.bf16.xpose.msra.mxu0 0
    %203 = vmatpush.bf16.xpose.msra.mxu0 0
    %204 = vmatpush.bf16.xpose.msra.mxu0 0
    %205 = vmatpush.bf16.xpose.msra.mxu0 0
    %206 = vmatpush.bf16.xpose.msra.mxu0 0
    %207 = vmatpush.bf16.xpose.msra.mxu0 0
    %208 = vmatpush.bf16.xpose.msra.mxu0 %v199
    %209 = vmatmul.bf16.gmra.mxu0 %v196
    %v210 = vpop.f32.mrf.mxu0
    %v211 = vadd.f32 0.0, %v210
    %v212 = vpop.f32.mrf.mxu0
    %213 = vdwg.mxu0
    %v215 = vunpack.c.l.b16 %v188
    %v216 = vpack.c.b16 %v215, %v215
    %217 = vrot.lane.b32.xlu0 %v216, 96
    %v218 = vpop.permute.xlu0 %217
    %v220 = vsel %vm194, %v188, 0
    %v223 = vsel %vm194, %v218, 0
    %225 = vmatpush.bf16.xpose.msra.mxu0 0
    %226 = vmatpush.bf16.xpose.msra.mxu0 0
    %227 = vmatpush.bf16.xpose.msra.mxu0 0
    %228 = vmatpush.bf16.xpose.msra.mxu0 0
    %229 = vmatpush.bf16.xpose.msra.mxu0 0
    %230 = vmatpush.bf16.xpose.msra.mxu0 0
    %231 = vmatpush.bf16.xpose.msra.mxu0 0
    %232 = vmatpush.bf16.xpose.msra.mxu0 %v223
    %233 = vmatmul.bf16.gmra.mxu0 %v220
    %v234 = vpop.f32.mrf.mxu0
    %v235 = vadd.f32 0.0, %v234
    %v236 = vpop.f32.mrf.mxu0
    %237 = vdwg.mxu0
    %v238 = vmul.f32 %v211, 0.35355338
    %v239 = vmul.f32 %v235, 0.35355338
    %v240 = vadd.f32 %v238, %v82
    %v241 = vadd.f32 %v239, %v82
    %v242 = vsel %vm194, %v240, -inf
    %243 = vmax.xlane.f32.xlu0 %v242
    %v244 = vpop.xlane.xlu0 %243
    %v245 = vsel %vm194, %v241, -inf
    %246 = vmax.xlane.f32.xlu0 %v245
    %v247 = vpop.xlane.xlu0 %246
    %v248 = vsub.f32 %v240, %v244
    %v249 = vsub.f32 %v241, %v247
    %v250 = vmul.f32 %v248, 1.442695
    %v251 = vpow.pop %v250
    %v252 = vmul.f32 %v249, 1.442695
    %v253 = vpow.pop %v252
    %v254 = vsel %vm194, %v251, 0.0
    %255 = vadd.xlane.f32.xlu0 %v254
    %v256 = vpop.xlane.xlu0 %255
    %v257 = vsel %vm194, %v253, 0.0
    %258 = vadd.xlane.f32.xlu0 %v257
    %v259 = vpop.xlane.xlu0 %258
    %v260 = vrcp.pop %v256
    %v261 = vrcp.pop %v259
    %v262 = vmul.f32 %v251, %v260
    %v263 = vmul.f32 %v253, %v261
    %v264 = vpack.c.bf16 %v262, %v262
    %v265 = vpack.c.bf16 %v263, %v263
    %266 = vrot.lane.b32.xlu0 %v191, 64
    %v267 = vpop.permute.xlu0 %266
    %v269 = vsel %vm194, %v264, 0
    %vm271 = vcmask 1043456
    %v273 = vsel %vm271, %v267, 0
    %275 = vmatpush.bf16.msra.mxu0 0
    %276 = vmatpush.bf16.msra.mxu0 0
    %277 = vmatpush.bf16.msra.mxu0 0
    %278 = vmatpush.bf16.msra.mxu0 0
    %279 = vmatpush.bf16.msra.mxu0 0
    %280 = vmatpush.bf16.msra.mxu0 0
    %281 = vmatpush.bf16.msra.mxu0 0
    %282 = vmatpush.bf16.msra.mxu0 %v273
    %283 = vmatmul.bf16.gmra.mxu0 %v269
    %v284 = vpop.f32.mrf.mxu0
    %v285 = vadd.f32 0.0, %v284
    %v286 = vpop.f32.mrf.mxu0
    %287 = vdwg.mxu0
    %288 = vrot.lane.b32.xlu0 %v216, 64
    %v289 = vpop.permute.xlu0 %288
    %v291 = vsel %vm194, %v265, 0
    %v294 = vsel %vm271, %v289, 0
    %296 = vmatpush.bf16.msra.mxu0 0
    %297 = vmatpush.bf16.msra.mxu0 0
    %298 = vmatpush.bf16.msra.mxu0 0
    %299 = vmatpush.bf16.msra.mxu0 0
    %300 = vmatpush.bf16.msra.mxu0 0
    %301 = vmatpush.bf16.msra.mxu0 0
    %302 = vmatpush.bf16.msra.mxu0 0
    %303 = vmatpush.bf16.msra.mxu0 %v294
    %304 = vmatmul.bf16.gmra.mxu0 %v291
    %v305 = vpop.f32.mrf.mxu0
    %v306 = vadd.f32 0.0, %v305
    %v307 = vpop.f32.mrf.mxu0
    %308 = vdwg.mxu0
    %309 = vrot.lane.b32.xlu0 %v191, 120
    %v310 = vpop.permute.xlu0 %309
    %311 = vrot.lane.b32.xlu0 %v191, 88
    %v312 = vpop.permute.xlu0 %311
    %v314 = vsel %vm194, %v310, 0
    %v317 = vsel %vm194, %v312, 0
    %319 = vmatpush.bf16.xpose.msra.mxu0 0
    %320 = vmatpush.bf16.xpose.msra.mxu0 0
    %321 = vmatpush.bf16.xpose.msra.mxu0 0
    %322 = vmatpush.bf16.xpose.msra.mxu0 0
    %323 = vmatpush.bf16.xpose.msra.mxu0 0
    %324 = vmatpush.bf16.xpose.msra.mxu0 0
    %325 = vmatpush.bf16.xpose.msra.mxu0 0
    %326 = vmatpush.bf16.xpose.msra.mxu0 %v317
    %327 = vmatmul.bf16.gmra.mxu0 %v314
    %v328 = vpop.f32.mrf.mxu0
    %v329 = vadd.f32 0.0, %v328
    %v330 = vpop.f32.mrf.mxu0
    %331 = vdwg.mxu0
    %332 = vrot.lane.b32.xlu0 %v216, 120
    %v333 = vpop.permute.xlu0 %332
    %334 = vrot.lane.b32.xlu0 %v216, 88
    %v335 = vpop.permute.xlu0 %334
    %v337 = vsel %vm194, %v333, 0
    %v340 = vsel %vm194, %v335, 0
    %342 = vmatpush.bf16.xpose.msra.mxu0 0
    %343 = vmatpush.bf16.xpose.msra.mxu0 0
    %344 = vmatpush.bf16.xpose.msra.mxu0 0
    %345 = vmatpush.bf16.xpose.msra.mxu0 0
    %346 = vmatpush.bf16.xpose.msra.mxu0 0
    %347 = vmatpush.bf16.xpose.msra.mxu0 0
    %348 = vmatpush.bf16.xpose.msra.mxu0 0
    %349 = vmatpush.bf16.xpose.msra.mxu0 %v340
    %350 = vmatmul.bf16.gmra.mxu0 %v337
    %v351 = vpop.f32.mrf.mxu0
    %v352 = vadd.f32 0.0, %v351
    %v353 = vpop.f32.mrf.mxu0
    %354 = vdwg.mxu0
    %v355 = vmul.f32 %v329, 0.35355338
    %v356 = vmul.f32 %v352, 0.35355338
    %v357 = vadd.f32 %v355, %v82
    %v358 = vadd.f32 %v356, %v82
    %v359 = vsel %vm194, %v357, -inf
    %360 = vmax.xlane.f32.xlu0 %v359
    %v361 = vpop.xlane.xlu0 %360
    %v362 = vsel %vm194, %v358, -inf
    %363 = vmax.xlane.f32.xlu0 %v362
    %v364 = vpop.xlane.xlu0 %363
    %v365 = vsub.f32 %v357, %v361
    %v366 = vsub.f32 %v358, %v364
    %v367 = vmul.f32 %v365, 1.442695
    %v368 = vpow.pop %v367
    %v369 = vmul.f32 %v366, 1.442695
    %v370 = vpow.pop %v369
    %v371 = vsel %vm194, %v368, 0.0
    %372 = vadd.xlane.f32.xlu0 %v371
    %v373 = vpop.xlane.xlu0 %372
    %v374 = vsel %vm194, %v370, 0.0
    %375 = vadd.xlane.f32.xlu0 %v374
    %v376 = vpop.xlane.xlu0 %375
    %v377 = vrcp.pop %v373
    %v378 = vrcp.pop %v376
    %v379 = vmul.f32 %v368, %v377
    %v380 = vmul.f32 %v370, %v378
    %v381 = vpack.c.bf16 %v379, %v379
    %v382 = vpack.c.bf16 %v380, %v380
    %383 = vrot.lane.b32.xlu0 %v191, 56
    %v384 = vpop.permute.xlu0 %383
    %v386 = vsel %vm194, %v381, 0
    %v389 = vsel %vm271, %v384, 0
    %391 = vmatpush.bf16.msra.mxu0 0
    %392 = vmatpush.bf16.msra.mxu0 0
    %393 = vmatpush.bf16.msra.mxu0 0
    %394 = vmatpush.bf16.msra.mxu0 0
    %395 = vmatpush.bf16.msra.mxu0 0
    %396 = vmatpush.bf16.msra.mxu0 0
    %397 = vmatpush.bf16.msra.mxu0 0
    %398 = vmatpush.bf16.msra.mxu0 %v389
    %399 = vmatmul.bf16.gmra.mxu0 %v386
    %v400 = vpop.f32.mrf.mxu0
    %v401 = vadd.f32 0.0, %v400
    %v402 = vpop.f32.mrf.mxu0
    %403 = vdwg.mxu0
    %404 = vrot.lane.b32.xlu0 %v216, 56
    %v405 = vpop.permute.xlu0 %404
    %v407 = vsel %vm194, %v382, 0
    %v410 = vsel %vm271, %v405, 0
    %412 = vmatpush.bf16.msra.mxu0 0
    %413 = vmatpush.bf16.msra.mxu0 0
    %414 = vmatpush.bf16.msra.mxu0 0
    %415 = vmatpush.bf16.msra.mxu0 0
    %416 = vmatpush.bf16.msra.mxu0 0
    %417 = vmatpush.bf16.msra.mxu0 0
    %418 = vmatpush.bf16.msra.mxu0 0
    %419 = vmatpush.bf16.msra.mxu0 %v410
    %420 = vmatmul.bf16.gmra.mxu0 %v407
    %v421 = vpop.f32.mrf.mxu0
    %v422 = vadd.f32 0.0, %v421
    %v423 = vpop.f32.mrf.mxu0
    %424 = vdwg.mxu0
    %425 = vrot.lane.b32.xlu0 %v191, 112
    %v426 = vpop.permute.xlu0 %425
    %427 = vrot.lane.b32.xlu0 %v191, 80
    %v428 = vpop.permute.xlu0 %427
    %v430 = vsel %vm194, %v426, 0
    %v433 = vsel %vm194, %v428, 0
    %435 = vmatpush.bf16.xpose.msra.mxu0 0
    %436 = vmatpush.bf16.xpose.msra.mxu0 0
    %437 = vmatpush.bf16.xpose.msra.mxu0 0
    %438 = vmatpush.bf16.xpose.msra.mxu0 0
    %439 = vmatpush.bf16.xpose.msra.mxu0 0
    %440 = vmatpush.bf16.xpose.msra.mxu0 0
    %441 = vmatpush.bf16.xpose.msra.mxu0 0
    %442 = vmatpush.bf16.xpose.msra.mxu0 %v433
    %443 = vmatmul.bf16.gmra.mxu0 %v430
    %v444 = vpop.f32.mrf.mxu0
    %v445 = vadd.f32 0.0, %v444
    %v446 = vpop.f32.mrf.mxu0
    %447 = vdwg.mxu0
    %448 = vrot.lane.b32.xlu0 %v216, 112
    %v449 = vpop.permute.xlu0 %448
    %450 = vrot.lane.b32.xlu0 %v216, 80
    %v451 = vpop.permute.xlu0 %450
    %v453 = vsel %vm194, %v449, 0
    %v456 = vsel %vm194, %v451, 0
    %458 = vmatpush.bf16.xpose.msra.mxu0 0
    %459 = vmatpush.bf16.xpose.msra.mxu0 0
    %460 = vmatpush.bf16.xpose.msra.mxu0 0
    %461 = vmatpush.bf16.xpose.msra.mxu0 0
    %462 = vmatpush.bf16.xpose.msra.mxu0 0
    %463 = vmatpush.bf16.xpose.msra.mxu0 0
    %464 = vmatpush.bf16.xpose.msra.mxu0 0
    %465 = vmatpush.bf16.xpose.msra.mxu0 %v456
    %466 = vmatmul.bf16.gmra.mxu0 %v453
    %v467 = vpop.f32.mrf.mxu0
    %v468 = vadd.f32 0.0, %v467
    %v469 = vpop.f32.mrf.mxu0
    %470 = vdwg.mxu0
    %v471 = vmul.f32 %v445, 0.35355338
    %v472 = vmul.f32 %v468, 0.35355338
    %v473 = vadd.f32 %v471, %v82
    %v474 = vadd.f32 %v472, %v82
    %v475 = vsel %vm194, %v473, -inf
    %476 = vmax.xlane.f32.xlu0 %v475
    %v477 = vpop.xlane.xlu0 %476
    %v478 = vsel %vm194, %v474, -inf
    %479 = vmax.xlane.f32.xlu0 %v478
    %v480 = vpop.xlane.xlu0 %479
    %v481 = vsub.f32 %v473, %v477
    %v482 = vsub.f32 %v474, %v480
    %v483 = vmul.f32 %v481, 1.442695
    %v484 = vpow.pop %v483
    %v485 = vmul.f32 %v482, 1.442695
    %v486 = vpow.pop %v485
    %v487 = vsel %vm194, %v484, 0.0
    %488 = vadd.xlane.f32.xlu0 %v487
    %v489 = vpop.xlane.xlu0 %488
    %v490 = vsel %vm194, %v486, 0.0
    %491 = vadd.xlane.f32.xlu0 %v490
    %v492 = vpop.xlane.xlu0 %491
    %v493 = vrcp.pop %v489
    %v494 = vrcp.pop %v492
    %v495 = vmul.f32 %v484, %v493
    %v496 = vmul.f32 %v486, %v494
    %v497 = vpack.c.bf16 %v495, %v495
    %v498 = vpack.c.bf16 %v496, %v496
    %499 = vrot.lane.b32.xlu0 %v191, 48
    %v500 = vpop.permute.xlu0 %499
    %v502 = vsel %vm194, %v497, 0
    %v505 = vsel %vm271, %v500, 0
    %507 = vmatpush.bf16.msra.mxu0 0
    %508 = vmatpush.bf16.msra.mxu0 0
    %509 = vmatpush.bf16.msra.mxu0 0
    %510 = vmatpush.bf16.msra.mxu0 0
    %511 = vmatpush.bf16.msra.mxu0 0
    %512 = vmatpush.bf16.msra.mxu0 0
    %513 = vmatpush.bf16.msra.mxu0 0
    %514 = vmatpush.bf16.msra.mxu0 %v505
    %515 = vmatmul.bf16.gmra.mxu0 %v502
    %v516 = vpop.f32.mrf.mxu0
    %v517 = vadd.f32 0.0, %v516
    %v518 = vpop.f32.mrf.mxu0
    %519 = vdwg.mxu0
    %520 = vrot.lane.b32.xlu0 %v216, 48
    %v521 = vpop.permute.xlu0 %520
    %v523 = vsel %vm194, %v498, 0
    %v526 = vsel %vm271, %v521, 0
    %528 = vmatpush.bf16.msra.mxu0 0
    %529 = vmatpush.bf16.msra.mxu0 0
    %530 = vmatpush.bf16.msra.mxu0 0
    %531 = vmatpush.bf16.msra.mxu0 0
    %532 = vmatpush.bf16.msra.mxu0 0
    %533 = vmatpush.bf16.msra.mxu0 0
    %534 = vmatpush.bf16.msra.mxu0 0
    %535 = vmatpush.bf16.msra.mxu0 %v526
    %536 = vmatmul.bf16.gmra.mxu0 %v523
    %v537 = vpop.f32.mrf.mxu0
    %v538 = vadd.f32 0.0, %v537
    %v539 = vpop.f32.mrf.mxu0
    %540 = vdwg.mxu0
    %541 = vrot.lane.b32.xlu0 %v191, 104
    %v542 = vpop.permute.xlu0 %541
    %543 = vrot.lane.b32.xlu0 %v191, 72
    %v544 = vpop.permute.xlu0 %543
    %v546 = vsel %vm194, %v542, 0
    %v549 = vsel %vm194, %v544, 0
    %551 = vmatpush.bf16.xpose.msra.mxu0 0
    %552 = vmatpush.bf16.xpose.msra.mxu0 0
    %553 = vmatpush.bf16.xpose.msra.mxu0 0
    %554 = vmatpush.bf16.xpose.msra.mxu0 0
    %555 = vmatpush.bf16.xpose.msra.mxu0 0
    %556 = vmatpush.bf16.xpose.msra.mxu0 0
    %557 = vmatpush.bf16.xpose.msra.mxu0 0
    %558 = vmatpush.bf16.xpose.msra.mxu0 %v549
    %559 = vmatmul.bf16.gmra.mxu0 %v546
    %v560 = vpop.f32.mrf.mxu0
    %v561 = vadd.f32 0.0, %v560
    %v562 = vpop.f32.mrf.mxu0
    %563 = vdwg.mxu0
    %564 = vrot.lane.b32.xlu0 %v216, 104
    %v565 = vpop.permute.xlu0 %564
    %566 = vrot.lane.b32.xlu0 %v216, 72
    %v567 = vpop.permute.xlu0 %566
    %v569 = vsel %vm194, %v565, 0
    %v572 = vsel %vm194, %v567, 0
    %574 = vmatpush.bf16.xpose.msra.mxu0 0
    %575 = vmatpush.bf16.xpose.msra.mxu0 0
    %576 = vmatpush.bf16.xpose.msra.mxu0 0
    %577 = vmatpush.bf16.xpose.msra.mxu0 0
    %578 = vmatpush.bf16.xpose.msra.mxu0 0
    %579 = vmatpush.bf16.xpose.msra.mxu0 0
    %580 = vmatpush.bf16.xpose.msra.mxu0 0
    %581 = vmatpush.bf16.xpose.msra.mxu0 %v572
    %582 = vmatmul.bf16.gmra.mxu0 %v569
    %v583 = vpop.f32.mrf.mxu0
    %v584 = vadd.f32 0.0, %v583
    %v585 = vpop.f32.mrf.mxu0
    %586 = vdwg.mxu0
    %v587 = vmul.f32 %v561, 0.35355338
    %v588 = vmul.f32 %v584, 0.35355338
    %v589 = vadd.f32 %v587, %v82
    %v590 = vadd.f32 %v588, %v82
    %v591 = vsel %vm194, %v589, -inf
    %592 = vmax.xlane.f32.xlu0 %v591
    %v593 = vpop.xlane.xlu0 %592
    %v594 = vsel %vm194, %v590, -inf
    %595 = vmax.xlane.f32.xlu0 %v594
    %v596 = vpop.xlane.xlu0 %595
    %v597 = vsub.f32 %v589, %v593
    %v598 = vsub.f32 %v590, %v596
    %v599 = vmul.f32 %v597, 1.442695
    %v600 = vpow.pop %v599
    %v601 = vmul.f32 %v598, 1.442695
    %v602 = vpow.pop %v601
    %v603 = vsel %vm194, %v600, 0.0
    %604 = vadd.xlane.f32.xlu0 %v603
    %v605 = vpop.xlane.xlu0 %604
    %v606 = vsel %vm194, %v602, 0.0
    %607 = vadd.xlane.f32.xlu0 %v606
    %v608 = vpop.xlane.xlu0 %607
    %v609 = vrcp.pop %v605
    %v610 = vrcp.pop %v608
    %v611 = vmul.f32 %v600, %v609
    %v612 = vmul.f32 %v602, %v610
    %v613 = vpack.c.bf16 %v611, %v611
    %v614 = vpack.c.bf16 %v612, %v612
    %615 = vrot.lane.b32.xlu0 %v191, 40
    %v616 = vpop.permute.xlu0 %615
    %v618 = vsel %vm194, %v613, 0
    %v621 = vsel %vm271, %v616, 0
    %623 = vmatpush.bf16.msra.mxu0 0
    %624 = vmatpush.bf16.msra.mxu0 0
    %625 = vmatpush.bf16.msra.mxu0 0
    %626 = vmatpush.bf16.msra.mxu0 0
    %627 = vmatpush.bf16.msra.mxu0 0
    %628 = vmatpush.bf16.msra.mxu0 0
    %629 = vmatpush.bf16.msra.mxu0 0
    %630 = vmatpush.bf16.msra.mxu0 %v621
    %631 = vmatmul.bf16.gmra.mxu0 %v618
    %v632 = vpop.f32.mrf.mxu0
    %v633 = vadd.f32 0.0, %v632
    %v634 = vpop.f32.mrf.mxu0
    %635 = vdwg.mxu0
    %636 = vrot.lane.b32.xlu0 %v216, 40
    %v637 = vpop.permute.xlu0 %636
    %v639 = vsel %vm194, %v614, 0
    %v642 = vsel %vm271, %v637, 0
    %644 = vmatpush.bf16.msra.mxu0 0
    %645 = vmatpush.bf16.msra.mxu0 0
    %646 = vmatpush.bf16.msra.mxu0 0
    %647 = vmatpush.bf16.msra.mxu0 0
    %648 = vmatpush.bf16.msra.mxu0 0
    %649 = vmatpush.bf16.msra.mxu0 0
    %650 = vmatpush.bf16.msra.mxu0 0
    %651 = vmatpush.bf16.msra.mxu0 %v642
    %652 = vmatmul.bf16.gmra.mxu0 %v639
    %v653 = vpop.f32.mrf.mxu0
    %v654 = vadd.f32 0.0, %v653
    %v655 = vpop.f32.mrf.mxu0
    %656 = vdwg.mxu0
    %659 = vrot.lane.b32.xlu0 %v401, 8
    %v660 = vpop.permute.xlu0 %659
    %661 = vrot.lane.b32.xlu0 %v422, 8
    %v662 = vpop.permute.xlu0 %661
    %667 = vrot.lane.b32.xlu0 %v517, 16
    %v668 = vpop.permute.xlu0 %667
    %669 = vrot.lane.b32.xlu0 %v538, 16
    %v670 = vpop.permute.xlu0 %669
    %675 = vrot.lane.b32.xlu0 %v633, 24
    %v676 = vpop.permute.xlu0 %675
    %677 = vrot.lane.b32.xlu0 %v654, 24
    %v678 = vpop.permute.xlu0 %677
    %v681 = vsel %vm194, %v285, %v660
    %v682 = vsel %vm194, %v306, %v662
    %vm683 = vcmask 130048
    %v684 = vsel %vm683, %v681, %v668
    %v685 = vsel %vm683, %v682, %v670
    %vm686 = vcmask 195584
    %v687 = vsel %vm686, %v684, %v676
    %v688 = vsel %vm686, %v685, %v678
    %v689 = vpack.c.bf16 %v688, %v687
    %v690 = vld [vmem:[%s8] sm:$0xf]
    %v691 = vld [vmem:[%s8 + $0x4] sm:$0xf]
    %v692 = vld [vmem:[%s8 + $0x8] sm:$0xf]
    %v693 = vld [vmem:[%s8 + $0xc] sm:$0xf]
    %v698 = vunpack.c.l.b16 %v690
    %v699 = vunpack.c.l.b16 %v691
    %v700 = vunpack.c.l.b16 %v692
    %v701 = vunpack.c.l.b16 %v693
    %v702 = vpack.c.b16 %v699, %v698
    %v703 = vpack.c.b16 %v701, %v700
    %v707 = vsel %vm87, %v689, 0
    %709 = vmatpush.bf16.msra.mxu0 0
    %710 = vmatpush.bf16.msra.mxu0 0
    %711 = vmatpush.bf16.msra.mxu0 0
    %712 = vmatpush.bf16.msra.mxu0 0
    %713 = vmatpush.bf16.msra.mxu0 0
    %714 = vmatpush.bf16.msra.mxu0 0
    %715 = vmatpush.bf16.msra.mxu0 %v703
    %716 = vmatpush.bf16.msra.mxu0 %v702
    %717 = vmatmul.bf16.gmra.mxu0 %v707
    %v718 = vpop.f32.mrf.mxu0
    %v719 = vadd.f32 0.0, %v718
    %v720 = vpop.f32.mrf.mxu0
    %v721 = vadd.f32 0.0, %v720
    %722 = vdwg.mxu0
    %v723 = vadd.f32 %v83, %v719
    %v724 = vadd.f32 %v84, %v721
    %v725 = vld [vmem:[%s9] sm:$0x1]
    %v727 = vperm.slane %v725, 0
    %v729 = vadd.f32 %v723, %v727
    %v730 = vadd.f32 %v724, %v727
    %v731 = vld [vmem:[%s10] sm:$0x1]
    %v732 = vld [vmem:[%s11] sm:$0x1]
    %v733 = vsel %vm87, %v729, 0.0
    %734 = vadd.xlane.f32.xlu0 %v733
    %v735 = vpop.xlane.xlu0 %734
    %v736 = vsel %vm87, %v730, 0.0
    %737 = vadd.xlane.f32.xlu0 %v736
    %v738 = vpop.xlane.xlu0 %737
    %v739 = vmul.f32 %v735, %v100
    %v740 = vmul.f32 %v738, %v100
    %v741 = vsub.f32 %v729, %v739
    %v742 = vsub.f32 %v730, %v740
    %v743 = vmul.f32 %v741, %v741
    %v744 = vmul.f32 %v742, %v742
    %v745 = vsel %vm87, %v743, 0.0
    %746 = vadd.xlane.f32.xlu0 %v745
    %v747 = vpop.xlane.xlu0 %746
    %v748 = vsel %vm87, %v744, 0.0
    %749 = vadd.xlane.f32.xlu0 %v748
    %v750 = vpop.xlane.xlu0 %749
    %v751 = vmul.f32 %v747, %v100
    %v752 = vmul.f32 %v750, %v100
    %v753 = vadd.f32 %v751, 1e-05
    %v754 = vadd.f32 %v752, 1e-05
    %v755 = vrsqrt.pop %v753
    %v756 = vmul.f32 %v755, %v753
    %v757 = vmul.f32 %v756, %v755
    %v758 = vmul.f32 0.5, %v757
    %v759 = vsub.f32 1.5, %v758
    %v760 = vmul.f32 %v755, %v759
    %vm761 = vweird.f32 %v753
    %vm762 = vweird.f32 %v755
    %vm763 = vmor %vm761, %vm762
    %v764 = vsel %vm763, %v755, %v760
    %v765 = vrsqrt.pop %v754
    %v766 = vmul.f32 %v765, %v754
    %v767 = vmul.f32 %v766, %v765
    %v768 = vmul.f32 0.5, %v767
    %v769 = vsub.f32 1.5, %v768
    %v770 = vmul.f32 %v765, %v769
    %vm771 = vweird.f32 %v754
    %vm772 = vweird.f32 %v765
    %vm773 = vmor %vm771, %vm772
    %v774 = vsel %vm773, %v765, %v770
    %v775 = vmul.f32 %v741, %v764
    %v776 = vmul.f32 %v742, %v774
    %v778 = vperm.slane %v731, 0
    %v780 = vmul.f32 %v775, %v778
    %v781 = vmul.f32 %v776, %v778
    %v783 = vperm.slane %v732, 0
    %v785 = vadd.f32 %v780, %v783
    %v786 = vadd.f32 %v781, %v783
    %v787 = vpack.c.bf16 %v786, %v785
    %v788 = vld [vmem:[%s12] sm:$0xf]
    %v789 = vld [vmem:[%s12 + $0x4] sm:$0xf]
    %v790 = vld [vmem:[%s12 + $0x8] sm:$0xf]
    %v791 = vld [vmem:[%s12 + $0xc] sm:$0xf]
    %v792 = vld [vmem:[%s13] sm:$0x1]
    %v794 = vperm.slane %v792, 0
    %v800 = vunpack.c.l.b16 %v788
    %v801 = vunpack.c.l.b16 %v789
    %v802 = vunpack.c.l.b16 %v790
    %v803 = vunpack.c.l.b16 %v791
    %v804 = vpack.c.b16 %v801, %v800
    %v805 = vpack.c.b16 %v803, %v802
    %v809 = vsel %vm87, %v787, 0
    %811 = vmatpush.bf16.msra.mxu0 0
    %812 = vmatpush.bf16.msra.mxu0 0
    %813 = vmatpush.bf16.msra.mxu0 0
    %814 = vmatpush.bf16.msra.mxu0 0
    %815 = vmatpush.bf16.msra.mxu0 0
    %816 = vmatpush.bf16.msra.mxu0 0
    %817 = vmatpush.bf16.msra.mxu0 %v805
    %818 = vmatpush.bf16.msra.mxu0 %v804
    %819 = vmatmul.bf16.gmra.mxu0 %v809
    %v820 = vpop.f32.mrf.mxu0
    %v821 = vadd.f32 %v794, %v820
    %v822 = vpop.f32.mrf.mxu0
    %v823 = vadd.f32 %v794, %v822
    %824 = vdwg.mxu0
    %v825 = vmul.f32 %v821, 1.702
    %v826 = vmul.f32 %v823, 1.702
    %v827 = vxor.u32 %v825, 2147483648
    %v828 = vxor.u32 %v826, 2147483648
    %v829 = vmul.f32 %v827, 1.442695
    %v830 = vpow.pop %v829
    %v831 = vmul.f32 %v828, 1.442695
    %v832 = vpow.pop %v831
    %v833 = vadd.f32 %v830, 1.0
    %v834 = vadd.f32 %v832, 1.0
    %v835 = vrcp.pop %v833
    %v836 = vmul.f32 %v833, %v835
    %v837 = vsub.f32 1.0, %v836
    %v838 = vmul.f32 %v835, %v837
    %v839 = vadd.f32 %v835, %v838
    %vm840 = vweird.f32 %v833
    %vm841 = vweird.f32 %v835
    %vm842 = vmor %vm840, %vm841
    %v843 = vsel %vm842, %v835, %v839
    %v844 = vand.u32 2147483647, %v833
    %vm845 = vcmp.eq.f32.partialorder %v844, 8.507059e+37
    %v846 = vand.u32 %v833, 2147483648
    %v847 = vor.u32 1.1754944e-38, %v846
    %v848 = vsel %vm845, %v847, %v843
    %v849 = vmul.f32 1.0, %v848
    %v850 = vrcp.pop %v834
    %v851 = vmul.f32 %v834, %v850
    %v852 = vsub.f32 1.0, %v851
    %v853 = vmul.f32 %v850, %v852
    %v854 = vadd.f32 %v850, %v853
    %vm855 = vweird.f32 %v834
    %vm856 = vweird.f32 %v850
    %vm857 = vmor %vm855, %vm856
    %v858 = vsel %vm857, %v850, %v854
    %v859 = vand.u32 2147483647, %v834
    %vm860 = vcmp.eq.f32.partialorder %v859, 8.507059e+37
    %v861 = vand.u32 %v834, 2147483648
    %v862 = vor.u32 1.1754944e-38, %v861
    %v863 = vsel %vm860, %v862, %v858
    %v864 = vmul.f32 1.0, %v863
    %v865 = vmul.f32 %v821, %v849
    %v866 = vmul.f32 %v823, %v864
    %v867 = vpack.c.bf16 %v866, %v865
    %v868 = vld [vmem:[%s14] sm:$0xf]
    %v869 = vld [vmem:[%s14 + $0x4] sm:$0xf]
    %v870 = vld [vmem:[%s14 + $0x8] sm:$0xf]
    %v871 = vld [vmem:[%s14 + $0xc] sm:$0xf]
    %v872 = vld [vmem:[%s14 + $0x10] sm:$0xf]
    %v873 = vld [vmem:[%s14 + $0x14] sm:$0xf]
    %v874 = vld [vmem:[%s14 + $0x18] sm:$0xf]
    %v875 = vld [vmem:[%s14 + $0x1c] sm:$0xf]
    %v876 = vld [vmem:[%s14 + $0x20] sm:$0xf]
    %v877 = vld [vmem:[%s14 + $0x24] sm:$0xf]
    %v878 = vld [vmem:[%s14 + $0x28] sm:$0xf]
    %v879 = vld [vmem:[%s14 + $0x2c] sm:$0xf]
    %v880 = vld [vmem:[%s14 + $0x30] sm:$0xf]
    %v881 = vld [vmem:[%s14 + $0x34] sm:$0xf]
    %v882 = vld [vmem:[%s14 + $0x38] sm:$0xf]
    %v883 = vld [vmem:[%s14 + $0x3c] sm:$0xf]
    %v900 = vunpack.c.l.b16 %v868
    %v901 = vunpack.c.l.b16 %v869
    %v902 = vunpack.c.l.b16 %v870
    %v903 = vunpack.c.l.b16 %v871
    %v904 = vunpack.c.l.b16 %v872
    %v905 = vunpack.c.l.b16 %v873
    %v906 = vunpack.c.l.b16 %v874
    %v907 = vunpack.c.l.b16 %v875
    %v908 = vunpack.c.l.b16 %v876
    %v909 = vunpack.c.l.b16 %v877
    %v910 = vunpack.c.l.b16 %v878
    %v911 = vunpack.c.l.b16 %v879
    %v912 = vunpack.c.l.b16 %v880
    %v913 = vunpack.c.l.b16 %v881
    %v914 = vunpack.c.l.b16 %v882
    %v915 = vunpack.c.l.b16 %v883
    %v916 = vpack.c.b16 %v901, %v900
    %v917 = vpack.c.b16 %v903, %v902
    %v918 = vpack.c.b16 %v905, %v904
    %v919 = vpack.c.b16 %v907, %v906
    %v920 = vpack.c.b16 %v909, %v908
    %v921 = vpack.c.b16 %v911, %v910
    %v922 = vpack.c.b16 %v913, %v912
    %v923 = vpack.c.b16 %v915, %v914
    %932 = vmatpush.bf16.msra.mxu0 %v923
    %933 = vmatpush.bf16.msra.mxu0 %v922
    %934 = vmatpush.bf16.msra.mxu0 %v921
    %935 = vmatpush.bf16.msra.mxu0 %v920
    %936 = vmatpush.bf16.msra.mxu0 %v919
    %937 = vmatpush.bf16.msra.mxu0 %v918
    %938 = vmatpush.bf16.msra.mxu0 %v917
    %939 = vmatpush.bf16.msra.mxu0 %v916
    %940 = vmatmul.bf16.gmra.mxu0 %v867
    %v941 = vpop.f32.mrf.mxu0
    %v942 = vadd.f32 0.0, %v941
    %v943 = vpop.f32.mrf.mxu0
    %v944 = vadd.f32 0.0, %v943
    %945 = vdwg.mxu0
    %v946 = vadd.f32 %v729, %v942
    %v947 = vadd.f32 %v730, %v944
    %v948 = vld [vmem:[%s15] sm:$0x1]
    %v950 = vperm.slane %v948, 0
    %v952 = vadd.f32 %v946, %v950
    %v953 = vadd.f32 %v947, %v950
    %s954 = scalar_lea.vmem %s4, 1
    %v955 = vld [vmem:[%s954] sm:$0x1]
    %s956 = scalar_lea.vmem %s5, 1
    %v957 = vld [vmem:[%s956] sm:$0x1]
    %v958 = vsel %vm87, %v952, 0.0
    %959 = vadd.xlane.f32.xlu0 %v958
    %v960 = vpop.xlane.xlu0 %959
    %v961 = vsel %vm87, %v953, 0.0
    %962 = vadd.xlane.f32.xlu0 %v961
    %v963 = vpop.xlane.xlu0 %962
    %v964 = vmul.f32 %v960, %v100
    %v965 = vmul.f32 %v963, %v100
    %v966 = vsub.f32 %v952, %v964
    %v967 = vsub.f32 %v953, %v965
    %v968 = vmul.f32 %v966, %v966
    %v969 = vmul.f32 %v967, %v967
    %v970 = vsel %vm87, %v968, 0.0
    %971 = vadd.xlane.f32.xlu0 %v970
    %v972 = vpop.xlane.xlu0 %971
    %v973 = vsel %vm87, %v969, 0.0
    %974 = vadd.xlane.f32.xlu0 %v973
    %v975 = vpop.xlane.xlu0 %974
    %v976 = vmul.f32 %v972, %v100
    %v977 = vmul.f32 %v975, %v100
    %v978 = vadd.f32 %v976, 1e-05
    %v979 = vadd.f32 %v977, 1e-05
    %v980 = vrsqrt.pop %v978
    %v981 = vmul.f32 %v980, %v978
    %v982 = vmul.f32 %v981, %v980
    %v983 = vmul.f32 0.5, %v982
    %v984 = vsub.f32 1.5, %v983
    %v985 = vmul.f32 %v980, %v984
    %vm986 = vweird.f32 %v978
    %vm987 = vweird.f32 %v980
    %vm988 = vmor %vm986, %vm987
    %v989 = vsel %vm988, %v980, %v985
    %v990 = vrsqrt.pop %v979
    %v991 = vmul.f32 %v990, %v979
    %v992 = vmul.f32 %v991, %v990
    %v993 = vmul.f32 0.5, %v992
    %v994 = vsub.f32 1.5, %v993
    %v995 = vmul.f32 %v990, %v994
    %vm996 = vweird.f32 %v979
    %vm997 = vweird.f32 %v990
    %vm998 = vmor %vm996, %vm997
    %v999 = vsel %vm998, %v990, %v995
    %v1000 = vmul.f32 %v966, %v989
    %v1001 = vmul.f32 %v967, %v999
    %v1003 = vperm.slane %v955, 0
    %v1005 = vmul.f32 %v1000, %v1003
    %v1006 = vmul.f32 %v1001, %v1003
    %v1008 = vperm.slane %v957, 0
    %v1010 = vadd.f32 %v1005, %v1008
    %v1011 = vadd.f32 %v1006, %v1008
    %v1012 = vpack.c.bf16 %v1011, %v1010
    %s1013 = scalar_lea.vmem %s6, 16
    %v1014 = vld [vmem:[%s1013] sm:$0xf]
    %v1015 = vld [vmem:[%s1013 + $0x4] sm:$0xf]
    %v1016 = vld [vmem:[%s1013 + $0x8] sm:$0xf]
    %v1017 = vld [vmem:[%s1013 + $0xc] sm:$0xf]
    %s1018 = scalar_lea.vmem %s7, 1
    %v1019 = vld [vmem:[%s1018] sm:$0x1]
    %v1021 = vperm.slane %v1019, 0
    %v1027 = vunpack.c.l.b16 %v1014
    %v1028 = vunpack.c.l.b16 %v1015
    %v1029 = vunpack.c.l.b16 %v1016
    %v1030 = vunpack.c.l.b16 %v1017
    %v1031 = vpack.c.b16 %v1028, %v1027
    %v1032 = vpack.c.b16 %v1030, %v1029
    %v1036 = vsel %vm87, %v1012, 0
    %1038 = vmatpush.bf16.msra.mxu0 0
    %1039 = vmatpush.bf16.msra.mxu0 0
    %1040 = vmatpush.bf16.msra.mxu0 0
    %1041 = vmatpush.bf16.msra.mxu0 0
    %1042 = vmatpush.bf16.msra.mxu0 0
    %1043 = vmatpush.bf16.msra.mxu0 0
    %1044 = vmatpush.bf16.msra.mxu0 %v1032
    %1045 = vmatpush.bf16.msra.mxu0 %v1031
    %1046 = vmatmul.bf16.gmra.mxu0 %v1036
    %v1047 = vpop.f32.mrf.mxu0
    %v1048 = vadd.f32 %v1021, %v1047
    %v1049 = vpop.f32.mrf.mxu0
    %v1050 = vadd.f32 %v1021, %v1049
    %1051 = vdwg.mxu0
    %v1052 = vpack.c.bf16 %v1048, %v1048
    %v1053 = vpack.c.bf16 %v1050, %v1050
    %v1055 = vunpack.c.l.b16 %v1052
    %v1056 = vpack.c.b16 %v1055, %v1055
    %1057 = vrot.lane.b32.xlu0 %v1056, 96
    %v1058 = vpop.permute.xlu0 %1057
    %v1060 = vsel %vm194, %v1052, 0
    %v1063 = vsel %vm194, %v1058, 0
    %1065 = vmatpush.bf16.xpose.msra.mxu0 0
    %1066 = vmatpush.bf16.xpose.msra.mxu0 0
    %1067 = vmatpush.bf16.xpose.msra.mxu0 0
    %1068 = vmatpush.bf16.xpose.msra.mxu0 0
    %1069 = vmatpush.bf16.xpose.msra.mxu0 0
    %1070 = vmatpush.bf16.xpose.msra.mxu0 0
    %1071 = vmatpush.bf16.xpose.msra.mxu0 0
    %1072 = vmatpush.bf16.xpose.msra.mxu0 %v1063
    %1073 = vmatmul.bf16.gmra.mxu0 %v1060
    %v1074 = vpop.f32.mrf.mxu0
    %v1075 = vadd.f32 0.0, %v1074
    %v1076 = vpop.f32.mrf.mxu0
    %1077 = vdwg.mxu0
    %v1079 = vunpack.c.l.b16 %v1053
    %v1080 = vpack.c.b16 %v1079, %v1079
    %1081 = vrot.lane.b32.xlu0 %v1080, 96
    %v1082 = vpop.permute.xlu0 %1081
    %v1084 = vsel %vm194, %v1053, 0
    %v1087 = vsel %vm194, %v1082, 0
    %1089 = vmatpush.bf16.xpose.msra.mxu0 0
    %1090 = vmatpush.bf16.xpose.msra.mxu0 0
    %1091 = vmatpush.bf16.xpose.msra.mxu0 0
    %1092 = vmatpush.bf16.xpose.msra.mxu0 0
    %1093 = vmatpush.bf16.xpose.msra.mxu0 0
    %1094 = vmatpush.bf16.xpose.msra.mxu0 0
    %1095 = vmatpush.bf16.xpose.msra.mxu0 0
    %1096 = vmatpush.bf16.xpose.msra.mxu0 %v1087
    %1097 = vmatmul.bf16.gmra.mxu0 %v1084
    %v1098 = vpop.f32.mrf.mxu0
    %v1099 = vadd.f32 0.0, %v1098
    %v1100 = vpop.f32.mrf.mxu0
    %1101 = vdwg.mxu0
    %v1102 = vmul.f32 %v1075, 0.35355338
    %v1103 = vmul.f32 %v1099, 0.35355338
    %v1104 = vadd.f32 %v1102, %v82
    %v1105 = vadd.f32 %v1103, %v82
    %v1106 = vsel %vm194, %v1104, -inf
    %1107 = vmax.xlane.f32.xlu0 %v1106
    %v1108 = vpop.xlane.xlu0 %1107
    %v1109 = vsel %vm194, %v1105, -inf
    %1110 = vmax.xlane.f32.xlu0 %v1109
    %v1111 = vpop.xlane.xlu0 %1110
    %v1112 = vsub.f32 %v1104, %v1108
    %v1113 = vsub.f32 %v1105, %v1111
    %v1114 = vmul.f32 %v1112, 1.442695
    %v1115 = vpow.pop %v1114
    %v1116 = vmul.f32 %v1113, 1.442695
    %v1117 = vpow.pop %v1116
    %v1118 = vsel %vm194, %v1115, 0.0
    %1119 = vadd.xlane.f32.xlu0 %v1118
    %v1120 = vpop.xlane.xlu0 %1119
    %v1121 = vsel %vm194, %v1117, 0.0
    %1122 = vadd.xlane.f32.xlu0 %v1121
    %v1123 = vpop.xlane.xlu0 %1122
    %v1124 = vrcp.pop %v1120
    %v1125 = vrcp.pop %v1123
    %v1126 = vmul.f32 %v1115, %v1124
    %v1127 = vmul.f32 %v1117, %v1125
    %v1128 = vpack.c.bf16 %v1126, %v1126
    %v1129 = vpack.c.bf16 %v1127, %v1127
    %1130 = vrot.lane.b32.xlu0 %v1056, 64
    %v1131 = vpop.permute.xlu0 %1130
    %v1133 = vsel %vm194, %v1128, 0
    %v1136 = vsel %vm271, %v1131, 0
    %1138 = vmatpush.bf16.msra.mxu0 0
    %1139 = vmatpush.bf16.msra.mxu0 0
    %1140 = vmatpush.bf16.msra.mxu0 0
    %1141 = vmatpush.bf16.msra.mxu0 0
    %1142 = vmatpush.bf16.msra.mxu0 0
    %1143 = vmatpush.bf16.msra.mxu0 0
    %1144 = vmatpush.bf16.msra.mxu0 0
    %1145 = vmatpush.bf16.msra.mxu0 %v1136
    %1146 = vmatmul.bf16.gmra.mxu0 %v1133
    %v1147 = vpop.f32.mrf.mxu0
    %v1148 = vadd.f32 0.0, %v1147
    %v1149 = vpop.f32.mrf.mxu0
    %1150 = vdwg.mxu0
    %1151 = vrot.lane.b32.xlu0 %v1080, 64
    %v1152 = vpop.permute.xlu0 %1151
    %v1154 = vsel %vm194, %v1129, 0
    %v1157 = vsel %vm271, %v1152, 0
    %1159 = vmatpush.bf16.msra.mxu0 0
    %1160 = vmatpush.bf16.msra.mxu0 0
    %1161 = vmatpush.bf16.msra.mxu0 0
    %1162 = vmatpush.bf16.msra.mxu0 0
    %1163 = vmatpush.bf16.msra.mxu0 0
    %1164 = vmatpush.bf16.msra.mxu0 0
    %1165 = vmatpush.bf16.msra.mxu0 0
    %1166 = vmatpush.bf16.msra.mxu0 %v1157
    %1167 = vmatmul.bf16.gmra.mxu0 %v1154
    %v1168 = vpop.f32.mrf.mxu0
    %v1169 = vadd.f32 0.0, %v1168
    %v1170 = vpop.f32.mrf.mxu0
    %1171 = vdwg.mxu0
    %1172 = vrot.lane.b32.xlu0 %v1056, 120
    %v1173 = vpop.permute.xlu0 %1172
    %1174 = vrot.lane.b32.xlu0 %v1056, 88
    %v1175 = vpop.permute.xlu0 %1174
    %v1177 = vsel %vm194, %v1173, 0
    %v1180 = vsel %vm194, %v1175, 0
    %1182 = vmatpush.bf16.xpose.msra.mxu0 0
    %1183 = vmatpush.bf16.xpose.msra.mxu0 0
    %1184 = vmatpush.bf16.xpose.msra.mxu0 0
    %1185 = vmatpush.bf16.xpose.msra.mxu0 0
    %1186 = vmatpush.bf16.xpose.msra.mxu0 0
    %1187 = vmatpush.bf16.xpose.msra.mxu0 0
    %1188 = vmatpush.bf16.xpose.msra.mxu0 0
    %1189 = vmatpush.bf16.xpose.msra.mxu0 %v1180
    %1190 = vmatmul.bf16.gmra.mxu0 %v1177
    %v1191 = vpop.f32.mrf.mxu0
    %v1192 = vadd.f32 0.0, %v1191
    %v1193 = vpop.f32.mrf.mxu0
    %1194 = vdwg.mxu0
    %1195 = vrot.lane.b32.xlu0 %v1080, 120
    %v1196 = vpop.permute.xlu0 %1195
    %1197 = vrot.lane.b32.xlu0 %v1080, 88
    %v1198 = vpop.permute.xlu0 %1197
    %v1200 = vsel %vm194, %v1196, 0
    %v1203 = vsel %vm194, %v1198, 0
    %1205 = vmatpush.bf16.xpose.msra.mxu0 0
    %1206 = vmatpush.bf16.xpose.msra.mxu0 0
    %1207 = vmatpush.bf16.xpose.msra.mxu0 0
    %1208 = vmatpush.bf16.xpose.msra.mxu0 0
    %1209 = vmatpush.bf16.xpose.msra.mxu0 0
    %1210 = vmatpush.bf16.xpose.msra.mxu0 0
    %1211 = vmatpush.bf16.xpose.msra.mxu0 0
    %1212 = vmatpush.bf16.xpose.msra.mxu0 %v1203
    %1213 = vmatmul.bf16.gmra.mxu0 %v1200
    %v1214 = vpop.f32.mrf.mxu0
    %v1215 = vadd.f32 0.0, %v1214
    %v1216 = vpop.f32.mrf.mxu0
    %1217 = vdwg.mxu0
    %v1218 = vmul.f32 %v1192, 0.35355338
    %v1219 = vmul.f32 %v1215, 0.35355338
    %v1220 = vadd.f32 %v1218, %v82
    %v1221 = vadd.f32 %v1219, %v82
    %v1222 = vsel %vm194, %v1220, -inf
    %1223 = vmax.xlane.f32.xlu0 %v1222
    %v1224 = vpop.xlane.xlu0 %1223
    %v1225 = vsel %vm194, %v1221, -inf
    %1226 = vmax.xlane.f32.xlu0 %v1225
    %v1227 = vpop.xlane.xlu0 %1226
    %v1228 = vsub.f32 %v1220, %v1224
    %v1229 = vsub.f32 %v1221, %v1227
    %v1230 = vmul.f32 %v1228, 1.442695
    %v1231 = vpow.pop %v1230
    %v1232 = vmul.f32 %v1229, 1.442695
    %v1233 = vpow.pop %v1232
    %v1234 = vsel %vm194, %v1231, 0.0
    %1235 = vadd.xlane.f32.xlu0 %v1234
    %v1236 = vpop.xlane.xlu0 %1235
    %v1237 = vsel %vm194, %v1233, 0.0
    %1238 = vadd.xlane.f32.xlu0 %v1237
    %v1239 = vpop.xlane.xlu0 %1238
    %v1240 = vrcp.pop %v1236
    %v1241 = vrcp.pop %v1239
    %v1242 = vmul.f32 %v1231, %v1240
    %v1243 = vmul.f32 %v1233, %v1241
    %v1244 = vpack.c.bf16 %v1242, %v1242
    %v1245 = vpack.c.bf16 %v1243, %v1243
    %1246 = vrot.lane.b32.xlu0 %v1056, 56
    %v1247 = vpop.permute.xlu0 %1246
    %v1249 = vsel %vm194, %v1244, 0
    %v1252 = vsel %vm271, %v1247, 0
    %1254 = vmatpush.bf16.msra.mxu0 0
    %1255 = vmatpush.bf16.msra.mxu0 0
    %1256 = vmatpush.bf16.msra.mxu0 0
    %1257 = vmatpush.bf16.msra.mxu0 0
    %1258 = vmatpush.bf16.msra.mxu0 0
    %1259 = vmatpush.bf16.msra.mxu0 0
    %1260 = vmatpush.bf16.msra.mxu0 0
    %1261 = vmatpush.bf16.msra.mxu0 %v1252
    %1262 = vmatmul.bf16.gmra.mxu0 %v1249
    %v1263 = vpop.f32.mrf.mxu0
    %v1264 = vadd.f32 0.0, %v1263
    %v1265 = vpop.f32.mrf.mxu0
    %1266 = vdwg.mxu0
    %1267 = vrot.lane.b32.xlu0 %v1080, 56
    %v1268 = vpop.permute.xlu0 %1267
    %v1270 = vsel %vm194, %v1245, 0
    %v1273 = vsel %vm271, %v1268, 0
    %1275 = vmatpush.bf16.msra.mxu0 0
    %1276 = vmatpush.bf16.msra.mxu0 0
    %1277 = vmatpush.bf16.msra.mxu0 0
    %1278 = vmatpush.bf16.msra.mxu0 0
    %1279 = vmatpush.bf16.msra.mxu0 0
    %1280 = vmatpush.bf16.msra.mxu0 0
    %1281 = vmatpush.bf16.msra.mxu0 0
    %1282 = vmatpush.bf16.msra.mxu0 %v1273
    %1283 = vmatmul.bf16.gmra.mxu0 %v1270
    %v1284 = vpop.f32.mrf.mxu0
    %v1285 = vadd.f32 0.0, %v1284
    %v1286 = vpop.f32.mrf.mxu0
    %1287 = vdwg.mxu0
    %1288 = vrot.lane.b32.xlu0 %v1056, 112
    %v1289 = vpop.permute.xlu0 %1288
    %1290 = vrot.lane.b32.xlu0 %v1056, 80
    %v1291 = vpop.permute.xlu0 %1290
    %v1293 = vsel %vm194, %v1289, 0
    %v1296 = vsel %vm194, %v1291, 0
    %1298 = vmatpush.bf16.xpose.msra.mxu0 0
    %1299 = vmatpush.bf16.xpose.msra.mxu0 0
    %1300 = vmatpush.bf16.xpose.msra.mxu0 0
    %1301 = vmatpush.bf16.xpose.msra.mxu0 0
    %1302 = vmatpush.bf16.xpose.msra.mxu0 0
    %1303 = vmatpush.bf16.xpose.msra.mxu0 0
    %1304 = vmatpush.bf16.xpose.msra.mxu0 0
    %1305 = vmatpush.bf16.xpose.msra.mxu0 %v1296
    %1306 = vmatmul.bf16.gmra.mxu0 %v1293
    %v1307 = vpop.f32.mrf.mxu0
    %v1308 = vadd.f32 0.0, %v1307
    %v1309 = vpop.f32.mrf.mxu0
    %1310 = vdwg.mxu0
    %1311 = vrot.lane.b32.xlu0 %v1080, 112
    %v1312 = vpop.permute.xlu0 %1311
    %1313 = vrot.lane.b32.xlu0 %v1080, 80
    %v1314 = vpop.permute.xlu0 %1313
    %v1316 = vsel %vm194, %v1312, 0
    %v1319 = vsel %vm194, %v1314, 0
    %1321 = vmatpush.bf16.xpose.msra.mxu0 0
    %1322 = vmatpush.bf16.xpose.msra.mxu0 0
    %1323 = vmatpush.bf16.xpose.msra.mxu0 0
    %1324 = vmatpush.bf16.xpose.msra.mxu0 0
    %1325 = vmatpush.bf16.xpose.msra.mxu0 0
    %1326 = vmatpush.bf16.xpose.msra.mxu0 0
    %1327 = vmatpush.bf16.xpose.msra.mxu0 0
    %1328 = vmatpush.bf16.xpose.msra.mxu0 %v1319
    %1329 = vmatmul.bf16.gmra.mxu0 %v1316
    %v1330 = vpop.f32.mrf.mxu0
    %v1331 = vadd.f32 0.0, %v1330
    %v1332 = vpop.f32.mrf.mxu0
    %1333 = vdwg.mxu0
    %v1334 = vmul.f32 %v1308, 0.35355338
    %v1335 = vmul.f32 %v1331, 0.35355338
    %v1336 = vadd.f32 %v1334, %v82
    %v1337 = vadd.f32 %v1335, %v82
    %v1338 = vsel %vm194, %v1336, -inf
    %1339 = vmax.xlane.f32.xlu0 %v1338
    %v1340 = vpop.xlane.xlu0 %1339
    %v1341 = vsel %vm194, %v1337, -inf
    %1342 = vmax.xlane.f32.xlu0 %v1341
    %v1343 = vpop.xlane.xlu0 %1342
    %v1344 = vsub.f32 %v1336, %v1340
    %v1345 = vsub.f32 %v1337, %v1343
    %v1346 = vmul.f32 %v1344, 1.442695
    %v1347 = vpow.pop %v1346
    %v1348 = vmul.f32 %v1345, 1.442695
    %v1349 = vpow.pop %v1348
    %v1350 = vsel %vm194, %v1347, 0.0
    %1351 = vadd.xlane.f32.xlu0 %v1350
    %v1352 = vpop.xlane.xlu0 %1351
    %v1353 = vsel %vm194, %v1349, 0.0
    %1354 = vadd.xlane.f32.xlu0 %v1353
    %v1355 = vpop.xlane.xlu0 %1354
    %v1356 = vrcp.pop %v1352
    %v1357 = vrcp.pop %v1355
    %v1358 = vmul.f32 %v1347, %v1356
    %v1359 = vmul.f32 %v1349, %v1357
    %v1360 = vpack.c.bf16 %v1358, %v1358
    %v1361 = vpack.c.bf16 %v1359, %v1359
    %1362 = vrot.lane.b32.xlu0 %v1056, 48
    %v1363 = vpop.permute.xlu0 %1362
    %v1365 = vsel %vm194, %v1360, 0
    %v1368 = vsel %vm271, %v1363, 0
    %1370 = vmatpush.bf16.msra.mxu0 0
    %1371 = vmatpush.bf16.msra.mxu0 0
    %1372 = vmatpush.bf16.msra.mxu0 0
    %1373 = vmatpush.bf16.msra.mxu0 0
    %1374 = vmatpush.bf16.msra.mxu0 0
    %1375 = vmatpush.bf16.msra.mxu0 0
    %1376 = vmatpush.bf16.msra.mxu0 0
    %1377 = vmatpush.bf16.msra.mxu0 %v1368
    %1378 = vmatmul.bf16.gmra.mxu0 %v1365
    %v1379 = vpop.f32.mrf.mxu0
    %v1380 = vadd.f32 0.0, %v1379
    %v1381 = vpop.f32.mrf.mxu0
    %1382 = vdwg.mxu0
    %1383 = vrot.lane.b32.xlu0 %v1080, 48
    %v1384 = vpop.permute.xlu0 %1383
    %v1386 = vsel %vm194, %v1361, 0
    %v1389 = vsel %vm271, %v1384, 0
    %1391 = vmatpush.bf16.msra.mxu0 0
    %1392 = vmatpush.bf16.msra.mxu0 0
    %1393 = vmatpush.bf16.msra.mxu0 0
    %1394 = vmatpush.bf16.msra.mxu0 0
    %1395 = vmatpush.bf16.msra.mxu0 0
    %1396 = vmatpush.bf16.msra.mxu0 0
    %1397 = vmatpush.bf16.msra.mxu0 0
    %1398 = vmatpush.bf16.msra.mxu0 %v1389
    %1399 = vmatmul.bf16.gmra.mxu0 %v1386
    %v1400 = vpop.f32.mrf.mxu0
    %v1401 = vadd.f32 0.0, %v1400
    %v1402 = vpop.f32.mrf.mxu0
    %1403 = vdwg.mxu0
    %1404 = vrot.lane.b32.xlu0 %v1056, 104
    %v1405 = vpop.permute.xlu0 %1404
    %1406 = vrot.lane.b32.xlu0 %v1056, 72
    %v1407 = vpop.permute.xlu0 %1406
    %v1409 = vsel %vm194, %v1405, 0
    %v1412 = vsel %vm194, %v1407, 0
    %1414 = vmatpush.bf16.xpose.msra.mxu0 0
    %1415 = vmatpush.bf16.xpose.msra.mxu0 0
    %1416 = vmatpush.bf16.xpose.msra.mxu0 0
    %1417 = vmatpush.bf16.xpose.msra.mxu0 0
    %1418 = vmatpush.bf16.xpose.msra.mxu0 0
    %1419 = vmatpush.bf16.xpose.msra.mxu0 0
    %1420 = vmatpush.bf16.xpose.msra.mxu0 0
    %1421 = vmatpush.bf16.xpose.msra.mxu0 %v1412
    %1422 = vmatmul.bf16.gmra.mxu0 %v1409
    %v1423 = vpop.f32.mrf.mxu0
    %v1424 = vadd.f32 0.0, %v1423
    %v1425 = vpop.f32.mrf.mxu0
    %1426 = vdwg.mxu0
    %1427 = vrot.lane.b32.xlu0 %v1080, 104
    %v1428 = vpop.permute.xlu0 %1427
    %1429 = vrot.lane.b32.xlu0 %v1080, 72
    %v1430 = vpop.permute.xlu0 %1429
    %v1432 = vsel %vm194, %v1428, 0
    %v1435 = vsel %vm194, %v1430, 0
    %1437 = vmatpush.bf16.xpose.msra.mxu0 0
    %1438 = vmatpush.bf16.xpose.msra.mxu0 0
    %1439 = vmatpush.bf16.xpose.msra.mxu0 0
    %1440 = vmatpush.bf16.xpose.msra.mxu0 0
    %1441 = vmatpush.bf16.xpose.msra.mxu0 0
    %1442 = vmatpush.bf16.xpose.msra.mxu0 0
    %1443 = vmatpush.bf16.xpose.msra.mxu0 0
    %1444 = vmatpush.bf16.xpose.msra.mxu0 %v1435
    %1445 = vmatmul.bf16.gmra.mxu0 %v1432
    %v1446 = vpop.f32.mrf.mxu0
    %v1447 = vadd.f32 0.0, %v1446
    %v1448 = vpop.f32.mrf.mxu0
    %1449 = vdwg.mxu0
    %v1450 = vmul.f32 %v1424, 0.35355338
    %v1451 = vmul.f32 %v1447, 0.35355338
    %v1452 = vadd.f32 %v1450, %v82
    %v1453 = vadd.f32 %v1451, %v82
    %v1454 = vsel %vm194, %v1452, -inf
    %1455 = vmax.xlane.f32.xlu0 %v1454
    %v1456 = vpop.xlane.xlu0 %1455
    %v1457 = vsel %vm194, %v1453, -inf
    %1458 = vmax.xlane.f32.xlu0 %v1457
    %v1459 = vpop.xlane.xlu0 %1458
    %v1460 = vsub.f32 %v1452, %v1456
    %v1461 = vsub.f32 %v1453, %v1459
    %v1462 = vmul.f32 %v1460, 1.442695
    %v1463 = vpow.pop %v1462
    %v1464 = vmul.f32 %v1461, 1.442695
    %v1465 = vpow.pop %v1464
    %v1466 = vsel %vm194, %v1463, 0.0
    %1467 = vadd.xlane.f32.xlu0 %v1466
    %v1468 = vpop.xlane.xlu0 %1467
    %v1469 = vsel %vm194, %v1465, 0.0
    %1470 = vadd.xlane.f32.xlu0 %v1469
    %v1471 = vpop.xlane.xlu0 %1470
    %v1472 = vrcp.pop %v1468
    %v1473 = vrcp.pop %v1471
    %v1474 = vmul.f32 %v1463, %v1472
    %v1475 = vmul.f32 %v1465, %v1473
    %v1476 = vpack.c.bf16 %v1474, %v1474
    %v1477 = vpack.c.bf16 %v1475, %v1475
    %1478 = vrot.lane.b32.xlu0 %v1056, 40
    %v1479 = vpop.permute.xlu0 %1478
    %v1481 = vsel %vm194, %v1476, 0
    %v1484 = vsel %vm271, %v1479, 0
    %1486 = vmatpush.bf16.msra.mxu0 0
    %1487 = vmatpush.bf16.msra.mxu0 0
    %1488 = vmatpush.bf16.msra.mxu0 0
    %1489 = vmatpush.bf16.msra.mxu0 0
    %1490 = vmatpush.bf16.msra.mxu0 0
    %1491 = vmatpush.bf16.msra.mxu0 0
    %1492 = vmatpush.bf16.msra.mxu0 0
    %1493 = vmatpush.bf16.msra.mxu0 %v1484
    %1494 = vmatmul.bf16.gmra.mxu0 %v1481
    %v1495 = vpop.f32.mrf.mxu0
    %v1496 = vadd.f32 0.0, %v1495
    %v1497 = vpop.f32.mrf.mxu0
    %1498 = vdwg.mxu0
    %1499 = vrot.lane.b32.xlu0 %v1080, 40
    %v1500 = vpop.permute.xlu0 %1499
    %v1502 = vsel %vm194, %v1477, 0
    %v1505 = vsel %vm271, %v1500, 0
    %1507 = vmatpush.bf16.msra.mxu0 0
    %1508 = vmatpush.bf16.msra.mxu0 0
    %1509 = vmatpush.bf16.msra.mxu0 0
    %1510 = vmatpush.bf16.msra.mxu0 0
    %1511 = vmatpush.bf16.msra.mxu0 0
    %1512 = vmatpush.bf16.msra.mxu0 0
    %1513 = vmatpush.bf16.msra.mxu0 0
    %1514 = vmatpush.bf16.msra.mxu0 %v1505
    %1515 = vmatmul.bf16.gmra.mxu0 %v1502
    %v1516 = vpop.f32.mrf.mxu0
    %v1517 = vadd.f32 0.0, %v1516
    %v1518 = vpop.f32.mrf.mxu0
    %1519 = vdwg.mxu0
    %1522 = vrot.lane.b32.xlu0 %v1264, 8
    %v1523 = vpop.permute.xlu0 %1522
    %1524 = vrot.lane.b32.xlu0 %v1285, 8
    %v1525 = vpop.permute.xlu0 %1524
    %1530 = vrot.lane.b32.xlu0 %v1380, 16
    %v1531 = vpop.permute.xlu0 %1530
    %1532 = vrot.lane.b32.xlu0 %v1401, 16
    %v1533 = vpop.permute.xlu0 %1532
    %1538 = vrot.lane.b32.xlu0 %v1496, 24
    %v1539 = vpop.permute.xlu0 %1538
    %1540 = vrot.lane.b32.xlu0 %v1517, 24
    %v1541 = vpop.permute.xlu0 %1540
    %v1544 = vsel %vm194, %v1148, %v1523
    %v1545 = vsel %vm194, %v1169, %v1525
    %v1546 = vsel %vm683, %v1544, %v1531
    %v1547 = vsel %vm683, %v1545, %v1533
    %v1548 = vsel %vm686, %v1546, %v1539
    %v1549 = vsel %vm686, %v1547, %v1541
    %v1550 = vpack.c.bf16 %v1549, %v1548
    %s1551 = scalar_lea.vmem %s8, 16
    %v1552 = vld [vmem:[%s1551] sm:$0xf]
    %v1553 = vld [vmem:[%s1551 + $0x4] sm:$0xf]
    %v1554 = vld [vmem:[%s1551 + $0x8] sm:$0xf]
    %v1555 = vld [vmem:[%s1551 + $0xc] sm:$0xf]
    %v1560 = vunpack.c.l.b16 %v1552
    %v1561 = vunpack.c.l.b16 %v1553
    %v1562 = vunpack.c.l.b16 %v1554
    %v1563 = vunpack.c.l.b16 %v1555
    %v1564 = vpack.c.b16 %v1561, %v1560
    %v1565 = vpack.c.b16 %v1563, %v1562
    %v1569 = vsel %vm87, %v1550, 0
    %1571 = vmatpush.bf16.msra.mxu0 0
    %1572 = vmatpush.bf16.msra.mxu0 0
    %1573 = vmatpush.bf16.msra.mxu0 0
    %1574 = vmatpush.bf16.msra.mxu0 0
    %1575 = vmatpush.bf16.msra.mxu0 0
    %1576 = vmatpush.bf16.msra.mxu0 0
    %1577 = vmatpush.bf16.msra.mxu0 %v1565
    %1578 = vmatpush.bf16.msra.mxu0 %v1564
    %1579 = vmatmul.bf16.gmra.mxu0 %v1569
    %v1580 = vpop.f32.mrf.mxu0
    %v1581 = vadd.f32 0.0, %v1580
    %v1582 = vpop.f32.mrf.mxu0
    %v1583 = vadd.f32 0.0, %v1582
    %1584 = vdwg.mxu0
    %v1585 = vadd.f32 %v952, %v1581
    %v1586 = vadd.f32 %v953, %v1583
    %s1587 = scalar_lea.vmem %s9, 1
    %v1588 = vld [vmem:[%s1587] sm:$0x1]
    %v1590 = vperm.slane %v1588, 0
    %v1592 = vadd.f32 %v1585, %v1590
    %v1593 = vadd.f32 %v1586, %v1590
    %s1594 = scalar_lea.vmem %s10, 1
    %v1595 = vld [vmem:[%s1594] sm:$0x1]
    %s1596 = scalar_lea.vmem %s11, 1
    %v1597 = vld [vmem:[%s1596] sm:$0x1]
    %v1598 = vsel %vm87, %v1592, 0.0
    %1599 = vadd.xlane.f32.xlu0 %v1598
    %v1600 = vpop.xlane.xlu0 %1599
    %v1601 = vsel %vm87, %v1593, 0.0
    %1602 = vadd.xlane.f32.xlu0 %v1601
    %v1603 = vpop.xlane.xlu0 %1602
    %v1604 = vmul.f32 %v1600, %v100
    %v1605 = vmul.f32 %v1603, %v100
    %v1606 = vsub.f32 %v1592, %v1604
    %v1607 = vsub.f32 %v1593, %v1605
    %v1608 = vmul.f32 %v1606, %v1606
    %v1609 = vmul.f32 %v1607, %v1607
    %v1610 = vsel %vm87, %v1608, 0.0
    %1611 = vadd.xlane.f32.xlu0 %v1610
    %v1612 = vpop.xlane.xlu0 %1611
    %v1613 = vsel %vm87, %v1609, 0.0
    %1614 = vadd.xlane.f32.xlu0 %v1613
    %v1615 = vpop.xlane.xlu0 %1614
    %v1616 = vmul.f32 %v1612, %v100
    %v1617 = vmul.f32 %v1615, %v100
    %v1618 = vadd.f32 %v1616, 1e-05
    %v1619 = vadd.f32 %v1617, 1e-05
    %v1620 = vrsqrt.pop %v1618
    %v1621 = vmul.f32 %v1620, %v1618
    %v1622 = vmul.f32 %v1621, %v1620
    %v1623 = vmul.f32 0.5, %v1622
    %v1624 = vsub.f32 1.5, %v1623
    %v1625 = vmul.f32 %v1620, %v1624
    %vm1626 = vweird.f32 %v1618
    %vm1627 = vweird.f32 %v1620
    %vm1628 = vmor %vm1626, %vm1627
    %v1629 = vsel %vm1628, %v1620, %v1625
    %v1630 = vrsqrt.pop %v1619
    %v1631 = vmul.f32 %v1630, %v1619
    %v1632 = vmul.f32 %v1631, %v1630
    %v1633 = vmul.f32 0.5, %v1632
    %v1634 = vsub.f32 1.5, %v1633
    %v1635 = vmul.f32 %v1630, %v1634
    %vm1636 = vweird.f32 %v1619
    %vm1637 = vweird.f32 %v1630
    %vm1638 = vmor %vm1636, %vm1637
    %v1639 = vsel %vm1638, %v1630, %v1635
    %v1640 = vmul.f32 %v1606, %v1629
    %v1641 = vmul.f32 %v1607, %v1639
    %v1643 = vperm.slane %v1595, 0
    %v1645 = vmul.f32 %v1640, %v1643
    %v1646 = vmul.f32 %v1641, %v1643
    %v1648 = vperm.slane %v1597, 0
    %v1650 = vadd.f32 %v1645, %v1648
    %v1651 = vadd.f32 %v1646, %v1648
    %v1652 = vpack.c.bf16 %v1651, %v1650
    %s1653 = scalar_lea.vmem %s12, 16
    %v1654 = vld [vmem:[%s1653] sm:$0xf]
    %v1655 = vld [vmem:[%s1653 + $0x4] sm:$0xf]
    %v1656 = vld [vmem:[%s1653 + $0x8] sm:$0xf]
    %v1657 = vld [vmem:[%s1653 + $0xc] sm:$0xf]
    %s1658 = scalar_lea.vmem %s13, 1
    %v1659 = vld [vmem:[%s1658] sm:$0x1]
    %v1661 = vperm.slane %v1659, 0
    %v1667 = vunpack.c.l.b16 %v1654
    %v1668 = vunpack.c.l.b16 %v1655
    %v1669 = vunpack.c.l.b16 %v1656
    %v1670 = vunpack.c.l.b16 %v1657
    %v1671 = vpack.c.b16 %v1668, %v1667
    %v1672 = vpack.c.b16 %v1670, %v1669
    %v1676 = vsel %vm87, %v1652, 0
    %1678 = vmatpush.bf16.msra.mxu0 0
    %1679 = vmatpush.bf16.msra.mxu0 0
    %1680 = vmatpush.bf16.msra.mxu0 0
    %1681 = vmatpush.bf16.msra.mxu0 0
    %1682 = vmatpush.bf16.msra.mxu0 0
    %1683 = vmatpush.bf16.msra.mxu0 0
    %1684 = vmatpush.bf16.msra.mxu0 %v1672
    %1685 = vmatpush.bf16.msra.mxu0 %v1671
    %1686 = vmatmul.bf16.gmra.mxu0 %v1676
    %v1687 = vpop.f32.mrf.mxu0
    %v1688 = vadd.f32 %v1661, %v1687
    %v1689 = vpop.f32.mrf.mxu0
    %v1690 = vadd.f32 %v1661, %v1689
    %1691 = vdwg.mxu0
    %v1692 = vmul.f32 %v1688, 1.702
    %v1693 = vmul.f32 %v1690, 1.702
    %v1694 = vxor.u32 %v1692, 2147483648
    %v1695 = vxor.u32 %v1693, 2147483648
    %v1696 = vmul.f32 %v1694, 1.442695
    %v1697 = vpow.pop %v1696
    %v1698 = vmul.f32 %v1695, 1.442695
    %v1699 = vpow.pop %v1698
    %v1700 = vadd.f32 %v1697, 1.0
    %v1701 = vadd.f32 %v1699, 1.0
    %v1702 = vrcp.pop %v1700
    %v1703 = vmul.f32 %v1700, %v1702
    %v1704 = vsub.f32 1.0, %v1703
    %v1705 = vmul.f32 %v1702, %v1704
    %v1706 = vadd.f32 %v1702, %v1705
    %vm1707 = vweird.f32 %v1700
    %vm1708 = vweird.f32 %v1702
    %vm1709 = vmor %vm1707, %vm1708
    %v1710 = vsel %vm1709, %v1702, %v1706
    %v1711 = vand.u32 2147483647, %v1700
    %vm1712 = vcmp.eq.f32.partialorder %v1711, 8.507059e+37
    %v1713 = vand.u32 %v1700, 2147483648
    %v1714 = vor.u32 1.1754944e-38, %v1713
    %v1715 = vsel %vm1712, %v1714, %v1710
    %v1716 = vmul.f32 1.0, %v1715
    %v1717 = vrcp.pop %v1701
    %v1718 = vmul.f32 %v1701, %v1717
    %v1719 = vsub.f32 1.0, %v1718
    %v1720 = vmul.f32 %v1717, %v1719
    %v1721 = vadd.f32 %v1717, %v1720
    %vm1722 = vweird.f32 %v1701
    %vm1723 = vweird.f32 %v1717
    %vm1724 = vmor %vm1722, %vm1723
    %v1725 = vsel %vm1724, %v1717, %v1721
    %v1726 = vand.u32 2147483647, %v1701
    %vm1727 = vcmp.eq.f32.partialorder %v1726, 8.507059e+37
    %v1728 = vand.u32 %v1701, 2147483648
    %v1729 = vor.u32 1.1754944e-38, %v1728
    %v1730 = vsel %vm1727, %v1729, %v1725
    %v1731 = vmul.f32 1.0, %v1730
    %v1732 = vmul.f32 %v1688, %v1716
    %v1733 = vmul.f32 %v1690, %v1731
    %v1734 = vpack.c.bf16 %v1733, %v1732
    %s1735 = scalar_lea.vmem %s14, 64
    %v1736 = vld [vmem:[%s1735] sm:$0xf]
    %v1737 = vld [vmem:[%s1735 + $0x4] sm:$0xf]
    %v1738 = vld [vmem:[%s1735 + $0x8] sm:$0xf]
    %v1739 = vld [vmem:[%s1735 + $0xc] sm:$0xf]
    %v1740 = vld [vmem:[%s1735 + $0x10] sm:$0xf]
    %v1741 = vld [vmem:[%s1735 + $0x14] sm:$0xf]
    %v1742 = vld [vmem:[%s1735 + $0x18] sm:$0xf]
    %v1743 = vld [vmem:[%s1735 + $0x1c] sm:$0xf]
    %v1744 = vld [vmem:[%s1735 + $0x20] sm:$0xf]
    %v1745 = vld [vmem:[%s1735 + $0x24] sm:$0xf]
    %v1746 = vld [vmem:[%s1735 + $0x28] sm:$0xf]
    %v1747 = vld [vmem:[%s1735 + $0x2c] sm:$0xf]
    %v1748 = vld [vmem:[%s1735 + $0x30] sm:$0xf]
    %v1749 = vld [vmem:[%s1735 + $0x34] sm:$0xf]
    %v1750 = vld [vmem:[%s1735 + $0x38] sm:$0xf]
    %v1751 = vld [vmem:[%s1735 + $0x3c] sm:$0xf]
    %v1768 = vunpack.c.l.b16 %v1736
    %v1769 = vunpack.c.l.b16 %v1737
    %v1770 = vunpack.c.l.b16 %v1738
    %v1771 = vunpack.c.l.b16 %v1739
    %v1772 = vunpack.c.l.b16 %v1740
    %v1773 = vunpack.c.l.b16 %v1741
    %v1774 = vunpack.c.l.b16 %v1742
    %v1775 = vunpack.c.l.b16 %v1743
    %v1776 = vunpack.c.l.b16 %v1744
    %v1777 = vunpack.c.l.b16 %v1745
    %v1778 = vunpack.c.l.b16 %v1746
    %v1779 = vunpack.c.l.b16 %v1747
    %v1780 = vunpack.c.l.b16 %v1748
    %v1781 = vunpack.c.l.b16 %v1749
    %v1782 = vunpack.c.l.b16 %v1750
    %v1783 = vunpack.c.l.b16 %v1751
    %v1784 = vpack.c.b16 %v1769, %v1768
    %v1785 = vpack.c.b16 %v1771, %v1770
    %v1786 = vpack.c.b16 %v1773, %v1772
    %v1787 = vpack.c.b16 %v1775, %v1774
    %v1788 = vpack.c.b16 %v1777, %v1776
    %v1789 = vpack.c.b16 %v1779, %v1778
    %v1790 = vpack.c.b16 %v1781, %v1780
    %v1791 = vpack.c.b16 %v1783, %v1782
    %1800 = vmatpush.bf16.msra.mxu0 %v1791
    %1801 = vmatpush.bf16.msra.mxu0 %v1790
    %1802 = vmatpush.bf16.msra.mxu0 %v1789
    %1803 = vmatpush.bf16.msra.mxu0 %v1788
    %1804 = vmatpush.bf16.msra.mxu0 %v1787
    %1805 = vmatpush.bf16.msra.mxu0 %v1786
    %1806 = vmatpush.bf16.msra.mxu0 %v1785
    %1807 = vmatpush.bf16.msra.mxu0 %v1784
    %1808 = vmatmul.bf16.gmra.mxu0 %v1734
    %v1809 = vpop.f32.mrf.mxu0
    %v1810 = vadd.f32 0.0, %v1809
    %v1811 = vpop.f32.mrf.mxu0
    %v1812 = vadd.f32 0.0, %v1811
    %1813 = vdwg.mxu0
    %v1814 = vadd.f32 %v1592, %v1810
    %v1815 = vadd.f32 %v1593, %v1812
    %s1816 = scalar_lea.vmem %s15, 1
    %v1817 = vld [vmem:[%s1816] sm:$0x1]
    %v1819 = vperm.slane %v1817, 0
    %v1821 = vadd.f32 %v1814, %v1819
    %v1822 = vadd.f32 %v1815, %v1819
    %1823 = vst.msk [vmem:[#allocation2] sm:$0xff] %vm87, %v1821
    %1824 = vst.msk [vmem:[#allocation2 + $0x8] sm:$0xff] %vm87, %v1822
    // Predicated region
    $region78: #{tpu_custom_call.1} parent=1 // pred_check
      %p1825 = pneg %p70
    $region79: #{tpu_custom_call.1} parent=1 // pred_check_branch
      %1827 = sbr.rel (%p1825) target = $region81
    $region80: #{tpu_custom_call.1} parent=1 // pred_region
      %s1828 = sld [smem:[#allocation4]]
      %s1829 = scalar_lea.vmem [#allocation2], %s1828
      %v1830 = vld [vmem:[%s1829] sm:$0x1]
      %s1831 = sld [smem:[#allocation4 + $0x1]]
      %s1832 = scalar_lea.vmem [#allocation2], %s1831
      %v1833 = vld [vmem:[%s1832] sm:$0x1]
      %v1835 = vrot.slane %v1833, 7
      %vm1837 = vcmask 1040384
      %v1838 = vsel %vm1837, %v1830, %v1835
      %v1839 = vld [vmem:[%s16] sm:$0x1]
      %v1840 = vld [vmem:[%s17] sm:$0x1]
      %vm1841 = vcmask 254976
      %v1842 = vsel %vm1841, %v1838, 0.0
      %1843 = vadd.xlane.f32.xlu0 %v1842
      %v1844 = vpop.xlane.xlu0 %1843
      %v1845 = vmul.f32 %v1844, %v100
      %v1846 = vsub.f32 %v1838, %v1845
      %v1847 = vmul.f32 %v1846, %v1846
      %v1848 = vsel %vm1841, %v1847, 0.0
      %1849 = vadd.xlane.f32.xlu0 %v1848
      %v1850 = vpop.xlane.xlu0 %1849
      %v1851 = vmul.f32 %v1850, %v100
      %v1852 = vadd.f32 %v1851, 1e-05
      %v1853 = vrsqrt.pop %v1852
      %v1854 = vmul.f32 %v1853, %v1852
      %v1855 = vmul.f32 %v1854, %v1853
      %v1856 = vmul.f32 0.5, %v1855
      %v1857 = vsub.f32 1.5, %v1856
      %v1858 = vmul.f32 %v1853, %v1857
      %vm1859 = vweird.f32 %v1852
      %vm1860 = vweird.f32 %v1853
      %vm1861 = vmor %vm1859, %vm1860
      %v1862 = vsel %vm1861, %v1853, %v1858
      %v1863 = vmul.f32 %v1846, %v1862
      %v1865 = vperm.slane %v1839, 0
      %v1867 = vmul.f32 %v1863, %v1865
      %v1869 = vperm.slane %v1840, 0
      %v1871 = vadd.f32 %v1867, %v1869
      %v1872 = vpack.c.bf16 %v1871, %v1871
      %v1873 = vld [vmem:[%s18] sm:$0xf]
      %v1874 = vld [vmem:[%s18 + $0x4] sm:$0xf]
      %v1875 = vld [vmem:[%s18 + $0x8] sm:$0xf]
      %v1876 = vld [vmem:[%s18 + $0xc] sm:$0xf]
      %v1881 = vunpack.c.l.b16 %v1873
      %v1882 = vunpack.c.l.b16 %v1874
      %v1883 = vunpack.c.l.b16 %v1875
      %v1884 = vunpack.c.l.b16 %v1876
      %v1885 = vpack.c.b16 %v1882, %v1881
      %v1886 = vpack.c.b16 %v1884, %v1883
      %v1890 = vsel %vm87, %v1872, 0
      %1892 = vmatpush.bf16.msra.mxu0 0
      %1893 = vmatpush.bf16.msra.mxu0 0
      %1894 = vmatpush.bf16.msra.mxu0 0
      %1895 = vmatpush.bf16.msra.mxu0 0
      %1896 = vmatpush.bf16.msra.mxu0 0
      %1897 = vmatpush.bf16.msra.mxu0 0
      %1898 = vmatpush.bf16.msra.mxu0 %v1886
      %1899 = vmatpush.bf16.msra.mxu0 %v1885
      %1900 = vmatmul.bf16.gmra.mxu0 %v1890
      %v1901 = vpop.f32.mrf.mxu0
      %v1902 = vadd.f32 0.0, %v1901
      %v1903 = vpop.f32.mrf.mxu0
      %1904 = vdwg.mxu0
      %1905 = vst [vmem:[#allocation5] sm:$0x3] %v1902
    $region81: #{tpu_custom_call.1} parent=1 // pred_fallthru
      _
    // Predicated region
    $region82: #{tpu_custom_call.1} parent=1 // pred_check
      _
    $region83: #{tpu_custom_call.1} parent=1 // pred_check_branch
      %1907 = sbr.rel (0) target = $region85
    $region84: #{tpu_custom_call.1} parent=1 // pred_region
      %1909 = vsyncadd [#allocation6], 0
      %s1911 = sshll.u32 [#allocation5], 4
      %s1912 = int_to_ptr.vmem [resolvable:$true] %s1911
      %s1913 = sshll.u32 %s19, 4
      %s1914 = int_to_ptr.hbm [resolvable:$true] %s1913
      %1916 = dma.vmem_to_hbm [thread:$0]  %s1912, 32, %s1914, [#allocation6]
    $region85: #{tpu_custom_call.1} parent=1 // pred_fallthru
      _
    // Predicated region
    $region86: #{tpu_custom_call.1} parent=1 // pred_check
      _
    $region87: #{tpu_custom_call.1} parent=1 // pred_check_branch
      %1918 = sbr.rel (0) target = $region89
    $region88: #{tpu_custom_call.1} parent=1 // pred_region
      %1920 = dma.done [#allocation6], 32
    $region89: #{tpu_custom_call.1} parent=1 // pred_fallthru
      _
    %1921 = vsyncpa [#allocation6], 1

</llo_original>
